<compile_context>
chip_gen: v7x
topology: tpu7x:2x2x1
jax: 0.10.0
libtpu: 0.0.40
codegen_flags: <defaults>
</compile_context>

<pallas_src>
import functools

import numpy as np

import jax
import jax.numpy as jnp
from jax import lax
from jax.experimental import pallas as pl
from jax.experimental.pallas import tpu as pltpu


# ----------------------------------------------------------------------------
# Fused kernel: conv (im2col matmul) + bias + ReLU + avg-pool (matmul) +
#               flatten (PyTorch NCHW order via pre-permuted w1) + linear ->
#               ReLU -> linear.  Whole batch, no grid; everything stays in VMEM.
# ----------------------------------------------------------------------------
def fused_conv_mlp_kernel(x_ref, wc_ref, bc_ref, pool_ref, w1_ref, b1_ref,
                          w2_ref, b2_ref, o_ref,
                          patches_ref, pooled_ref, feats_ref, *, ksize):
    # x_ref:       (B, H+2p, W+2p, Cin)  padded NHWC input (whole batch)
    # wc_ref:      (KH*KW*Cin, Cout)     conv weight, im2col layout
    # bc_ref:      (1, Cout)             conv bias
    # pool_ref:    (S*B, B*Hout*Wout)    block-diagonal avg-pool operator, rows (s, b)
    # w1_ref:      (S*Cout, U)           linear_1 weight, rows permuted to (s, c) order
    # b1_ref:      (1, U)
    # w2_ref:      (U, num_classes)
    # b2_ref:      (1, num_classes)
    # o_ref:       (B, num_classes)
    # patches_ref: (B*Hout*Wout, KH*KW*Cin)  VMEM scratch (im2col matrix)
    # pooled_ref:  (S*B, Cout)               VMEM scratch (pooled activations)
    # feats_ref:   (B, S*Cout)               VMEM scratch (lane-dense flattened features)
    b, hp2, wp2, c_in = x_ref.shape
    h_out = hp2 - ksize + 1          # stride == 1
    w_out = wp2 - ksize + 1
    n_pos = b * h_out * w_out
    c_out = wc_ref.shape[1]
    s_tot = pooled_ref.shape[0] // b

    # ---- im2col: one Cin-wide column block per conv tap (9 static sliced stores) ----
    for kh in range(ksize):
        for kw in range(ksize):
            tap = kh * ksize + kw
            patch = x_ref[:, kh:kh + h_out, kw:kw + w_out, :]          # (B, Ho, Wo, Cin)
            # Leading-dim collapse only (last dim unchanged) -> cheap relayout.
            patches_ref[:, tap * c_in:(tap + 1) * c_in] = patch.reshape(n_pos, c_in)

    # ---- conv as a single MXU matmul, then bias + ReLU ----
    acc = jnp.dot(patches_ref[...], wc_ref[...],
                  preferred_element_type=jnp.float32)                  # (B*Ho*Wo, Cout)
    acc = jnp.maximum(acc + bc_ref[...], 0.0)

    # ---- average pool for the whole folded batch: one matmul with a block-diagonal
    #      operator whose rows are ordered (spatial s, batch b) ----
    pooled_ref[...] = jnp.dot(pool_ref[...], acc,
                              preferred_element_type=jnp.float32)      # (S*B, Cout)

    # ---- flatten: feats[b, s*Cout + c] = pooled[(s, b), c].
    #      w1's rows were permuted in the wrapper so this (s, c) ordering matches
    #      PyTorch's nn.Flatten over NCHW exactly.  Each step is a tiny (B, Cout)
    #      copy on a 4 KiB VMEM buffer -> negligible. ----
    for s in range(s_tot):
        feats_ref[:, s * c_out:(s + 1) * c_out] = pooled_ref[s * b:(s + 1) * b, :]

    # ---- MLP head: linear -> ReLU -> linear ----
    hidden = jnp.maximum(
        jnp.dot(feats_ref[...], w1_ref[...], preferred_element_type=jnp.float32)
        + b1_ref[...], 0.0)
    out = jnp.dot(hidden, w2_ref[...], preferred_element_type=jnp.float32) + b2_ref[...]
    o_ref[...] = out.astype(o_ref.dtype)


# ----------------------------------------------------------------------------
# Host-side (NumPy) constant: block-diagonal average-pool operator.
# Rows are ordered (spatial, batch); columns index the folded (batch, conv-position) axis.
# Built with NumPy so it becomes a plain XLA constant under jit.
# ----------------------------------------------------------------------------
def make_pool_matrix(batch, h_out, w_out, pool):
    hp, wp = h_out // pool, w_out // pool
    s_tot, p_tot = hp * wp, h_out * w_out
    mat = np.zeros((s_tot * batch, batch * p_tot), np.float32)
    scale = 1.0 / float(pool * pool)
    for s in range(s_tot):
        i, j = divmod(s, wp)
        for b in range(batch):
            row = s * batch + b
            for di in range(pool):
                for dj in range(pool):
                    col = b * p_tot + (pool * i + di) * w_out + (pool * j + dj)
                    mat[row, col] = scale
    return mat


# ----------------------------------------------------------------------------
# Wrapper
# ----------------------------------------------------------------------------
@functools.partial(jax.jit, static_argnames=("kernel_size", "padding", "pool"))
def conv_model_forward(x_nchw, params, *, kernel_size, padding, pool):
    w_conv, b_conv, w1, b1, w2, b2 = params
    kh, kw, c_in, c_out = w_conv.shape                 # HWIO
    assert kh == kw == kernel_size
    batch, _, img_h, img_w = x_nchw.shape
    h_out = img_h + 2 * padding - kernel_size + 1      # stride == 1
    w_out = img_w + 2 * padding - kernel_size + 1
    hp, wp = h_out // pool, w_out // pool
    s_tot = hp * wp
    n_feat = s_tot * c_out
    num_classes = w2.shape[1]

    # NCHW -> NHWC relayout + spatial zero pad: one tiny fused XLA copy (~10 KB).
    # Everything downstream runs inside the single Pallas kernel.
    x = jnp.transpose(x_nchw, (0, 2, 3, 1)).astype(jnp.float32)
    x_pad = jnp.pad(x, ((0, 0), (padding, padding), (padding, padding), (0, 0)))

    # Trace-time constants / weight reshuffles (folded by XLA, no runtime cost).
    pool_mat = jnp.asarray(make_pool_matrix(batch, h_out, w_out, pool))
    k_idx = np.arange(n_feat)
    # kernel emits features in (s, c) order; PyTorch flatten order is (c, s):
    #   w1_perm[s*Cout + c] = w1[c*S + s]
    perm = ((k_idx % c_out) * s_tot + (k_idx // c_out)).astype(np.int32)
    w1_perm = jnp.take(w1, jnp.asarray(perm), axis=0)
    wc_mat = w_conv.reshape(kernel_size * kernel_size * c_in, c_out)   # im2col layout

    kernel = functools.partial(fused_conv_mlp_kernel, ksize=kernel_size)
    return pl.pallas_call(
        kernel,
        out_shape=jax.ShapeDtypeStruct((batch, num_classes), jnp.float32),
        # No grid: the whole problem (inputs + weights + scratch < 1 MiB after tiling)
        # fits in VMEM with large headroom on v5e/v6e/v7x, so whole-array default
        # BlockSpecs are used deliberately.
        scratch_shapes=[
            pltpu.VMEM((batch * h_out * w_out,
                        kernel_size * kernel_size * c_in), jnp.float32),   # im2col
            pltpu.VMEM((s_tot * batch, c_out), jnp.float32),               # pooled
            pltpu.VMEM((batch, n_feat), jnp.float32),                      # flat feats
        ],
    )(x_pad, wc_mat, b_conv.reshape(1, -1), pool_mat,
      w1_perm, b1.reshape(1, -1), w2, b2.reshape(1, -1))


# ----------------------------------------------------------------------------
# Pure-JAX reference (correctness check against the Pallas kernel).
# ----------------------------------------------------------------------------
def ref_forward(x_nchw, params, *, padding, pool):
    w_conv, b_conv, w1, b1, w2, b2 = params
    w_oihw = jnp.transpose(w_conv, (3, 2, 0, 1))          # (Cout, Cin, KH, KW)
    y = lax.conv_general_dilated(
        x_nchw.astype(jnp.float32), w_oihw, window_strides=(1, 1),
        padding=((padding, padding), (padding, padding)),
        dimension_numbers=("NCHW", "OIHW", "NCHW"))
    y = jnp.maximum(y + b_conv[None, :, None, None], 0.0)
    n, c, h, w = y.shape
    y = y.reshape(n, c, h // pool, pool, w // pool, pool).mean(axis=(3, 5))
    feats = y.reshape(n, -1)
    h1 = jnp.maximum(feats @ w1 + b1, 0.0)
    return h1 @ w2 + b2


# ----------------------------------------------------------------------------
# Main
# ----------------------------------------------------------------------------
if __name__ == "__main__":
    # Hyper-parameters (small, consistent with the module's constructor).
    image_w, image_h, in_channels = 16, 16, 4
    out_channels, kernel_size, stride, padding = 8, 3, 1, 1
    avg_pool_size, linear_units, num_classes = 2, 32, 10
    batch = 2

    h_conv = (image_h - kernel_size + 2 * padding) // stride + 1
    w_conv_out = (image_w - kernel_size + 2 * padding) // stride + 1
    in_features = (h_conv // avg_pool_size) * (w_conv_out // avg_pool_size) * out_channels

    key = jax.random.PRNGKey(0)
    k_x, k_wc, k_bc, k_w1, k_b1, k_w2, k_b2 = jax.random.split(key, 7)

    # Deterministic synthetic parameters (shapes mirror the nn.Module's layers).
    w_conv = 0.1 * jax.random.normal(
        k_wc, (kernel_size, kernel_size, in_channels, out_channels), jnp.float32)
    b_conv = 0.1 * jax.random.normal(k_bc, (out_channels,), jnp.float32)
    w1 = 0.05 * jax.random.normal(k_w1, (in_features, linear_units), jnp.float32)
    b1 = 0.05 * jax.random.normal(k_b1, (linear_units,), jnp.float32)
    w2 = 0.05 * jax.random.normal(k_w2, (linear_units, num_classes), jnp.float32)
    b2 = 0.05 * jax.random.normal(k_b2, (num_classes,), jnp.float32)
    params = (w_conv, b_conv, w1, b1, w2, b2)

    # Input in PyTorch NCHW convention.
    x = jax.random.normal(k_x, (batch, in_channels, image_h, image_w), jnp.float32)

    out = conv_model_forward(x, params, kernel_size=kernel_size,
                             padding=padding, pool=avg_pool_size)
    out = jax.block_until_ready(out)

    ref = ref_forward(x, params, padding=padding, pool=avg_pool_size)
    assert out.shape == (batch, num_classes)
    assert jnp.allclose(out, ref, atol=1e-3, rtol=1e-3), "Pallas output mismatch vs reference"

    print("KERNEL_OK")
</pallas_src>

<mosaic_0001>
module attributes {stable_mosaic.version = 11 : i64} {
  func.func @fused_conv_mlp_kernel(%arg0: memref<2x18x18x4xf32, #tpu.memory_space<vmem>>, %arg1: memref<36x8xf32, #tpu.memory_space<vmem>>, %arg2: memref<1x8xf32, #tpu.memory_space<vmem>>, %arg3: memref<128x512xf32, #tpu.memory_space<vmem>>, %arg4: memref<512x32xf32, #tpu.memory_space<vmem>>, %arg5: memref<1x32xf32, #tpu.memory_space<vmem>>, %arg6: memref<32x10xf32, #tpu.memory_space<vmem>>, %arg7: memref<1x10xf32, #tpu.memory_space<vmem>>, %arg8: memref<2x10xf32, #tpu.memory_space<vmem>>, %arg9: memref<512x36xf32, #tpu.memory_space<vmem>>, %arg10: memref<128x8xf32, #tpu.memory_space<vmem>>, %arg11: memref<2x512xf32, #tpu.memory_space<vmem>>) attributes {dimension_semantics = [], scalar_prefetch = 0 : i64, scratch_operands = 3 : i64, tpu.core_type = #tpu.core_type<tc>} {
    %c0 = arith.constant 0 : index
    %c0_0 = arith.constant 0 : index
    %c0_1 = arith.constant 0 : index
    %c0_2 = arith.constant 0 : index
    %0 = vector.load %arg0[%c0, %c0_0, %c0_1, %c0_2] : memref<2x18x18x4xf32, #tpu.memory_space<vmem>>, vector<2x16x16x4xf32>
    %1 = vector.shape_cast %0 : vector<2x16x16x4xf32> to vector<512x4xf32>
    %c0_3 = arith.constant 0 : index
    %c0_4 = arith.constant 0 : index
    %2 = vector.load %arg9[%c0_3, %c0_4] : memref<512x36xf32, #tpu.memory_space<vmem>>, vector<512x4xf32>
    tpu.vector_store %arg9[%c0_3, %c0_4], %1 {strides = array<i32>} : memref<512x36xf32, #tpu.memory_space<vmem>>, vector<512x4xf32>,
    %c0_5 = arith.constant 0 : index
    %c0_6 = arith.constant 0 : index
    %c1 = arith.constant 1 : index
    %c0_7 = arith.constant 0 : index
    %3 = vector.load %arg0[%c0_5, %c0_6, %c1, %c0_7] : memref<2x18x18x4xf32, #tpu.memory_space<vmem>>, vector<2x16x16x4xf32>
    %4 = vector.shape_cast %3 : vector<2x16x16x4xf32> to vector<512x4xf32>
    %c0_8 = arith.constant 0 : index
    %c4 = arith.constant 4 : index
    %5 = vector.load %arg9[%c0_8, %c4] : memref<512x36xf32, #tpu.memory_space<vmem>>, vector<512x4xf32>
    tpu.vector_store %arg9[%c0_8, %c4], %4 {strides = array<i32>} : memref<512x36xf32, #tpu.memory_space<vmem>>, vector<512x4xf32>,
    %c0_9 = arith.constant 0 : index
    %c0_10 = arith.constant 0 : index
    %c2 = arith.constant 2 : index
    %c0_11 = arith.constant 0 : index
    %6 = vector.load %arg0[%c0_9, %c0_10, %c2, %c0_11] : memref<2x18x18x4xf32, #tpu.memory_space<vmem>>, vector<2x16x16x4xf32>
    %7 = vector.shape_cast %6 : vector<2x16x16x4xf32> to vector<512x4xf32>
    %c0_12 = arith.constant 0 : index
    %c8 = arith.constant 8 : index
    %8 = vector.load %arg9[%c0_12, %c8] : memref<512x36xf32, #tpu.memory_space<vmem>>, vector<512x4xf32>
    tpu.vector_store %arg9[%c0_12, %c8], %7 {strides = array<i32>} : memref<512x36xf32, #tpu.memory_space<vmem>>, vector<512x4xf32>,
    %c0_13 = arith.constant 0 : index
    %c1_14 = arith.constant 1 : index
    %c0_15 = arith.constant 0 : index
    %c0_16 = arith.constant 0 : index
    %9 = vector.load %arg0[%c0_13, %c1_14, %c0_15, %c0_16] : memref<2x18x18x4xf32, #tpu.memory_space<vmem>>, vector<2x16x16x4xf32>
    %10 = vector.shape_cast %9 : vector<2x16x16x4xf32> to vector<512x4xf32>
    %c0_17 = arith.constant 0 : index
    %c12 = arith.constant 12 : index
    %11 = vector.load %arg9[%c0_17, %c12] : memref<512x36xf32, #tpu.memory_space<vmem>>, vector<512x4xf32>
    tpu.vector_store %arg9[%c0_17, %c12], %10 {strides = array<i32>} : memref<512x36xf32, #tpu.memory_space<vmem>>, vector<512x4xf32>,
    %c0_18 = arith.constant 0 : index
    %c1_19 = arith.constant 1 : index
    %c1_20 = arith.constant 1 : index
    %c0_21 = arith.constant 0 : index
    %12 = vector.load %arg0[%c0_18, %c1_19, %c1_20, %c0_21] : memref<2x18x18x4xf32, #tpu.memory_space<vmem>>, vector<2x16x16x4xf32>
    %13 = vector.shape_cast %12 : vector<2x16x16x4xf32> to vector<512x4xf32>
    %c0_22 = arith.constant 0 : index
    %c16 = arith.constant 16 : index
    %14 = vector.load %arg9[%c0_22, %c16] : memref<512x36xf32, #tpu.memory_space<vmem>>, vector<512x4xf32>
    tpu.vector_store %arg9[%c0_22, %c16], %13 {strides = array<i32>} : memref<512x36xf32, #tpu.memory_space<vmem>>, vector<512x4xf32>,
    %c0_23 = arith.constant 0 : index
    %c1_24 = arith.constant 1 : index
    %c2_25 = arith.constant 2 : index
    %c0_26 = arith.constant 0 : index
    %15 = vector.load %arg0[%c0_23, %c1_24, %c2_25, %c0_26] : memref<2x18x18x4xf32, #tpu.memory_space<vmem>>, vector<2x16x16x4xf32>
    %16 = vector.shape_cast %15 : vector<2x16x16x4xf32> to vector<512x4xf32>
    %c0_27 = arith.constant 0 : index
    %c20 = arith.constant 20 : index
    %17 = vector.load %arg9[%c0_27, %c20] : memref<512x36xf32, #tpu.memory_space<vmem>>, vector<512x4xf32>
    tpu.vector_store %arg9[%c0_27, %c20], %16 {strides = array<i32>} : memref<512x36xf32, #tpu.memory_space<vmem>>, vector<512x4xf32>,
    %c0_28 = arith.constant 0 : index
    %c2_29 = arith.constant 2 : index
    %c0_30 = arith.constant 0 : index
    %c0_31 = arith.constant 0 : index
    %18 = vector.load %arg0[%c0_28, %c2_29, %c0_30, %c0_31] : memref<2x18x18x4xf32, #tpu.memory_space<vmem>>, vector<2x16x16x4xf32>
    %19 = vector.shape_cast %18 : vector<2x16x16x4xf32> to vector<512x4xf32>
    %c0_32 = arith.constant 0 : index
    %c24 = arith.constant 24 : index
    %20 = vector.load %arg9[%c0_32, %c24] : memref<512x36xf32, #tpu.memory_space<vmem>>, vector<512x4xf32>
    tpu.vector_store %arg9[%c0_32, %c24], %19 {strides = array<i32>} : memref<512x36xf32, #tpu.memory_space<vmem>>, vector<512x4xf32>,
    %c0_33 = arith.constant 0 : index
    %c2_34 = arith.constant 2 : index
    %c1_35 = arith.constant 1 : index
    %c0_36 = arith.constant 0 : index
    %21 = vector.load %arg0[%c0_33, %c2_34, %c1_35, %c0_36] : memref<2x18x18x4xf32, #tpu.memory_space<vmem>>, vector<2x16x16x4xf32>
    %22 = vector.shape_cast %21 : vector<2x16x16x4xf32> to vector<512x4xf32>
    %c0_37 = arith.constant 0 : index
    %c28 = arith.constant 28 : index
    %23 = vector.load %arg9[%c0_37, %c28] : memref<512x36xf32, #tpu.memory_space<vmem>>, vector<512x4xf32>
    tpu.vector_store %arg9[%c0_37, %c28], %22 {strides = array<i32>} : memref<512x36xf32, #tpu.memory_space<vmem>>, vector<512x4xf32>,
    %c0_38 = arith.constant 0 : index
    %c2_39 = arith.constant 2 : index
    %c2_40 = arith.constant 2 : index
    %c0_41 = arith.constant 0 : index
    %24 = vector.load %arg0[%c0_38, %c2_39, %c2_40, %c0_41] : memref<2x18x18x4xf32, #tpu.memory_space<vmem>>, vector<2x16x16x4xf32>
    %25 = vector.shape_cast %24 : vector<2x16x16x4xf32> to vector<512x4xf32>
    %c0_42 = arith.constant 0 : index
    %c32 = arith.constant 32 : index
    %26 = vector.load %arg9[%c0_42, %c32] : memref<512x36xf32, #tpu.memory_space<vmem>>, vector<512x4xf32>
    tpu.vector_store %arg9[%c0_42, %c32], %25 {strides = array<i32>} : memref<512x36xf32, #tpu.memory_space<vmem>>, vector<512x4xf32>,
    %c0_43 = arith.constant 0 : index
    %c0_44 = arith.constant 0 : index
    %27 = vector.load %arg9[%c0_43, %c0_44] : memref<512x36xf32, #tpu.memory_space<vmem>>, vector<512x36xf32>
    %c0_45 = arith.constant 0 : index
    %c0_46 = arith.constant 0 : index
    %28 = vector.load %arg1[%c0_45, %c0_46] : memref<36x8xf32, #tpu.memory_space<vmem>>, vector<36x8xf32>
    %cst = arith.constant dense<0.000000e+00> : vector<512x8xf32>
    %29 = tpu.matmul %27, %28, %cst {dimension_numbers = #tpu.dot_dimension_numbers<[1], [0], [0], [1], [0, 0, 1, 1], [], []>} : vector<512x36xf32>, vector<36x8xf32>, vector<512x8xf32> -> vector<512x8xf32>
    %c0_47 = arith.constant 0 : index
    %c0_48 = arith.constant 0 : index
    %30 = vector.load %arg2[%c0_47, %c0_48] : memref<1x8xf32, #tpu.memory_space<vmem>>, vector<1x8xf32>
    %31 = vector.broadcast %30 : vector<1x8xf32> to vector<512x8xf32>
    %32 = arith.addf %29, %31 : vector<512x8xf32>
    %cst_49 = arith.constant 0.000000e+00 : f32
    %33 = vector.broadcast %cst_49 : f32 to vector<512x8xf32>
    %34 = arith.maximumf %32, %33 : vector<512x8xf32>
    %c0_50 = arith.constant 0 : index
    %c0_51 = arith.constant 0 : index
    %35 = vector.load %arg3[%c0_50, %c0_51] : memref<128x512xf32, #tpu.memory_space<vmem>>, vector<128x512xf32>
    %cst_52 = arith.constant dense<0.000000e+00> : vector<128x8xf32>
    %36 = tpu.matmul %35, %34, %cst_52 {dimension_numbers = #tpu.dot_dimension_numbers<[1], [0], [0], [1], [0, 0, 1, 1], [], []>} : vector<128x512xf32>, vector<512x8xf32>, vector<128x8xf32> -> vector<128x8xf32>
    %c0_53 = arith.constant 0 : index
    %c0_54 = arith.constant 0 : index
    %37 = vector.load %arg10[%c0_53, %c0_54] : memref<128x8xf32, #tpu.memory_space<vmem>>, vector<128x8xf32>
    tpu.vector_store %arg10[%c0_53, %c0_54], %36 {strides = array<i32>} : memref<128x8xf32, #tpu.memory_space<vmem>>, vector<128x8xf32>,
    %c0_55 = arith.constant 0 : index
    %c0_56 = arith.constant 0 : index
    %38 = vector.load %arg10[%c0_55, %c0_56] : memref<128x8xf32, #tpu.memory_space<vmem>>, vector<2x8xf32>
    %c0_57 = arith.constant 0 : index
    %c0_58 = arith.constant 0 : index
    %39 = vector.load %arg11[%c0_57, %c0_58] : memref<2x512xf32, #tpu.memory_space<vmem>>, vector<2x8xf32>
    tpu.vector_store %arg11[%c0_57, %c0_58], %38 {strides = array<i32>} : memref<2x512xf32, #tpu.memory_space<vmem>>, vector<2x8xf32>,
    %c2_59 = arith.constant 2 : index
    %c0_60 = arith.constant 0 : index
    %40 = vector.load %arg10[%c2_59, %c0_60] : memref<128x8xf32, #tpu.memory_space<vmem>>, vector<2x8xf32>
    %c0_61 = arith.constant 0 : index
    %c8_62 = arith.constant 8 : index
    %41 = vector.load %arg11[%c0_61, %c8_62] : memref<2x512xf32, #tpu.memory_space<vmem>>, vector<2x8xf32>
    tpu.vector_store %arg11[%c0_61, %c8_62], %40 {strides = array<i32>} : memref<2x512xf32, #tpu.memory_space<vmem>>, vector<2x8xf32>,
    %c4_63 = arith.constant 4 : index
    %c0_64 = arith.constant 0 : index
    %42 = vector.load %arg10[%c4_63, %c0_64] : memref<128x8xf32, #tpu.memory_space<vmem>>, vector<2x8xf32>
    %c0_65 = arith.constant 0 : index
    %c16_66 = arith.constant 16 : index
    %43 = vector.load %arg11[%c0_65, %c16_66] : memref<2x512xf32, #tpu.memory_space<vmem>>, vector<2x8xf32>
    tpu.vector_store %arg11[%c0_65, %c16_66], %42 {strides = array<i32>} : memref<2x512xf32, #tpu.memory_space<vmem>>, vector<2x8xf32>,
    %c6 = arith.constant 6 : index
    %c0_67 = arith.constant 0 : index
    %44 = vector.load %arg10[%c6, %c0_67] : memref<128x8xf32, #tpu.memory_space<vmem>>, vector<2x8xf32>
    %c0_68 = arith.constant 0 : index
    %c24_69 = arith.constant 24 : index
    %45 = vector.load %arg11[%c0_68, %c24_69] : memref<2x512xf32, #tpu.memory_space<vmem>>, vector<2x8xf32>
    tpu.vector_store %arg11[%c0_68, %c24_69], %44 {strides = array<i32>} : memref<2x512xf32, #tpu.memory_space<vmem>>, vector<2x8xf32>,
    %c8_70 = arith.constant 8 : index
    %c0_71 = arith.constant 0 : index
    %46 = vector.load %arg10[%c8_70, %c0_71] : memref<128x8xf32, #tpu.memory_space<vmem>>, vector<2x8xf32>
    %c0_72 = arith.constant 0 : index
    %c32_73 = arith.constant 32 : index
    %47 = vector.load %arg11[%c0_72, %c32_73] : memref<2x512xf32, #tpu.memory_space<vmem>>, vector<2x8xf32>
    tpu.vector_store %arg11[%c0_72, %c32_73], %46 {strides = array<i32>} : memref<2x512xf32, #tpu.memory_space<vmem>>, vector<2x8xf32>,
    %c10 = arith.constant 10 : index
    %c0_74 = arith.constant 0 : index
    %48 = vector.load %arg10[%c10, %c0_74] : memref<128x8xf32, #tpu.memory_space<vmem>>, vector<2x8xf32>
    %c0_75 = arith.constant 0 : index
    %c40 = arith.constant 40 : index
    %49 = vector.load %arg11[%c0_75, %c40] : memref<2x512xf32, #tpu.memory_space<vmem>>, vector<2x8xf32>
    tpu.vector_store %arg11[%c0_75, %c40], %48 {strides = array<i32>} : memref<2x512xf32, #tpu.memory_space<vmem>>, vector<2x8xf32>,
    %c12_76 = arith.constant 12 : index
    %c0_77 = arith.constant 0 : index
    %50 = vector.load %arg10[%c12_76, %c0_77] : memref<128x8xf32, #tpu.memory_space<vmem>>, vector<2x8xf32>
    %c0_78 = arith.constant 0 : index
    %c48 = arith.constant 48 : index
    %51 = vector.load %arg11[%c0_78, %c48] : memref<2x512xf32, #tpu.memory_space<vmem>>, vector<2x8xf32>
    tpu.vector_store %arg11[%c0_78, %c48], %50 {strides = array<i32>} : memref<2x512xf32, #tpu.memory_space<vmem>>, vector<2x8xf32>,
    %c14 = arith.constant 14 : index
    %c0_79 = arith.constant 0 : index
    %52 = vector.load %arg10[%c14, %c0_79] : memref<128x8xf32, #tpu.memory_space<vmem>>, vector<2x8xf32>
    %c0_80 = arith.constant 0 : index
    %c56 = arith.constant 56 : index
    %53 = vector.load %arg11[%c0_80, %c56] : memref<2x512xf32, #tpu.memory_space<vmem>>, vector<2x8xf32>
    tpu.vector_store %arg11[%c0_80, %c56], %52 {strides = array<i32>} : memref<2x512xf32, #tpu.memory_space<vmem>>, vector<2x8xf32>,
    %c16_81 = arith.constant 16 : index
    %c0_82 = arith.constant 0 : index
    %54 = vector.load %arg10[%c16_81, %c0_82] : memref<128x8xf32, #tpu.memory_space<vmem>>, vector<2x8xf32>
    %c0_83 = arith.constant 0 : index
    %c64 = arith.constant 64 : index
    %55 = vector.load %arg11[%c0_83, %c64] : memref<2x512xf32, #tpu.memory_space<vmem>>, vector<2x8xf32>
    tpu.vector_store %arg11[%c0_83, %c64], %54 {strides = array<i32>} : memref<2x512xf32, #tpu.memory_space<vmem>>, vector<2x8xf32>,
    %c18 = arith.constant 18 : index
    %c0_84 = arith.constant 0 : index
    %56 = vector.load %arg10[%c18, %c0_84] : memref<128x8xf32, #tpu.memory_space<vmem>>, vector<2x8xf32>
    %c0_85 = arith.constant 0 : index
    %c72 = arith.constant 72 : index
    %57 = vector.load %arg11[%c0_85, %c72] : memref<2x512xf32, #tpu.memory_space<vmem>>, vector<2x8xf32>
    tpu.vector_store %arg11[%c0_85, %c72], %56 {strides = array<i32>} : memref<2x512xf32, #tpu.memory_space<vmem>>, vector<2x8xf32>,
    %c20_86 = arith.constant 20 : index
    %c0_87 = arith.constant 0 : index
    %58 = vector.load %arg10[%c20_86, %c0_87] : memref<128x8xf32, #tpu.memory_space<vmem>>, vector<2x8xf32>
    %c0_88 = arith.constant 0 : index
    %c80 = arith.constant 80 : index
    %59 = vector.load %arg11[%c0_88, %c80] : memref<2x512xf32, #tpu.memory_space<vmem>>, vector<2x8xf32>
    tpu.vector_store %arg11[%c0_88, %c80], %58 {strides = array<i32>} : memref<2x512xf32, #tpu.memory_space<vmem>>, vector<2x8xf32>,
    %c22 = arith.constant 22 : index
    %c0_89 = arith.constant 0 : index
    %60 = vector.load %arg10[%c22, %c0_89] : memref<128x8xf32, #tpu.memory_space<vmem>>, vector<2x8xf32>
    %c0_90 = arith.constant 0 : index
    %c88 = arith.constant 88 : index
    %61 = vector.load %arg11[%c0_90, %c88] : memref<2x512xf32, #tpu.memory_space<vmem>>, vector<2x8xf32>
    tpu.vector_store %arg11[%c0_90, %c88], %60 {strides = array<i32>} : memref<2x512xf32, #tpu.memory_space<vmem>>, vector<2x8xf32>,
    %c24_91 = arith.constant 24 : index
    %c0_92 = arith.constant 0 : index
    %62 = vector.load %arg10[%c24_91, %c0_92] : memref<128x8xf32, #tpu.memory_space<vmem>>, vector<2x8xf32>
    %c0_93 = arith.constant 0 : index
    %c96 = arith.constant 96 : index
    %63 = vector.load %arg11[%c0_93, %c96] : memref<2x512xf32, #tpu.memory_space<vmem>>, vector<2x8xf32>
    tpu.vector_store %arg11[%c0_93, %c96], %62 {strides = array<i32>} : memref<2x512xf32, #tpu.memory_space<vmem>>, vector<2x8xf32>,
    %c26 = arith.constant 26 : index
    %c0_94 = arith.constant 0 : index
    %64 = vector.load %arg10[%c26, %c0_94] : memref<128x8xf32, #tpu.memory_space<vmem>>, vector<2x8xf32>
    %c0_95 = arith.constant 0 : index
    %c104 = arith.constant 104 : index
    %65 = vector.load %arg11[%c0_95, %c104] : memref<2x512xf32, #tpu.memory_space<vmem>>, vector<2x8xf32>
    tpu.vector_store %arg11[%c0_95, %c104], %64 {strides = array<i32>} : memref<2x512xf32, #tpu.memory_space<vmem>>, vector<2x8xf32>,
    %c28_96 = arith.constant 28 : index
    %c0_97 = arith.constant 0 : index
    %66 = vector.load %arg10[%c28_96, %c0_97] : memref<128x8xf32, #tpu.memory_space<vmem>>, vector<2x8xf32>
    %c0_98 = arith.constant 0 : index
    %c112 = arith.constant 112 : index
    %67 = vector.load %arg11[%c0_98, %c112] : memref<2x512xf32, #tpu.memory_space<vmem>>, vector<2x8xf32>
    tpu.vector_store %arg11[%c0_98, %c112], %66 {strides = array<i32>} : memref<2x512xf32, #tpu.memory_space<vmem>>, vector<2x8xf32>,
    %c30 = arith.constant 30 : index
    %c0_99 = arith.constant 0 : index
    %68 = vector.load %arg10[%c30, %c0_99] : memref<128x8xf32, #tpu.memory_space<vmem>>, vector<2x8xf32>
    %c0_100 = arith.constant 0 : index
    %c120 = arith.constant 120 : index
    %69 = vector.load %arg11[%c0_100, %c120] : memref<2x512xf32, #tpu.memory_space<vmem>>, vector<2x8xf32>
    tpu.vector_store %arg11[%c0_100, %c120], %68 {strides = array<i32>} : memref<2x512xf32, #tpu.memory_space<vmem>>, vector<2x8xf32>,
    %c32_101 = arith.constant 32 : index
    %c0_102 = arith.constant 0 : index
    %70 = vector.load %arg10[%c32_101, %c0_102] : memref<128x8xf32, #tpu.memory_space<vmem>>, vector<2x8xf32>
    %c0_103 = arith.constant 0 : index
    %c128 = arith.constant 128 : index
    %71 = vector.load %arg11[%c0_103, %c128] : memref<2x512xf32, #tpu.memory_space<vmem>>, vector<2x8xf32>
    tpu.vector_store %arg11[%c0_103, %c128], %70 {strides = array<i32>} : memref<2x512xf32, #tpu.memory_space<vmem>>, vector<2x8xf32>,
    %c34 = arith.constant 34 : index
    %c0_104 = arith.constant 0 : index
    %72 = vector.load %arg10[%c34, %c0_104] : memref<128x8xf32, #tpu.memory_space<vmem>>, vector<2x8xf32>
    %c0_105 = arith.constant 0 : index
    %c136 = arith.constant 136 : index
    %73 = vector.load %arg11[%c0_105, %c136] : memref<2x512xf32, #tpu.memory_space<vmem>>, vector<2x8xf32>
    tpu.vector_store %arg11[%c0_105, %c136], %72 {strides = array<i32>} : memref<2x512xf32, #tpu.memory_space<vmem>>, vector<2x8xf32>,
    %c36 = arith.constant 36 : index
    %c0_106 = arith.constant 0 : index
    %74 = vector.load %arg10[%c36, %c0_106] : memref<128x8xf32, #tpu.memory_space<vmem>>, vector<2x8xf32>
    %c0_107 = arith.constant 0 : index
    %c144 = arith.constant 144 : index
    %75 = vector.load %arg11[%c0_107, %c144] : memref<2x512xf32, #tpu.memory_space<vmem>>, vector<2x8xf32>
    tpu.vector_store %arg11[%c0_107, %c144], %74 {strides = array<i32>} : memref<2x512xf32, #tpu.memory_space<vmem>>, vector<2x8xf32>,
    %c38 = arith.constant 38 : index
    %c0_108 = arith.constant 0 : index
    %76 = vector.load %arg10[%c38, %c0_108] : memref<128x8xf32, #tpu.memory_space<vmem>>, vector<2x8xf32>
    %c0_109 = arith.constant 0 : index
    %c152 = arith.constant 152 : index
    %77 = vector.load %arg11[%c0_109, %c152] : memref<2x512xf32, #tpu.memory_space<vmem>>, vector<2x8xf32>
    tpu.vector_store %arg11[%c0_109, %c152], %76 {strides = array<i32>} : memref<2x512xf32, #tpu.memory_space<vmem>>, vector<2x8xf32>,
    %c40_110 = arith.constant 40 : index
    %c0_111 = arith.constant 0 : index
    %78 = vector.load %arg10[%c40_110, %c0_111] : memref<128x8xf32, #tpu.memory_space<vmem>>, vector<2x8xf32>
    %c0_112 = arith.constant 0 : index
    %c160 = arith.constant 160 : index
    %79 = vector.load %arg11[%c0_112, %c160] : memref<2x512xf32, #tpu.memory_space<vmem>>, vector<2x8xf32>
    tpu.vector_store %arg11[%c0_112, %c160], %78 {strides = array<i32>} : memref<2x512xf32, #tpu.memory_space<vmem>>, vector<2x8xf32>,
    %c42 = arith.constant 42 : index
    %c0_113 = arith.constant 0 : index
    %80 = vector.load %arg10[%c42, %c0_113] : memref<128x8xf32, #tpu.memory_space<vmem>>, vector<2x8xf32>
    %c0_114 = arith.constant 0 : index
    %c168 = arith.constant 168 : index
    %81 = vector.load %arg11[%c0_114, %c168] : memref<2x512xf32, #tpu.memory_space<vmem>>, vector<2x8xf32>
    tpu.vector_store %arg11[%c0_114, %c168], %80 {strides = array<i32>} : memref<2x512xf32, #tpu.memory_space<vmem>>, vector<2x8xf32>,
    %c44 = arith.constant 44 : index
    %c0_115 = arith.constant 0 : index
    %82 = vector.load %arg10[%c44, %c0_115] : memref<128x8xf32, #tpu.memory_space<vmem>>, vector<2x8xf32>
    %c0_116 = arith.constant 0 : index
    %c176 = arith.constant 176 : index
    %83 = vector.load %arg11[%c0_116, %c176] : memref<2x512xf32, #tpu.memory_space<vmem>>, vector<2x8xf32>
    tpu.vector_store %arg11[%c0_116, %c176], %82 {strides = array<i32>} : memref<2x512xf32, #tpu.memory_space<vmem>>, vector<2x8xf32>,
    %c46 = arith.constant 46 : index
    %c0_117 = arith.constant 0 : index
    %84 = vector.load %arg10[%c46, %c0_117] : memref<128x8xf32, #tpu.memory_space<vmem>>, vector<2x8xf32>
    %c0_118 = arith.constant 0 : index
    %c184 = arith.constant 184 : index
    %85 = vector.load %arg11[%c0_118, %c184] : memref<2x512xf32, #tpu.memory_space<vmem>>, vector<2x8xf32>
    tpu.vector_store %arg11[%c0_118, %c184], %84 {strides = array<i32>} : memref<2x512xf32, #tpu.memory_space<vmem>>, vector<2x8xf32>,
    %c48_119 = arith.constant 48 : index
    %c0_120 = arith.constant 0 : index
    %86 = vector.load %arg10[%c48_119, %c0_120] : memref<128x8xf32, #tpu.memory_space<vmem>>, vector<2x8xf32>
    %c0_121 = arith.constant 0 : index
    %c192 = arith.constant 192 : index
    %87 = vector.load %arg11[%c0_121, %c192] : memref<2x512xf32, #tpu.memory_space<vmem>>, vector<2x8xf32>
    tpu.vector_store %arg11[%c0_121, %c192], %86 {strides = array<i32>} : memref<2x512xf32, #tpu.memory_space<vmem>>, vector<2x8xf32>,
    %c50 = arith.constant 50 : index
    %c0_122 = arith.constant 0 : index
    %88 = vector.load %arg10[%c50, %c0_122] : memref<128x8xf32, #tpu.memory_space<vmem>>, vector<2x8xf32>
    %c0_123 = arith.constant 0 : index
    %c200 = arith.constant 200 : index
    %89 = vector.load %arg11[%c0_123, %c200] : memref<2x512xf32, #tpu.memory_space<vmem>>, vector<2x8xf32>
    tpu.vector_store %arg11[%c0_123, %c200], %88 {strides = array<i32>} : memref<2x512xf32, #tpu.memory_space<vmem>>, vector<2x8xf32>,
    %c52 = arith.constant 52 : index
    %c0_124 = arith.constant 0 : index
    %90 = vector.load %arg10[%c52, %c0_124] : memref<128x8xf32, #tpu.memory_space<vmem>>, vector<2x8xf32>
    %c0_125 = arith.constant 0 : index
    %c208 = arith.constant 208 : index
    %91 = vector.load %arg11[%c0_125, %c208] : memref<2x512xf32, #tpu.memory_space<vmem>>, vector<2x8xf32>
    tpu.vector_store %arg11[%c0_125, %c208], %90 {strides = array<i32>} : memref<2x512xf32, #tpu.memory_space<vmem>>, vector<2x8xf32>,
    %c54 = arith.constant 54 : index
    %c0_126 = arith.constant 0 : index
    %92 = vector.load %arg10[%c54, %c0_126] : memref<128x8xf32, #tpu.memory_space<vmem>>, vector<2x8xf32>
    %c0_127 = arith.constant 0 : index
    %c216 = arith.constant 216 : index
    %93 = vector.load %arg11[%c0_127, %c216] : memref<2x512xf32, #tpu.memory_space<vmem>>, vector<2x8xf32>
    tpu.vector_store %arg11[%c0_127, %c216], %92 {strides = array<i32>} : memref<2x512xf32, #tpu.memory_space<vmem>>, vector<2x8xf32>,
    %c56_128 = arith.constant 56 : index
    %c0_129 = arith.constant 0 : index
    %94 = vector.load %arg10[%c56_128, %c0_129] : memref<128x8xf32, #tpu.memory_space<vmem>>, vector<2x8xf32>
    %c0_130 = arith.constant 0 : index
    %c224 = arith.constant 224 : index
    %95 = vector.load %arg11[%c0_130, %c224] : memref<2x512xf32, #tpu.memory_space<vmem>>, vector<2x8xf32>
    tpu.vector_store %arg11[%c0_130, %c224], %94 {strides = array<i32>} : memref<2x512xf32, #tpu.memory_space<vmem>>, vector<2x8xf32>,
    %c58 = arith.constant 58 : index
    %c0_131 = arith.constant 0 : index
    %96 = vector.load %arg10[%c58, %c0_131] : memref<128x8xf32, #tpu.memory_space<vmem>>, vector<2x8xf32>
    %c0_132 = arith.constant 0 : index
    %c232 = arith.constant 232 : index
    %97 = vector.load %arg11[%c0_132, %c232] : memref<2x512xf32, #tpu.memory_space<vmem>>, vector<2x8xf32>
    tpu.vector_store %arg11[%c0_132, %c232], %96 {strides = array<i32>} : memref<2x512xf32, #tpu.memory_space<vmem>>, vector<2x8xf32>,
    %c60 = arith.constant 60 : index
    %c0_133 = arith.constant 0 : index
    %98 = vector.load %arg10[%c60, %c0_133] : memref<128x8xf32, #tpu.memory_space<vmem>>, vector<2x8xf32>
    %c0_134 = arith.constant 0 : index
    %c240 = arith.constant 240 : index
    %99 = vector.load %arg11[%c0_134, %c240] : memref<2x512xf32, #tpu.memory_space<vmem>>, vector<2x8xf32>
    tpu.vector_store %arg11[%c0_134, %c240], %98 {strides = array<i32>} : memref<2x512xf32, #tpu.memory_space<vmem>>, vector<2x8xf32>,
    %c62 = arith.constant 62 : index
    %c0_135 = arith.constant 0 : index
    %100 = vector.load %arg10[%c62, %c0_135] : memref<128x8xf32, #tpu.memory_space<vmem>>, vector<2x8xf32>
    %c0_136 = arith.constant 0 : index
    %c248 = arith.constant 248 : index
    %101 = vector.load %arg11[%c0_136, %c248] : memref<2x512xf32, #tpu.memory_space<vmem>>, vector<2x8xf32>
    tpu.vector_store %arg11[%c0_136, %c248], %100 {strides = array<i32>} : memref<2x512xf32, #tpu.memory_space<vmem>>, vector<2x8xf32>,
    %c64_137 = arith.constant 64 : index
    %c0_138 = arith.constant 0 : index
    %102 = vector.load %arg10[%c64_137, %c0_138] : memref<128x8xf32, #tpu.memory_space<vmem>>, vector<2x8xf32>
    %c0_139 = arith.constant 0 : index
    %c256 = arith.constant 256 : index
    %103 = vector.load %arg11[%c0_139, %c256] : memref<2x512xf32, #tpu.memory_space<vmem>>, vector<2x8xf32>
    tpu.vector_store %arg11[%c0_139, %c256], %102 {strides = array<i32>} : memref<2x512xf32, #tpu.memory_space<vmem>>, vector<2x8xf32>,
    %c66 = arith.constant 66 : index
    %c0_140 = arith.constant 0 : index
    %104 = vector.load %arg10[%c66, %c0_140] : memref<128x8xf32, #tpu.memory_space<vmem>>, vector<2x8xf32>
    %c0_141 = arith.constant 0 : index
    %c264 = arith.constant 264 : index
    %105 = vector.load %arg11[%c0_141, %c264] : memref<2x512xf32, #tpu.memory_space<vmem>>, vector<2x8xf32>
    tpu.vector_store %arg11[%c0_141, %c264], %104 {strides = array<i32>} : memref<2x512xf32, #tpu.memory_space<vmem>>, vector<2x8xf32>,
    %c68 = arith.constant 68 : index
    %c0_142 = arith.constant 0 : index
    %106 = vector.load %arg10[%c68, %c0_142] : memref<128x8xf32, #tpu.memory_space<vmem>>, vector<2x8xf32>
    %c0_143 = arith.constant 0 : index
    %c272 = arith.constant 272 : index
    %107 = vector.load %arg11[%c0_143, %c272] : memref<2x512xf32, #tpu.memory_space<vmem>>, vector<2x8xf32>
    tpu.vector_store %arg11[%c0_143, %c272], %106 {strides = array<i32>} : memref<2x512xf32, #tpu.memory_space<vmem>>, vector<2x8xf32>,
    %c70 = arith.constant 70 : index
    %c0_144 = arith.constant 0 : index
    %108 = vector.load %arg10[%c70, %c0_144] : memref<128x8xf32, #tpu.memory_space<vmem>>, vector<2x8xf32>
    %c0_145 = arith.constant 0 : index
    %c280 = arith.constant 280 : index
    %109 = vector.load %arg11[%c0_145, %c280] : memref<2x512xf32, #tpu.memory_space<vmem>>, vector<2x8xf32>
    tpu.vector_store %arg11[%c0_145, %c280], %108 {strides = array<i32>} : memref<2x512xf32, #tpu.memory_space<vmem>>, vector<2x8xf32>,
    %c72_146 = arith.constant 72 : index
    %c0_147 = arith.constant 0 : index
    %110 = vector.load %arg10[%c72_146, %c0_147] : memref<128x8xf32, #tpu.memory_space<vmem>>, vector<2x8xf32>
    %c0_148 = arith.constant 0 : index
    %c288 = arith.constant 288 : index
    %111 = vector.load %arg11[%c0_148, %c288] : memref<2x512xf32, #tpu.memory_space<vmem>>, vector<2x8xf32>
    tpu.vector_store %arg11[%c0_148, %c288], %110 {strides = array<i32>} : memref<2x512xf32, #tpu.memory_space<vmem>>, vector<2x8xf32>,
    %c74 = arith.constant 74 : index
    %c0_149 = arith.constant 0 : index
    %112 = vector.load %arg10[%c74, %c0_149] : memref<128x8xf32, #tpu.memory_space<vmem>>, vector<2x8xf32>
    %c0_150 = arith.constant 0 : index
    %c296 = arith.constant 296 : index
    %113 = vector.load %arg11[%c0_150, %c296] : memref<2x512xf32, #tpu.memory_space<vmem>>, vector<2x8xf32>
    tpu.vector_store %arg11[%c0_150, %c296], %112 {strides = array<i32>} : memref<2x512xf32, #tpu.memory_space<vmem>>, vector<2x8xf32>,
    %c76 = arith.constant 76 : index
    %c0_151 = arith.constant 0 : index
    %114 = vector.load %arg10[%c76, %c0_151] : memref<128x8xf32, #tpu.memory_space<vmem>>, vector<2x8xf32>
    %c0_152 = arith.constant 0 : index
    %c304 = arith.constant 304 : index
    %115 = vector.load %arg11[%c0_152, %c304] : memref<2x512xf32, #tpu.memory_space<vmem>>, vector<2x8xf32>
    tpu.vector_store %arg11[%c0_152, %c304], %114 {strides = array<i32>} : memref<2x512xf32, #tpu.memory_space<vmem>>, vector<2x8xf32>,
    %c78 = arith.constant 78 : index
    %c0_153 = arith.constant 0 : index
    %116 = vector.load %arg10[%c78, %c0_153] : memref<128x8xf32, #tpu.memory_space<vmem>>, vector<2x8xf32>
    %c0_154 = arith.constant 0 : index
    %c312 = arith.constant 312 : index
    %117 = vector.load %arg11[%c0_154, %c312] : memref<2x512xf32, #tpu.memory_space<vmem>>, vector<2x8xf32>
    tpu.vector_store %arg11[%c0_154, %c312], %116 {strides = array<i32>} : memref<2x512xf32, #tpu.memory_space<vmem>>, vector<2x8xf32>,
    %c80_155 = arith.constant 80 : index
    %c0_156 = arith.constant 0 : index
    %118 = vector.load %arg10[%c80_155, %c0_156] : memref<128x8xf32, #tpu.memory_space<vmem>>, vector<2x8xf32>
    %c0_157 = arith.constant 0 : index
    %c320 = arith.constant 320 : index
    %119 = vector.load %arg11[%c0_157, %c320] : memref<2x512xf32, #tpu.memory_space<vmem>>, vector<2x8xf32>
    tpu.vector_store %arg11[%c0_157, %c320], %118 {strides = array<i32>} : memref<2x512xf32, #tpu.memory_space<vmem>>, vector<2x8xf32>,
    %c82 = arith.constant 82 : index
    %c0_158 = arith.constant 0 : index
    %120 = vector.load %arg10[%c82, %c0_158] : memref<128x8xf32, #tpu.memory_space<vmem>>, vector<2x8xf32>
    %c0_159 = arith.constant 0 : index
    %c328 = arith.constant 328 : index
    %121 = vector.load %arg11[%c0_159, %c328] : memref<2x512xf32, #tpu.memory_space<vmem>>, vector<2x8xf32>
    tpu.vector_store %arg11[%c0_159, %c328], %120 {strides = array<i32>} : memref<2x512xf32, #tpu.memory_space<vmem>>, vector<2x8xf32>,
    %c84 = arith.constant 84 : index
    %c0_160 = arith.constant 0 : index
    %122 = vector.load %arg10[%c84, %c0_160] : memref<128x8xf32, #tpu.memory_space<vmem>>, vector<2x8xf32>
    %c0_161 = arith.constant 0 : index
    %c336 = arith.constant 336 : index
    %123 = vector.load %arg11[%c0_161, %c336] : memref<2x512xf32, #tpu.memory_space<vmem>>, vector<2x8xf32>
    tpu.vector_store %arg11[%c0_161, %c336], %122 {strides = array<i32>} : memref<2x512xf32, #tpu.memory_space<vmem>>, vector<2x8xf32>,
    %c86 = arith.constant 86 : index
    %c0_162 = arith.constant 0 : index
    %124 = vector.load %arg10[%c86, %c0_162] : memref<128x8xf32, #tpu.memory_space<vmem>>, vector<2x8xf32>
    %c0_163 = arith.constant 0 : index
    %c344 = arith.constant 344 : index
    %125 = vector.load %arg11[%c0_163, %c344] : memref<2x512xf32, #tpu.memory_space<vmem>>, vector<2x8xf32>
    tpu.vector_store %arg11[%c0_163, %c344], %124 {strides = array<i32>} : memref<2x512xf32, #tpu.memory_space<vmem>>, vector<2x8xf32>,
    %c88_164 = arith.constant 88 : index
    %c0_165 = arith.constant 0 : index
    %126 = vector.load %arg10[%c88_164, %c0_165] : memref<128x8xf32, #tpu.memory_space<vmem>>, vector<2x8xf32>
    %c0_166 = arith.constant 0 : index
    %c352 = arith.constant 352 : index
    %127 = vector.load %arg11[%c0_166, %c352] : memref<2x512xf32, #tpu.memory_space<vmem>>, vector<2x8xf32>
    tpu.vector_store %arg11[%c0_166, %c352], %126 {strides = array<i32>} : memref<2x512xf32, #tpu.memory_space<vmem>>, vector<2x8xf32>,
    %c90 = arith.constant 90 : index
    %c0_167 = arith.constant 0 : index
    %128 = vector.load %arg10[%c90, %c0_167] : memref<128x8xf32, #tpu.memory_space<vmem>>, vector<2x8xf32>
    %c0_168 = arith.constant 0 : index
    %c360 = arith.constant 360 : index
    %129 = vector.load %arg11[%c0_168, %c360] : memref<2x512xf32, #tpu.memory_space<vmem>>, vector<2x8xf32>
    tpu.vector_store %arg11[%c0_168, %c360], %128 {strides = array<i32>} : memref<2x512xf32, #tpu.memory_space<vmem>>, vector<2x8xf32>,
    %c92 = arith.constant 92 : index
    %c0_169 = arith.constant 0 : index
    %130 = vector.load %arg10[%c92, %c0_169] : memref<128x8xf32, #tpu.memory_space<vmem>>, vector<2x8xf32>
    %c0_170 = arith.constant 0 : index
    %c368 = arith.constant 368 : index
    %131 = vector.load %arg11[%c0_170, %c368] : memref<2x512xf32, #tpu.memory_space<vmem>>, vector<2x8xf32>
    tpu.vector_store %arg11[%c0_170, %c368], %130 {strides = array<i32>} : memref<2x512xf32, #tpu.memory_space<vmem>>, vector<2x8xf32>,
    %c94 = arith.constant 94 : index
    %c0_171 = arith.constant 0 : index
    %132 = vector.load %arg10[%c94, %c0_171] : memref<128x8xf32, #tpu.memory_space<vmem>>, vector<2x8xf32>
    %c0_172 = arith.constant 0 : index
    %c376 = arith.constant 376 : index
    %133 = vector.load %arg11[%c0_172, %c376] : memref<2x512xf32, #tpu.memory_space<vmem>>, vector<2x8xf32>
    tpu.vector_store %arg11[%c0_172, %c376], %132 {strides = array<i32>} : memref<2x512xf32, #tpu.memory_space<vmem>>, vector<2x8xf32>,
    %c96_173 = arith.constant 96 : index
    %c0_174 = arith.constant 0 : index
    %134 = vector.load %arg10[%c96_173, %c0_174] : memref<128x8xf32, #tpu.memory_space<vmem>>, vector<2x8xf32>
    %c0_175 = arith.constant 0 : index
    %c384 = arith.constant 384 : index
    %135 = vector.load %arg11[%c0_175, %c384] : memref<2x512xf32, #tpu.memory_space<vmem>>, vector<2x8xf32>
    tpu.vector_store %arg11[%c0_175, %c384], %134 {strides = array<i32>} : memref<2x512xf32, #tpu.memory_space<vmem>>, vector<2x8xf32>,
    %c98 = arith.constant 98 : index
    %c0_176 = arith.constant 0 : index
    %136 = vector.load %arg10[%c98, %c0_176] : memref<128x8xf32, #tpu.memory_space<vmem>>, vector<2x8xf32>
    %c0_177 = arith.constant 0 : index
    %c392 = arith.constant 392 : index
    %137 = vector.load %arg11[%c0_177, %c392] : memref<2x512xf32, #tpu.memory_space<vmem>>, vector<2x8xf32>
    tpu.vector_store %arg11[%c0_177, %c392], %136 {strides = array<i32>} : memref<2x512xf32, #tpu.memory_space<vmem>>, vector<2x8xf32>,
    %c100 = arith.constant 100 : index
    %c0_178 = arith.constant 0 : index
    %138 = vector.load %arg10[%c100, %c0_178] : memref<128x8xf32, #tpu.memory_space<vmem>>, vector<2x8xf32>
    %c0_179 = arith.constant 0 : index
    %c400 = arith.constant 400 : index
    %139 = vector.load %arg11[%c0_179, %c400] : memref<2x512xf32, #tpu.memory_space<vmem>>, vector<2x8xf32>
    tpu.vector_store %arg11[%c0_179, %c400], %138 {strides = array<i32>} : memref<2x512xf32, #tpu.memory_space<vmem>>, vector<2x8xf32>,
    %c102 = arith.constant 102 : index
    %c0_180 = arith.constant 0 : index
    %140 = vector.load %arg10[%c102, %c0_180] : memref<128x8xf32, #tpu.memory_space<vmem>>, vector<2x8xf32>
    %c0_181 = arith.constant 0 : index
    %c408 = arith.constant 408 : index
    %141 = vector.load %arg11[%c0_181, %c408] : memref<2x512xf32, #tpu.memory_space<vmem>>, vector<2x8xf32>
    tpu.vector_store %arg11[%c0_181, %c408], %140 {strides = array<i32>} : memref<2x512xf32, #tpu.memory_space<vmem>>, vector<2x8xf32>,
    %c104_182 = arith.constant 104 : index
    %c0_183 = arith.constant 0 : index
    %142 = vector.load %arg10[%c104_182, %c0_183] : memref<128x8xf32, #tpu.memory_space<vmem>>, vector<2x8xf32>
    %c0_184 = arith.constant 0 : index
    %c416 = arith.constant 416 : index
    %143 = vector.load %arg11[%c0_184, %c416] : memref<2x512xf32, #tpu.memory_space<vmem>>, vector<2x8xf32>
    tpu.vector_store %arg11[%c0_184, %c416], %142 {strides = array<i32>} : memref<2x512xf32, #tpu.memory_space<vmem>>, vector<2x8xf32>,
    %c106 = arith.constant 106 : index
    %c0_185 = arith.constant 0 : index
    %144 = vector.load %arg10[%c106, %c0_185] : memref<128x8xf32, #tpu.memory_space<vmem>>, vector<2x8xf32>
    %c0_186 = arith.constant 0 : index
    %c424 = arith.constant 424 : index
    %145 = vector.load %arg11[%c0_186, %c424] : memref<2x512xf32, #tpu.memory_space<vmem>>, vector<2x8xf32>
    tpu.vector_store %arg11[%c0_186, %c424], %144 {strides = array<i32>} : memref<2x512xf32, #tpu.memory_space<vmem>>, vector<2x8xf32>,
    %c108 = arith.constant 108 : index
    %c0_187 = arith.constant 0 : index
    %146 = vector.load %arg10[%c108, %c0_187] : memref<128x8xf32, #tpu.memory_space<vmem>>, vector<2x8xf32>
    %c0_188 = arith.constant 0 : index
    %c432 = arith.constant 432 : index
    %147 = vector.load %arg11[%c0_188, %c432] : memref<2x512xf32, #tpu.memory_space<vmem>>, vector<2x8xf32>
    tpu.vector_store %arg11[%c0_188, %c432], %146 {strides = array<i32>} : memref<2x512xf32, #tpu.memory_space<vmem>>, vector<2x8xf32>,
    %c110 = arith.constant 110 : index
    %c0_189 = arith.constant 0 : index
    %148 = vector.load %arg10[%c110, %c0_189] : memref<128x8xf32, #tpu.memory_space<vmem>>, vector<2x8xf32>
    %c0_190 = arith.constant 0 : index
    %c440 = arith.constant 440 : index
    %149 = vector.load %arg11[%c0_190, %c440] : memref<2x512xf32, #tpu.memory_space<vmem>>, vector<2x8xf32>
    tpu.vector_store %arg11[%c0_190, %c440], %148 {strides = array<i32>} : memref<2x512xf32, #tpu.memory_space<vmem>>, vector<2x8xf32>,
    %c112_191 = arith.constant 112 : index
    %c0_192 = arith.constant 0 : index
    %150 = vector.load %arg10[%c112_191, %c0_192] : memref<128x8xf32, #tpu.memory_space<vmem>>, vector<2x8xf32>
    %c0_193 = arith.constant 0 : index
    %c448 = arith.constant 448 : index
    %151 = vector.load %arg11[%c0_193, %c448] : memref<2x512xf32, #tpu.memory_space<vmem>>, vector<2x8xf32>
    tpu.vector_store %arg11[%c0_193, %c448], %150 {strides = array<i32>} : memref<2x512xf32, #tpu.memory_space<vmem>>, vector<2x8xf32>,
    %c114 = arith.constant 114 : index
    %c0_194 = arith.constant 0 : index
    %152 = vector.load %arg10[%c114, %c0_194] : memref<128x8xf32, #tpu.memory_space<vmem>>, vector<2x8xf32>
    %c0_195 = arith.constant 0 : index
    %c456 = arith.constant 456 : index
    %153 = vector.load %arg11[%c0_195, %c456] : memref<2x512xf32, #tpu.memory_space<vmem>>, vector<2x8xf32>
    tpu.vector_store %arg11[%c0_195, %c456], %152 {strides = array<i32>} : memref<2x512xf32, #tpu.memory_space<vmem>>, vector<2x8xf32>,
    %c116 = arith.constant 116 : index
    %c0_196 = arith.constant 0 : index
    %154 = vector.load %arg10[%c116, %c0_196] : memref<128x8xf32, #tpu.memory_space<vmem>>, vector<2x8xf32>
    %c0_197 = arith.constant 0 : index
    %c464 = arith.constant 464 : index
    %155 = vector.load %arg11[%c0_197, %c464] : memref<2x512xf32, #tpu.memory_space<vmem>>, vector<2x8xf32>
    tpu.vector_store %arg11[%c0_197, %c464], %154 {strides = array<i32>} : memref<2x512xf32, #tpu.memory_space<vmem>>, vector<2x8xf32>,
    %c118 = arith.constant 118 : index
    %c0_198 = arith.constant 0 : index
    %156 = vector.load %arg10[%c118, %c0_198] : memref<128x8xf32, #tpu.memory_space<vmem>>, vector<2x8xf32>
    %c0_199 = arith.constant 0 : index
    %c472 = arith.constant 472 : index
    %157 = vector.load %arg11[%c0_199, %c472] : memref<2x512xf32, #tpu.memory_space<vmem>>, vector<2x8xf32>
    tpu.vector_store %arg11[%c0_199, %c472], %156 {strides = array<i32>} : memref<2x512xf32, #tpu.memory_space<vmem>>, vector<2x8xf32>,
    %c120_200 = arith.constant 120 : index
    %c0_201 = arith.constant 0 : index
    %158 = vector.load %arg10[%c120_200, %c0_201] : memref<128x8xf32, #tpu.memory_space<vmem>>, vector<2x8xf32>
    %c0_202 = arith.constant 0 : index
    %c480 = arith.constant 480 : index
    %159 = vector.load %arg11[%c0_202, %c480] : memref<2x512xf32, #tpu.memory_space<vmem>>, vector<2x8xf32>
    tpu.vector_store %arg11[%c0_202, %c480], %158 {strides = array<i32>} : memref<2x512xf32, #tpu.memory_space<vmem>>, vector<2x8xf32>,
    %c122 = arith.constant 122 : index
    %c0_203 = arith.constant 0 : index
    %160 = vector.load %arg10[%c122, %c0_203] : memref<128x8xf32, #tpu.memory_space<vmem>>, vector<2x8xf32>
    %c0_204 = arith.constant 0 : index
    %c488 = arith.constant 488 : index
    %161 = vector.load %arg11[%c0_204, %c488] : memref<2x512xf32, #tpu.memory_space<vmem>>, vector<2x8xf32>
    tpu.vector_store %arg11[%c0_204, %c488], %160 {strides = array<i32>} : memref<2x512xf32, #tpu.memory_space<vmem>>, vector<2x8xf32>,
    %c124 = arith.constant 124 : index
    %c0_205 = arith.constant 0 : index
    %162 = vector.load %arg10[%c124, %c0_205] : memref<128x8xf32, #tpu.memory_space<vmem>>, vector<2x8xf32>
    %c0_206 = arith.constant 0 : index
    %c496 = arith.constant 496 : index
    %163 = vector.load %arg11[%c0_206, %c496] : memref<2x512xf32, #tpu.memory_space<vmem>>, vector<2x8xf32>
    tpu.vector_store %arg11[%c0_206, %c496], %162 {strides = array<i32>} : memref<2x512xf32, #tpu.memory_space<vmem>>, vector<2x8xf32>,
    %c126 = arith.constant 126 : index
    %c0_207 = arith.constant 0 : index
    %164 = vector.load %arg10[%c126, %c0_207] : memref<128x8xf32, #tpu.memory_space<vmem>>, vector<2x8xf32>
    %c0_208 = arith.constant 0 : index
    %c504 = arith.constant 504 : index
    %165 = vector.load %arg11[%c0_208, %c504] : memref<2x512xf32, #tpu.memory_space<vmem>>, vector<2x8xf32>
    tpu.vector_store %arg11[%c0_208, %c504], %164 {strides = array<i32>} : memref<2x512xf32, #tpu.memory_space<vmem>>, vector<2x8xf32>,
    %c0_209 = arith.constant 0 : index
    %c0_210 = arith.constant 0 : index
    %166 = vector.load %arg11[%c0_209, %c0_210] : memref<2x512xf32, #tpu.memory_space<vmem>>, vector<2x512xf32>
    %c0_211 = arith.constant 0 : index
    %c0_212 = arith.constant 0 : index
    %167 = vector.load %arg4[%c0_211, %c0_212] : memref<512x32xf32, #tpu.memory_space<vmem>>, vector<512x32xf32>
    %cst_213 = arith.constant dense<0.000000e+00> : vector<2x32xf32>
    %168 = tpu.matmul %166, %167, %cst_213 {dimension_numbers = #tpu.dot_dimension_numbers<[1], [0], [0], [1], [0, 0, 1, 1], [], []>} : vector<2x512xf32>, vector<512x32xf32>, vector<2x32xf32> -> vector<2x32xf32>
    %c0_214 = arith.constant 0 : index
    %c0_215 = arith.constant 0 : index
    %169 = vector.load %arg5[%c0_214, %c0_215] : memref<1x32xf32, #tpu.memory_space<vmem>>, vector<1x32xf32>
    %170 = vector.broadcast %169 : vector<1x32xf32> to vector<2x32xf32>
    %171 = arith.addf %168, %170 : vector<2x32xf32>
    %cst_216 = arith.constant 0.000000e+00 : f32
    %172 = vector.broadcast %cst_216 : f32 to vector<2x32xf32>
    %173 = arith.maximumf %171, %172 : vector<2x32xf32>
    %c0_217 = arith.constant 0 : index
    %c0_218 = arith.constant 0 : index
    %174 = vector.load %arg6[%c0_217, %c0_218] : memref<32x10xf32, #tpu.memory_space<vmem>>, vector<32x10xf32>
    %cst_219 = arith.constant dense<0.000000e+00> : vector<2x10xf32>
    %175 = tpu.matmul %173, %174, %cst_219 {dimension_numbers = #tpu.dot_dimension_numbers<[1], [0], [0], [1], [0, 0, 1, 1], [], []>} : vector<2x32xf32>, vector<32x10xf32>, vector<2x10xf32> -> vector<2x10xf32>
    %c0_220 = arith.constant 0 : index
    %c0_221 = arith.constant 0 : index
    %176 = vector.load %arg7[%c0_220, %c0_221] : memref<1x10xf32, #tpu.memory_space<vmem>>, vector<1x10xf32>
    %177 = vector.broadcast %176 : vector<1x10xf32> to vector<2x10xf32>
    %178 = arith.addf %175, %177 : vector<2x10xf32>
    %c0_222 = arith.constant 0 : index
    %c0_223 = arith.constant 0 : index
    %179 = vector.load %arg8[%c0_222, %c0_223] : memref<2x10xf32, #tpu.memory_space<vmem>>, vector<2x10xf32>
    tpu.vector_store %arg8[%c0_222, %c0_223], %178 {strides = array<i32>} : memref<2x10xf32, #tpu.memory_space<vmem>>, vector<2x10xf32>,
    return
  }
}

</mosaic_0001>

<llo_original>
// kernel: conv_model_forward.1
$region0: #{conv_model_forward.1}
  #allocation0 [shape = 'u32[]', space=smem, size = 0x4, offset = 0x4, fixed_abs, tag = 'smem constant byte address 0x4 - core index']
  #allocation1 [shape = 'u32[144,128]{1,0:T(1,128)}', space=vmem, size = 0x12000, scoped, tag = 'internal scratch']
  #allocation2 [shape = 'f32[512,36]{1,0:T(8,128)}', space=vmem, size = 0x40000, scoped, tag = 'scratch operand']
  #allocation3 [shape = 'f32[128,8]{1,0:T(8,128)}', space=vmem, size = 0x10000, scoped, tag = 'scratch operand']
  #allocation4 [shape = 'f32[2,512]{1,0:T(2,128)}', space=vmem, size = 0x1000, scoped, tag = 'scratch operand']
  %s0 = inlined_call_operand.vmem [shape: f32[2,18,18,4], index: 0, kind: input, shape index: {}]
  %s1 = inlined_call_operand.vmem [shape: f32[36,8], index: 1, kind: input, shape index: {}]
  %s2 = inlined_call_operand.vmem [shape: f32[1,8], index: 2, kind: input, shape index: {}]
  %s3 = inlined_call_operand.vmem [shape: f32[128,512], index: 3, kind: input, shape index: {}]
  %s4 = inlined_call_operand.vmem [shape: f32[512,32], index: 4, kind: input, shape index: {}]
  %s5 = inlined_call_operand.vmem [shape: f32[1,32], index: 5, kind: input, shape index: {}]
  %s6 = inlined_call_operand.vmem [shape: f32[32,10], index: 6, kind: input, shape index: {}]
  %s7 = inlined_call_operand.vmem [shape: f32[1,10], index: 7, kind: input, shape index: {}]
  %s8 = inlined_call_operand.hbm [shape: f32[2,10], index: 8, kind: output, shape index: {}]
  %s9 = sld [smem:[#allocation0]]
  $region42: #{conv_model_forward.1} parent=0
    _
  %s11 = ssub.s32 1, %s9
  %s12 = scalar_select 0, %s11, %s9
  $region1: #{conv_model_forward.1} parent=0
    #allocation5 [shape = 'u8[1024]{0}', space=vmem, size = 0x400, scoped, tag = 'output window, operand 0, single buffered']
    #allocation6 [shape = 's32[1]{0}', space=sflag, size = 0x4, scoped, tag = 'scoped memory for conv_model_forward.1']
    %13 = vsyncpa [#allocation6], 0
    // Predicated region
    $region2: #{conv_model_forward.1} parent=1 // pred_check
      _
    $region3: #{conv_model_forward.1} parent=1 // pred_check_branch
      %15 = sbr.rel (0) target = $region5
    $region4: #{conv_model_forward.1} parent=1 // pred_region
      _
    $region5: #{conv_model_forward.1} parent=1 // pred_fallthru
      _
    // Predicated region
    $region6: #{conv_model_forward.1} parent=1 // pred_check
      _
    $region7: #{conv_model_forward.1} parent=1 // pred_check_branch
      %17 = sbr.rel (0) target = $region9
    $region8: #{conv_model_forward.1} parent=1 // pred_region
      _
    $region9: #{conv_model_forward.1} parent=1 // pred_fallthru
      _
    // Predicated region
    $region10: #{conv_model_forward.1} parent=1 // pred_check
      _
    $region11: #{conv_model_forward.1} parent=1 // pred_check_branch
      %19 = sbr.rel (0) target = $region13
    $region12: #{conv_model_forward.1} parent=1 // pred_region
      _
    $region13: #{conv_model_forward.1} parent=1 // pred_fallthru
      _
    // Predicated region
    $region14: #{conv_model_forward.1} parent=1 // pred_check
      _
    $region15: #{conv_model_forward.1} parent=1 // pred_check_branch
      %21 = sbr.rel (0) target = $region17
    $region16: #{conv_model_forward.1} parent=1 // pred_region
      _
    $region17: #{conv_model_forward.1} parent=1 // pred_fallthru
      _
    // Predicated region
    $region18: #{conv_model_forward.1} parent=1 // pred_check
      _
    $region19: #{conv_model_forward.1} parent=1 // pred_check_branch
      %23 = sbr.rel (0) target = $region21
    $region20: #{conv_model_forward.1} parent=1 // pred_region
      _
    $region21: #{conv_model_forward.1} parent=1 // pred_fallthru
      _
    // Predicated region
    $region22: #{conv_model_forward.1} parent=1 // pred_check
      _
    $region23: #{conv_model_forward.1} parent=1 // pred_check_branch
      %25 = sbr.rel (0) target = $region25
    $region24: #{conv_model_forward.1} parent=1 // pred_region
      _
    $region25: #{conv_model_forward.1} parent=1 // pred_fallthru
      _
    // Predicated region
    $region26: #{conv_model_forward.1} parent=1 // pred_check
      _
    $region27: #{conv_model_forward.1} parent=1 // pred_check_branch
      %27 = sbr.rel (0) target = $region29
    $region28: #{conv_model_forward.1} parent=1 // pred_region
      _
    $region29: #{conv_model_forward.1} parent=1 // pred_fallthru
      _
    // Predicated region
    $region30: #{conv_model_forward.1} parent=1 // pred_check
      _
    $region31: #{conv_model_forward.1} parent=1 // pred_check_branch
      %29 = sbr.rel (0) target = $region33
    $region32: #{conv_model_forward.1} parent=1 // pred_region
      _
    $region33: #{conv_model_forward.1} parent=1 // pred_fallthru
      _
    %v30 = vld [vmem:[%s0] sm:$0xff]
    %v31 = vld [vmem:[%s0 + $0x8] sm:$0xff]
    %v32 = vld [vmem:[%s0 + $0x18] sm:$0xff]
    %v33 = vld [vmem:[%s0 + $0x20] sm:$0xff]
    %v34 = vld [vmem:[%s0 + $0x30] sm:$0xff]
    %v35 = vld [vmem:[%s0 + $0x38] sm:$0xff]
    %v36 = vld [vmem:[%s0 + $0x48] sm:$0xff]
    %v37 = vld [vmem:[%s0 + $0x50] sm:$0xff]
    %v38 = vld [vmem:[%s0 + $0x60] sm:$0xff]
    %v39 = vld [vmem:[%s0 + $0x68] sm:$0xff]
    %v40 = vld [vmem:[%s0 + $0x78] sm:$0xff]
    %v41 = vld [vmem:[%s0 + $0x80] sm:$0xff]
    %v42 = vld [vmem:[%s0 + $0x90] sm:$0xff]
    %v43 = vld [vmem:[%s0 + $0x98] sm:$0xff]
    %v44 = vld [vmem:[%s0 + $0xa8] sm:$0xff]
    %v45 = vld [vmem:[%s0 + $0xb0] sm:$0xff]
    %v46 = vld [vmem:[%s0 + $0xc0] sm:$0xff]
    %v47 = vld [vmem:[%s0 + $0xc8] sm:$0xff]
    %v48 = vld [vmem:[%s0 + $0xd8] sm:$0xff]
    %v49 = vld [vmem:[%s0 + $0xe0] sm:$0xff]
    %v50 = vld [vmem:[%s0 + $0xf0] sm:$0xff]
    %v51 = vld [vmem:[%s0 + $0xf8] sm:$0xff]
    %v52 = vld [vmem:[%s0 + $0x108] sm:$0xff]
    %v53 = vld [vmem:[%s0 + $0x110] sm:$0xff]
    %v54 = vld [vmem:[%s0 + $0x120] sm:$0xff]
    %v55 = vld [vmem:[%s0 + $0x128] sm:$0xff]
    %v56 = vld [vmem:[%s0 + $0x138] sm:$0xff]
    %v57 = vld [vmem:[%s0 + $0x140] sm:$0xff]
    %v58 = vld [vmem:[%s0 + $0x150] sm:$0xff]
    %v59 = vld [vmem:[%s0 + $0x158] sm:$0xff]
    %v60 = vld [vmem:[%s0 + $0x168] sm:$0xff]
    %v61 = vld [vmem:[%s0 + $0x170] sm:$0xff]
    %v62 = vld [vmem:[%s0 + $0x1b0] sm:$0xff]
    %v63 = vld [vmem:[%s0 + $0x1b8] sm:$0xff]
    %v64 = vld [vmem:[%s0 + $0x1c8] sm:$0xff]
    %v65 = vld [vmem:[%s0 + $0x1d0] sm:$0xff]
    %v66 = vld [vmem:[%s0 + $0x1e0] sm:$0xff]
    %v67 = vld [vmem:[%s0 + $0x1e8] sm:$0xff]
    %v68 = vld [vmem:[%s0 + $0x1f8] sm:$0xff]
    %v69 = vld [vmem:[%s0 + $0x200] sm:$0xff]
    %v70 = vld [vmem:[%s0 + $0x210] sm:$0xff]
    %v71 = vld [vmem:[%s0 + $0x218] sm:$0xff]
    %v72 = vld [vmem:[%s0 + $0x228] sm:$0xff]
    %v73 = vld [vmem:[%s0 + $0x230] sm:$0xff]
    %v74 = vld [vmem:[%s0 + $0x240] sm:$0xff]
    %v75 = vld [vmem:[%s0 + $0x248] sm:$0xff]
    %v76 = vld [vmem:[%s0 + $0x258] sm:$0xff]
    %v77 = vld [vmem:[%s0 + $0x260] sm:$0xff]
    %v78 = vld [vmem:[%s0 + $0x270] sm:$0xff]
    %v79 = vld [vmem:[%s0 + $0x278] sm:$0xff]
    %v80 = vld [vmem:[%s0 + $0x288] sm:$0xff]
    %v81 = vld [vmem:[%s0 + $0x290] sm:$0xff]
    %v82 = vld [vmem:[%s0 + $0x2a0] sm:$0xff]
    %v83 = vld [vmem:[%s0 + $0x2a8] sm:$0xff]
    %v84 = vld [vmem:[%s0 + $0x2b8] sm:$0xff]
    %v85 = vld [vmem:[%s0 + $0x2c0] sm:$0xff]
    %v86 = vld [vmem:[%s0 + $0x2d0] sm:$0xff]
    %v87 = vld [vmem:[%s0 + $0x2d8] sm:$0xff]
    %v88 = vld [vmem:[%s0 + $0x2e8] sm:$0xff]
    %v89 = vld [vmem:[%s0 + $0x2f0] sm:$0xff]
    %v90 = vld [vmem:[%s0 + $0x300] sm:$0xff]
    %v91 = vld [vmem:[%s0 + $0x308] sm:$0xff]
    %v92 = vld [vmem:[%s0 + $0x318] sm:$0xff]
    %v93 = vld [vmem:[%s0 + $0x320] sm:$0xff]
    %vm94 = vcmask 31744
    %95 = vst.msk [vmem:[#allocation2] sm:$0xff] %vm94, %v30
    %96 = vst.msk [vmem:[#allocation2 + $0x8] sm:$0xff] %vm94, %v31
    %97 = vst.msk [vmem:[#allocation2 + $0x10] sm:$0xff] %vm94, %v32
    %98 = vst.msk [vmem:[#allocation2 + $0x18] sm:$0xff] %vm94, %v33
    %99 = vst.msk [vmem:[#allocation2 + $0x20] sm:$0xff] %vm94, %v34
    %100 = vst.msk [vmem:[#allocation2 + $0x28] sm:$0xff] %vm94, %v35
    %101 = vst.msk [vmem:[#allocation2 + $0x30] sm:$0xff] %vm94, %v36
    %102 = vst.msk [vmem:[#allocation2 + $0x38] sm:$0xff] %vm94, %v37
    %103 = vst.msk [vmem:[#allocation2 + $0x40] sm:$0xff] %vm94, %v38
    %104 = vst.msk [vmem:[#allocation2 + $0x48] sm:$0xff] %vm94, %v39
    %105 = vst.msk [vmem:[#allocation2 + $0x50] sm:$0xff] %vm94, %v40
    %106 = vst.msk [vmem:[#allocation2 + $0x58] sm:$0xff] %vm94, %v41
    %107 = vst.msk [vmem:[#allocation2 + $0x60] sm:$0xff] %vm94, %v42
    %108 = vst.msk [vmem:[#allocation2 + $0x68] sm:$0xff] %vm94, %v43
    %109 = vst.msk [vmem:[#allocation2 + $0x70] sm:$0xff] %vm94, %v44
    %110 = vst.msk [vmem:[#allocation2 + $0x78] sm:$0xff] %vm94, %v45
    %111 = vst.msk [vmem:[#allocation2 + $0x80] sm:$0xff] %vm94, %v46
    %112 = vst.msk [vmem:[#allocation2 + $0x88] sm:$0xff] %vm94, %v47
    %113 = vst.msk [vmem:[#allocation2 + $0x90] sm:$0xff] %vm94, %v48
    %114 = vst.msk [vmem:[#allocation2 + $0x98] sm:$0xff] %vm94, %v49
    %115 = vst.msk [vmem:[#allocation2 + $0xa0] sm:$0xff] %vm94, %v50
    %116 = vst.msk [vmem:[#allocation2 + $0xa8] sm:$0xff] %vm94, %v51
    %117 = vst.msk [vmem:[#allocation2 + $0xb0] sm:$0xff] %vm94, %v52
    %118 = vst.msk [vmem:[#allocation2 + $0xb8] sm:$0xff] %vm94, %v53
    %119 = vst.msk [vmem:[#allocation2 + $0xc0] sm:$0xff] %vm94, %v54
    %120 = vst.msk [vmem:[#allocation2 + $0xc8] sm:$0xff] %vm94, %v55
    %121 = vst.msk [vmem:[#allocation2 + $0xd0] sm:$0xff] %vm94, %v56
    %122 = vst.msk [vmem:[#allocation2 + $0xd8] sm:$0xff] %vm94, %v57
    %123 = vst.msk [vmem:[#allocation2 + $0xe0] sm:$0xff] %vm94, %v58
    %124 = vst.msk [vmem:[#allocation2 + $0xe8] sm:$0xff] %vm94, %v59
    %125 = vst.msk [vmem:[#allocation2 + $0xf0] sm:$0xff] %vm94, %v60
    %126 = vst.msk [vmem:[#allocation2 + $0xf8] sm:$0xff] %vm94, %v61
    %127 = vst.msk [vmem:[#allocation2 + $0x100] sm:$0xff] %vm94, %v62
    %128 = vst.msk [vmem:[#allocation2 + $0x108] sm:$0xff] %vm94, %v63
    %129 = vst.msk [vmem:[#allocation2 + $0x110] sm:$0xff] %vm94, %v64
    %130 = vst.msk [vmem:[#allocation2 + $0x118] sm:$0xff] %vm94, %v65
    %131 = vst.msk [vmem:[#allocation2 + $0x120] sm:$0xff] %vm94, %v66
    %132 = vst.msk [vmem:[#allocation2 + $0x128] sm:$0xff] %vm94, %v67
    %133 = vst.msk [vmem:[#allocation2 + $0x130] sm:$0xff] %vm94, %v68
    %134 = vst.msk [vmem:[#allocation2 + $0x138] sm:$0xff] %vm94, %v69
    %135 = vst.msk [vmem:[#allocation2 + $0x140] sm:$0xff] %vm94, %v70
    %136 = vst.msk [vmem:[#allocation2 + $0x148] sm:$0xff] %vm94, %v71
    %137 = vst.msk [vmem:[#allocation2 + $0x150] sm:$0xff] %vm94, %v72
    %138 = vst.msk [vmem:[#allocation2 + $0x158] sm:$0xff] %vm94, %v73
    %139 = vst.msk [vmem:[#allocation2 + $0x160] sm:$0xff] %vm94, %v74
    %140 = vst.msk [vmem:[#allocation2 + $0x168] sm:$0xff] %vm94, %v75
    %141 = vst.msk [vmem:[#allocation2 + $0x170] sm:$0xff] %vm94, %v76
    %142 = vst.msk [vmem:[#allocation2 + $0x178] sm:$0xff] %vm94, %v77
    %143 = vst.msk [vmem:[#allocation2 + $0x180] sm:$0xff] %vm94, %v78
    %144 = vst.msk [vmem:[#allocation2 + $0x188] sm:$0xff] %vm94, %v79
    %145 = vst.msk [vmem:[#allocation2 + $0x190] sm:$0xff] %vm94, %v80
    %146 = vst.msk [vmem:[#allocation2 + $0x198] sm:$0xff] %vm94, %v81
    %147 = vst.msk [vmem:[#allocation2 + $0x1a0] sm:$0xff] %vm94, %v82
    %148 = vst.msk [vmem:[#allocation2 + $0x1a8] sm:$0xff] %vm94, %v83
    %149 = vst.msk [vmem:[#allocation2 + $0x1b0] sm:$0xff] %vm94, %v84
    %150 = vst.msk [vmem:[#allocation2 + $0x1b8] sm:$0xff] %vm94, %v85
    %151 = vst.msk [vmem:[#allocation2 + $0x1c0] sm:$0xff] %vm94, %v86
    %152 = vst.msk [vmem:[#allocation2 + $0x1c8] sm:$0xff] %vm94, %v87
    %153 = vst.msk [vmem:[#allocation2 + $0x1d0] sm:$0xff] %vm94, %v88
    %154 = vst.msk [vmem:[#allocation2 + $0x1d8] sm:$0xff] %vm94, %v89
    %155 = vst.msk [vmem:[#allocation2 + $0x1e0] sm:$0xff] %vm94, %v90
    %156 = vst.msk [vmem:[#allocation2 + $0x1e8] sm:$0xff] %vm94, %v91
    %157 = vst.msk [vmem:[#allocation2 + $0x1f0] sm:$0xff] %vm94, %v92
    %158 = vst.msk [vmem:[#allocation2 + $0x1f8] sm:$0xff] %vm94, %v93
    %v159 = vld [vmem:[%s0 + $0x1] sm:$0xff]
    %v160 = vld [vmem:[%s0 + $0x9] sm:$0xff]
    %v161 = vld [vmem:[%s0 + $0x19] sm:$0xff]
    %v162 = vld [vmem:[%s0 + $0x21] sm:$0xff]
    %v163 = vld [vmem:[%s0 + $0x31] sm:$0xff]
    %v164 = vld [vmem:[%s0 + $0x39] sm:$0xff]
    %v165 = vld [vmem:[%s0 + $0x49] sm:$0xff]
    %v166 = vld [vmem:[%s0 + $0x51] sm:$0xff]
    %v167 = vld [vmem:[%s0 + $0x61] sm:$0xff]
    %v168 = vld [vmem:[%s0 + $0x69] sm:$0xff]
    %v169 = vld [vmem:[%s0 + $0x79] sm:$0xff]
    %v170 = vld [vmem:[%s0 + $0x81] sm:$0xff]
    %v171 = vld [vmem:[%s0 + $0x91] sm:$0xff]
    %v172 = vld [vmem:[%s0 + $0x99] sm:$0xff]
    %v173 = vld [vmem:[%s0 + $0xa9] sm:$0xff]
    %v174 = vld [vmem:[%s0 + $0xb1] sm:$0xff]
    %v175 = vld [vmem:[%s0 + $0xc1] sm:$0xff]
    %v176 = vld [vmem:[%s0 + $0xc9] sm:$0xff]
    %v177 = vld [vmem:[%s0 + $0xd9] sm:$0xff]
    %v178 = vld [vmem:[%s0 + $0xe1] sm:$0xff]
    %v179 = vld [vmem:[%s0 + $0xf1] sm:$0xff]
    %v180 = vld [vmem:[%s0 + $0xf9] sm:$0xff]
    %v181 = vld [vmem:[%s0 + $0x109] sm:$0xff]
    %v182 = vld [vmem:[%s0 + $0x111] sm:$0xff]
    %v183 = vld [vmem:[%s0 + $0x121] sm:$0xff]
    %v184 = vld [vmem:[%s0 + $0x129] sm:$0xff]
    %v185 = vld [vmem:[%s0 + $0x139] sm:$0xff]
    %v186 = vld [vmem:[%s0 + $0x141] sm:$0xff]
    %v187 = vld [vmem:[%s0 + $0x151] sm:$0xff]
    %v188 = vld [vmem:[%s0 + $0x159] sm:$0xff]
    %v189 = vld [vmem:[%s0 + $0x169] sm:$0xff]
    %v190 = vld [vmem:[%s0 + $0x171] sm:$0xff]
    %v191 = vld [vmem:[%s0 + $0x1b1] sm:$0xff]
    %v192 = vld [vmem:[%s0 + $0x1b9] sm:$0xff]
    %v193 = vld [vmem:[%s0 + $0x1c9] sm:$0xff]
    %v194 = vld [vmem:[%s0 + $0x1d1] sm:$0xff]
    %v195 = vld [vmem:[%s0 + $0x1e1] sm:$0xff]
    %v196 = vld [vmem:[%s0 + $0x1e9] sm:$0xff]
    %v197 = vld [vmem:[%s0 + $0x1f9] sm:$0xff]
    %v198 = vld [vmem:[%s0 + $0x201] sm:$0xff]
    %v199 = vld [vmem:[%s0 + $0x211] sm:$0xff]
    %v200 = vld [vmem:[%s0 + $0x219] sm:$0xff]
    %v201 = vld [vmem:[%s0 + $0x229] sm:$0xff]
    %v202 = vld [vmem:[%s0 + $0x231] sm:$0xff]
    %v203 = vld [vmem:[%s0 + $0x241] sm:$0xff]
    %v204 = vld [vmem:[%s0 + $0x249] sm:$0xff]
    %v205 = vld [vmem:[%s0 + $0x259] sm:$0xff]
    %v206 = vld [vmem:[%s0 + $0x261] sm:$0xff]
    %v207 = vld [vmem:[%s0 + $0x271] sm:$0xff]
    %v208 = vld [vmem:[%s0 + $0x279] sm:$0xff]
    %v209 = vld [vmem:[%s0 + $0x289] sm:$0xff]
    %v210 = vld [vmem:[%s0 + $0x291] sm:$0xff]
    %v211 = vld [vmem:[%s0 + $0x2a1] sm:$0xff]
    %v212 = vld [vmem:[%s0 + $0x2a9] sm:$0xff]
    %v213 = vld [vmem:[%s0 + $0x2b9] sm:$0xff]
    %v214 = vld [vmem:[%s0 + $0x2c1] sm:$0xff]
    %v215 = vld [vmem:[%s0 + $0x2d1] sm:$0xff]
    %v216 = vld [vmem:[%s0 + $0x2d9] sm:$0xff]
    %v217 = vld [vmem:[%s0 + $0x2e9] sm:$0xff]
    %v218 = vld [vmem:[%s0 + $0x2f1] sm:$0xff]
    %v219 = vld [vmem:[%s0 + $0x301] sm:$0xff]
    %v220 = vld [vmem:[%s0 + $0x309] sm:$0xff]
    %v221 = vld [vmem:[%s0 + $0x319] sm:$0xff]
    %v222 = vld [vmem:[%s0 + $0x321] sm:$0xff]
    %287 = vrot.lane.b32.xlu0 %v159, 4
    %v288 = vpop.permute.xlu0 %287
    %289 = vrot.lane.b32.xlu0 %v160, 4
    %v290 = vpop.permute.xlu0 %289
    %291 = vrot.lane.b32.xlu0 %v161, 4
    %v292 = vpop.permute.xlu0 %291
    %293 = vrot.lane.b32.xlu0 %v162, 4
    %v294 = vpop.permute.xlu0 %293
    %295 = vrot.lane.b32.xlu0 %v163, 4
    %v296 = vpop.permute.xlu0 %295
    %297 = vrot.lane.b32.xlu0 %v164, 4
    %v298 = vpop.permute.xlu0 %297
    %299 = vrot.lane.b32.xlu0 %v165, 4
    %v300 = vpop.permute.xlu0 %299
    %301 = vrot.lane.b32.xlu0 %v166, 4
    %v302 = vpop.permute.xlu0 %301
    %303 = vrot.lane.b32.xlu0 %v167, 4
    %v304 = vpop.permute.xlu0 %303
    %305 = vrot.lane.b32.xlu0 %v168, 4
    %v306 = vpop.permute.xlu0 %305
    %307 = vrot.lane.b32.xlu0 %v169, 4
    %v308 = vpop.permute.xlu0 %307
    %309 = vrot.lane.b32.xlu0 %v170, 4
    %v310 = vpop.permute.xlu0 %309
    %311 = vrot.lane.b32.xlu0 %v171, 4
    %v312 = vpop.permute.xlu0 %311
    %313 = vrot.lane.b32.xlu0 %v172, 4
    %v314 = vpop.permute.xlu0 %313
    %315 = vrot.lane.b32.xlu0 %v173, 4
    %v316 = vpop.permute.xlu0 %315
    %317 = vrot.lane.b32.xlu0 %v174, 4
    %v318 = vpop.permute.xlu0 %317
    %319 = vrot.lane.b32.xlu0 %v175, 4
    %v320 = vpop.permute.xlu0 %319
    %321 = vrot.lane.b32.xlu0 %v176, 4
    %v322 = vpop.permute.xlu0 %321
    %323 = vrot.lane.b32.xlu0 %v177, 4
    %v324 = vpop.permute.xlu0 %323
    %325 = vrot.lane.b32.xlu0 %v178, 4
    %v326 = vpop.permute.xlu0 %325
    %327 = vrot.lane.b32.xlu0 %v179, 4
    %v328 = vpop.permute.xlu0 %327
    %329 = vrot.lane.b32.xlu0 %v180, 4
    %v330 = vpop.permute.xlu0 %329
    %331 = vrot.lane.b32.xlu0 %v181, 4
    %v332 = vpop.permute.xlu0 %331
    %333 = vrot.lane.b32.xlu0 %v182, 4
    %v334 = vpop.permute.xlu0 %333
    %335 = vrot.lane.b32.xlu0 %v183, 4
    %v336 = vpop.permute.xlu0 %335
    %337 = vrot.lane.b32.xlu0 %v184, 4
    %v338 = vpop.permute.xlu0 %337
    %339 = vrot.lane.b32.xlu0 %v185, 4
    %v340 = vpop.permute.xlu0 %339
    %341 = vrot.lane.b32.xlu0 %v186, 4
    %v342 = vpop.permute.xlu0 %341
    %343 = vrot.lane.b32.xlu0 %v187, 4
    %v344 = vpop.permute.xlu0 %343
    %345 = vrot.lane.b32.xlu0 %v188, 4
    %v346 = vpop.permute.xlu0 %345
    %347 = vrot.lane.b32.xlu0 %v189, 4
    %v348 = vpop.permute.xlu0 %347
    %349 = vrot.lane.b32.xlu0 %v190, 4
    %v350 = vpop.permute.xlu0 %349
    %351 = vrot.lane.b32.xlu0 %v191, 4
    %v352 = vpop.permute.xlu0 %351
    %353 = vrot.lane.b32.xlu0 %v192, 4
    %v354 = vpop.permute.xlu0 %353
    %355 = vrot.lane.b32.xlu0 %v193, 4
    %v356 = vpop.permute.xlu0 %355
    %357 = vrot.lane.b32.xlu0 %v194, 4
    %v358 = vpop.permute.xlu0 %357
    %359 = vrot.lane.b32.xlu0 %v195, 4
    %v360 = vpop.permute.xlu0 %359
    %361 = vrot.lane.b32.xlu0 %v196, 4
    %v362 = vpop.permute.xlu0 %361
    %363 = vrot.lane.b32.xlu0 %v197, 4
    %v364 = vpop.permute.xlu0 %363
    %365 = vrot.lane.b32.xlu0 %v198, 4
    %v366 = vpop.permute.xlu0 %365
    %367 = vrot.lane.b32.xlu0 %v199, 4
    %v368 = vpop.permute.xlu0 %367
    %369 = vrot.lane.b32.xlu0 %v200, 4
    %v370 = vpop.permute.xlu0 %369
    %371 = vrot.lane.b32.xlu0 %v201, 4
    %v372 = vpop.permute.xlu0 %371
    %373 = vrot.lane.b32.xlu0 %v202, 4
    %v374 = vpop.permute.xlu0 %373
    %375 = vrot.lane.b32.xlu0 %v203, 4
    %v376 = vpop.permute.xlu0 %375
    %377 = vrot.lane.b32.xlu0 %v204, 4
    %v378 = vpop.permute.xlu0 %377
    %379 = vrot.lane.b32.xlu0 %v205, 4
    %v380 = vpop.permute.xlu0 %379
    %381 = vrot.lane.b32.xlu0 %v206, 4
    %v382 = vpop.permute.xlu0 %381
    %383 = vrot.lane.b32.xlu0 %v207, 4
    %v384 = vpop.permute.xlu0 %383
    %385 = vrot.lane.b32.xlu0 %v208, 4
    %v386 = vpop.permute.xlu0 %385
    %387 = vrot.lane.b32.xlu0 %v209, 4
    %v388 = vpop.permute.xlu0 %387
    %389 = vrot.lane.b32.xlu0 %v210, 4
    %v390 = vpop.permute.xlu0 %389
    %391 = vrot.lane.b32.xlu0 %v211, 4
    %v392 = vpop.permute.xlu0 %391
    %393 = vrot.lane.b32.xlu0 %v212, 4
    %v394 = vpop.permute.xlu0 %393
    %395 = vrot.lane.b32.xlu0 %v213, 4
    %v396 = vpop.permute.xlu0 %395
    %397 = vrot.lane.b32.xlu0 %v214, 4
    %v398 = vpop.permute.xlu0 %397
    %399 = vrot.lane.b32.xlu0 %v215, 4
    %v400 = vpop.permute.xlu0 %399
    %401 = vrot.lane.b32.xlu0 %v216, 4
    %v402 = vpop.permute.xlu0 %401
    %403 = vrot.lane.b32.xlu0 %v217, 4
    %v404 = vpop.permute.xlu0 %403
    %405 = vrot.lane.b32.xlu0 %v218, 4
    %v406 = vpop.permute.xlu0 %405
    %407 = vrot.lane.b32.xlu0 %v219, 4
    %v408 = vpop.permute.xlu0 %407
    %409 = vrot.lane.b32.xlu0 %v220, 4
    %v410 = vpop.permute.xlu0 %409
    %411 = vrot.lane.b32.xlu0 %v221, 4
    %v412 = vpop.permute.xlu0 %411
    %413 = vrot.lane.b32.xlu0 %v222, 4
    %v414 = vpop.permute.xlu0 %413
    %vm479 = vcmask 64544
    %480 = vst.msk [vmem:[#allocation2] sm:$0xff] %vm479, %v288
    %481 = vst.msk [vmem:[#allocation2 + $0x8] sm:$0xff] %vm479, %v290
    %482 = vst.msk [vmem:[#allocation2 + $0x10] sm:$0xff] %vm479, %v292
    %483 = vst.msk [vmem:[#allocation2 + $0x18] sm:$0xff] %vm479, %v294
    %484 = vst.msk [vmem:[#allocation2 + $0x20] sm:$0xff] %vm479, %v296
    %485 = vst.msk [vmem:[#allocation2 + $0x28] sm:$0xff] %vm479, %v298
    %486 = vst.msk [vmem:[#allocation2 + $0x30] sm:$0xff] %vm479, %v300
    %487 = vst.msk [vmem:[#allocation2 + $0x38] sm:$0xff] %vm479, %v302
    %488 = vst.msk [vmem:[#allocation2 + $0x40] sm:$0xff] %vm479, %v304
    %489 = vst.msk [vmem:[#allocation2 + $0x48] sm:$0xff] %vm479, %v306
    %490 = vst.msk [vmem:[#allocation2 + $0x50] sm:$0xff] %vm479, %v308
    %491 = vst.msk [vmem:[#allocation2 + $0x58] sm:$0xff] %vm479, %v310
    %492 = vst.msk [vmem:[#allocation2 + $0x60] sm:$0xff] %vm479, %v312
    %493 = vst.msk [vmem:[#allocation2 + $0x68] sm:$0xff] %vm479, %v314
    %494 = vst.msk [vmem:[#allocation2 + $0x70] sm:$0xff] %vm479, %v316
    %495 = vst.msk [vmem:[#allocation2 + $0x78] sm:$0xff] %vm479, %v318
    %496 = vst.msk [vmem:[#allocation2 + $0x80] sm:$0xff] %vm479, %v320
    %497 = vst.msk [vmem:[#allocation2 + $0x88] sm:$0xff] %vm479, %v322
    %498 = vst.msk [vmem:[#allocation2 + $0x90] sm:$0xff] %vm479, %v324
    %499 = vst.msk [vmem:[#allocation2 + $0x98] sm:$0xff] %vm479, %v326
    %500 = vst.msk [vmem:[#allocation2 + $0xa0] sm:$0xff] %vm479, %v328
    %501 = vst.msk [vmem:[#allocation2 + $0xa8] sm:$0xff] %vm479, %v330
    %502 = vst.msk [vmem:[#allocation2 + $0xb0] sm:$0xff] %vm479, %v332
    %503 = vst.msk [vmem:[#allocation2 + $0xb8] sm:$0xff] %vm479, %v334
    %504 = vst.msk [vmem:[#allocation2 + $0xc0] sm:$0xff] %vm479, %v336
    %505 = vst.msk [vmem:[#allocation2 + $0xc8] sm:$0xff] %vm479, %v338
    %506 = vst.msk [vmem:[#allocation2 + $0xd0] sm:$0xff] %vm479, %v340
    %507 = vst.msk [vmem:[#allocation2 + $0xd8] sm:$0xff] %vm479, %v342
    %508 = vst.msk [vmem:[#allocation2 + $0xe0] sm:$0xff] %vm479, %v344
    %509 = vst.msk [vmem:[#allocation2 + $0xe8] sm:$0xff] %vm479, %v346
    %510 = vst.msk [vmem:[#allocation2 + $0xf0] sm:$0xff] %vm479, %v348
    %511 = vst.msk [vmem:[#allocation2 + $0xf8] sm:$0xff] %vm479, %v350
    %512 = vst.msk [vmem:[#allocation2 + $0x100] sm:$0xff] %vm479, %v352
    %513 = vst.msk [vmem:[#allocation2 + $0x108] sm:$0xff] %vm479, %v354
    %514 = vst.msk [vmem:[#allocation2 + $0x110] sm:$0xff] %vm479, %v356
    %515 = vst.msk [vmem:[#allocation2 + $0x118] sm:$0xff] %vm479, %v358
    %516 = vst.msk [vmem:[#allocation2 + $0x120] sm:$0xff] %vm479, %v360
    %517 = vst.msk [vmem:[#allocation2 + $0x128] sm:$0xff] %vm479, %v362
    %518 = vst.msk [vmem:[#allocation2 + $0x130] sm:$0xff] %vm479, %v364
    %519 = vst.msk [vmem:[#allocation2 + $0x138] sm:$0xff] %vm479, %v366
    %520 = vst.msk [vmem:[#allocation2 + $0x140] sm:$0xff] %vm479, %v368
    %521 = vst.msk [vmem:[#allocation2 + $0x148] sm:$0xff] %vm479, %v370
    %522 = vst.msk [vmem:[#allocation2 + $0x150] sm:$0xff] %vm479, %v372
    %523 = vst.msk [vmem:[#allocation2 + $0x158] sm:$0xff] %vm479, %v374
    %524 = vst.msk [vmem:[#allocation2 + $0x160] sm:$0xff] %vm479, %v376
    %525 = vst.msk [vmem:[#allocation2 + $0x168] sm:$0xff] %vm479, %v378
    %526 = vst.msk [vmem:[#allocation2 + $0x170] sm:$0xff] %vm479, %v380
    %527 = vst.msk [vmem:[#allocation2 + $0x178] sm:$0xff] %vm479, %v382
    %528 = vst.msk [vmem:[#allocation2 + $0x180] sm:$0xff] %vm479, %v384
    %529 = vst.msk [vmem:[#allocation2 + $0x188] sm:$0xff] %vm479, %v386
    %530 = vst.msk [vmem:[#allocation2 + $0x190] sm:$0xff] %vm479, %v388
    %531 = vst.msk [vmem:[#allocation2 + $0x198] sm:$0xff] %vm479, %v390
    %532 = vst.msk [vmem:[#allocation2 + $0x1a0] sm:$0xff] %vm479, %v392
    %533 = vst.msk [vmem:[#allocation2 + $0x1a8] sm:$0xff] %vm479, %v394
    %534 = vst.msk [vmem:[#allocation2 + $0x1b0] sm:$0xff] %vm479, %v396
    %535 = vst.msk [vmem:[#allocation2 + $0x1b8] sm:$0xff] %vm479, %v398
    %536 = vst.msk [vmem:[#allocation2 + $0x1c0] sm:$0xff] %vm479, %v400
    %537 = vst.msk [vmem:[#allocation2 + $0x1c8] sm:$0xff] %vm479, %v402
    %538 = vst.msk [vmem:[#allocation2 + $0x1d0] sm:$0xff] %vm479, %v404
    %539 = vst.msk [vmem:[#allocation2 + $0x1d8] sm:$0xff] %vm479, %v406
    %540 = vst.msk [vmem:[#allocation2 + $0x1e0] sm:$0xff] %vm479, %v408
    %541 = vst.msk [vmem:[#allocation2 + $0x1e8] sm:$0xff] %vm479, %v410
    %542 = vst.msk [vmem:[#allocation2 + $0x1f0] sm:$0xff] %vm479, %v412
    %543 = vst.msk [vmem:[#allocation2 + $0x1f8] sm:$0xff] %vm479, %v414
    %v544 = vld [vmem:[%s0 + $0x2] sm:$0xff]
    %v545 = vld [vmem:[%s0 + $0xa] sm:$0xff]
    %v546 = vld [vmem:[%s0 + $0x1a] sm:$0xff]
    %v547 = vld [vmem:[%s0 + $0x22] sm:$0xff]
    %v548 = vld [vmem:[%s0 + $0x32] sm:$0xff]
    %v549 = vld [vmem:[%s0 + $0x3a] sm:$0xff]
    %v550 = vld [vmem:[%s0 + $0x4a] sm:$0xff]
    %v551 = vld [vmem:[%s0 + $0x52] sm:$0xff]
    %v552 = vld [vmem:[%s0 + $0x62] sm:$0xff]
    %v553 = vld [vmem:[%s0 + $0x6a] sm:$0xff]
    %v554 = vld [vmem:[%s0 + $0x7a] sm:$0xff]
    %v555 = vld [vmem:[%s0 + $0x82] sm:$0xff]
    %v556 = vld [vmem:[%s0 + $0x92] sm:$0xff]
    %v557 = vld [vmem:[%s0 + $0x9a] sm:$0xff]
    %v558 = vld [vmem:[%s0 + $0xaa] sm:$0xff]
    %v559 = vld [vmem:[%s0 + $0xb2] sm:$0xff]
    %v560 = vld [vmem:[%s0 + $0xc2] sm:$0xff]
    %v561 = vld [vmem:[%s0 + $0xca] sm:$0xff]
    %v562 = vld [vmem:[%s0 + $0xda] sm:$0xff]
    %v563 = vld [vmem:[%s0 + $0xe2] sm:$0xff]
    %v564 = vld [vmem:[%s0 + $0xf2] sm:$0xff]
    %v565 = vld [vmem:[%s0 + $0xfa] sm:$0xff]
    %v566 = vld [vmem:[%s0 + $0x10a] sm:$0xff]
    %v567 = vld [vmem:[%s0 + $0x112] sm:$0xff]
    %v568 = vld [vmem:[%s0 + $0x122] sm:$0xff]
    %v569 = vld [vmem:[%s0 + $0x12a] sm:$0xff]
    %v570 = vld [vmem:[%s0 + $0x13a] sm:$0xff]
    %v571 = vld [vmem:[%s0 + $0x142] sm:$0xff]
    %v572 = vld [vmem:[%s0 + $0x152] sm:$0xff]
    %v573 = vld [vmem:[%s0 + $0x15a] sm:$0xff]
    %v574 = vld [vmem:[%s0 + $0x16a] sm:$0xff]
    %v575 = vld [vmem:[%s0 + $0x172] sm:$0xff]
    %v576 = vld [vmem:[%s0 + $0x1b2] sm:$0xff]
    %v577 = vld [vmem:[%s0 + $0x1ba] sm:$0xff]
    %v578 = vld [vmem:[%s0 + $0x1ca] sm:$0xff]
    %v579 = vld [vmem:[%s0 + $0x1d2] sm:$0xff]
    %v580 = vld [vmem:[%s0 + $0x1e2] sm:$0xff]
    %v581 = vld [vmem:[%s0 + $0x1ea] sm:$0xff]
    %v582 = vld [vmem:[%s0 + $0x1fa] sm:$0xff]
    %v583 = vld [vmem:[%s0 + $0x202] sm:$0xff]
    %v584 = vld [vmem:[%s0 + $0x212] sm:$0xff]
    %v585 = vld [vmem:[%s0 + $0x21a] sm:$0xff]
    %v586 = vld [vmem:[%s0 + $0x22a] sm:$0xff]
    %v587 = vld [vmem:[%s0 + $0x232] sm:$0xff]
    %v588 = vld [vmem:[%s0 + $0x242] sm:$0xff]
    %v589 = vld [vmem:[%s0 + $0x24a] sm:$0xff]
    %v590 = vld [vmem:[%s0 + $0x25a] sm:$0xff]
    %v591 = vld [vmem:[%s0 + $0x262] sm:$0xff]
    %v592 = vld [vmem:[%s0 + $0x272] sm:$0xff]
    %v593 = vld [vmem:[%s0 + $0x27a] sm:$0xff]
    %v594 = vld [vmem:[%s0 + $0x28a] sm:$0xff]
    %v595 = vld [vmem:[%s0 + $0x292] sm:$0xff]
    %v596 = vld [vmem:[%s0 + $0x2a2] sm:$0xff]
    %v597 = vld [vmem:[%s0 + $0x2aa] sm:$0xff]
    %v598 = vld [vmem:[%s0 + $0x2ba] sm:$0xff]
    %v599 = vld [vmem:[%s0 + $0x2c2] sm:$0xff]
    %v600 = vld [vmem:[%s0 + $0x2d2] sm:$0xff]
    %v601 = vld [vmem:[%s0 + $0x2da] sm:$0xff]
    %v602 = vld [vmem:[%s0 + $0x2ea] sm:$0xff]
    %v603 = vld [vmem:[%s0 + $0x2f2] sm:$0xff]
    %v604 = vld [vmem:[%s0 + $0x302] sm:$0xff]
    %v605 = vld [vmem:[%s0 + $0x30a] sm:$0xff]
    %v606 = vld [vmem:[%s0 + $0x31a] sm:$0xff]
    %v607 = vld [vmem:[%s0 + $0x322] sm:$0xff]
    %672 = vrot.lane.b32.xlu0 %v544, 8
    %v673 = vpop.permute.xlu0 %672
    %674 = vrot.lane.b32.xlu0 %v545, 8
    %v675 = vpop.permute.xlu0 %674
    %676 = vrot.lane.b32.xlu0 %v546, 8
    %v677 = vpop.permute.xlu0 %676
    %678 = vrot.lane.b32.xlu0 %v547, 8
    %v679 = vpop.permute.xlu0 %678
    %680 = vrot.lane.b32.xlu0 %v548, 8
    %v681 = vpop.permute.xlu0 %680
    %682 = vrot.lane.b32.xlu0 %v549, 8
    %v683 = vpop.permute.xlu0 %682
    %684 = vrot.lane.b32.xlu0 %v550, 8
    %v685 = vpop.permute.xlu0 %684
    %686 = vrot.lane.b32.xlu0 %v551, 8
    %v687 = vpop.permute.xlu0 %686
    %688 = vrot.lane.b32.xlu0 %v552, 8
    %v689 = vpop.permute.xlu0 %688
    %690 = vrot.lane.b32.xlu0 %v553, 8
    %v691 = vpop.permute.xlu0 %690
    %692 = vrot.lane.b32.xlu0 %v554, 8
    %v693 = vpop.permute.xlu0 %692
    %694 = vrot.lane.b32.xlu0 %v555, 8
    %v695 = vpop.permute.xlu0 %694
    %696 = vrot.lane.b32.xlu0 %v556, 8
    %v697 = vpop.permute.xlu0 %696
    %698 = vrot.lane.b32.xlu0 %v557, 8
    %v699 = vpop.permute.xlu0 %698
    %700 = vrot.lane.b32.xlu0 %v558, 8
    %v701 = vpop.permute.xlu0 %700
    %702 = vrot.lane.b32.xlu0 %v559, 8
    %v703 = vpop.permute.xlu0 %702
    %704 = vrot.lane.b32.xlu0 %v560, 8
    %v705 = vpop.permute.xlu0 %704
    %706 = vrot.lane.b32.xlu0 %v561, 8
    %v707 = vpop.permute.xlu0 %706
    %708 = vrot.lane.b32.xlu0 %v562, 8
    %v709 = vpop.permute.xlu0 %708
    %710 = vrot.lane.b32.xlu0 %v563, 8
    %v711 = vpop.permute.xlu0 %710
    %712 = vrot.lane.b32.xlu0 %v564, 8
    %v713 = vpop.permute.xlu0 %712
    %714 = vrot.lane.b32.xlu0 %v565, 8
    %v715 = vpop.permute.xlu0 %714
    %716 = vrot.lane.b32.xlu0 %v566, 8
    %v717 = vpop.permute.xlu0 %716
    %718 = vrot.lane.b32.xlu0 %v567, 8
    %v719 = vpop.permute.xlu0 %718
    %720 = vrot.lane.b32.xlu0 %v568, 8
    %v721 = vpop.permute.xlu0 %720
    %722 = vrot.lane.b32.xlu0 %v569, 8
    %v723 = vpop.permute.xlu0 %722
    %724 = vrot.lane.b32.xlu0 %v570, 8
    %v725 = vpop.permute.xlu0 %724
    %726 = vrot.lane.b32.xlu0 %v571, 8
    %v727 = vpop.permute.xlu0 %726
    %728 = vrot.lane.b32.xlu0 %v572, 8
    %v729 = vpop.permute.xlu0 %728
    %730 = vrot.lane.b32.xlu0 %v573, 8
    %v731 = vpop.permute.xlu0 %730
    %732 = vrot.lane.b32.xlu0 %v574, 8
    %v733 = vpop.permute.xlu0 %732
    %734 = vrot.lane.b32.xlu0 %v575, 8
    %v735 = vpop.permute.xlu0 %734
    %736 = vrot.lane.b32.xlu0 %v576, 8
    %v737 = vpop.permute.xlu0 %736
    %738 = vrot.lane.b32.xlu0 %v577, 8
    %v739 = vpop.permute.xlu0 %738
    %740 = vrot.lane.b32.xlu0 %v578, 8
    %v741 = vpop.permute.xlu0 %740
    %742 = vrot.lane.b32.xlu0 %v579, 8
    %v743 = vpop.permute.xlu0 %742
    %744 = vrot.lane.b32.xlu0 %v580, 8
    %v745 = vpop.permute.xlu0 %744
    %746 = vrot.lane.b32.xlu0 %v581, 8
    %v747 = vpop.permute.xlu0 %746
    %748 = vrot.lane.b32.xlu0 %v582, 8
    %v749 = vpop.permute.xlu0 %748
    %750 = vrot.lane.b32.xlu0 %v583, 8
    %v751 = vpop.permute.xlu0 %750
    %752 = vrot.lane.b32.xlu0 %v584, 8
    %v753 = vpop.permute.xlu0 %752
    %754 = vrot.lane.b32.xlu0 %v585, 8
    %v755 = vpop.permute.xlu0 %754
    %756 = vrot.lane.b32.xlu0 %v586, 8
    %v757 = vpop.permute.xlu0 %756
    %758 = vrot.lane.b32.xlu0 %v587, 8
    %v759 = vpop.permute.xlu0 %758
    %760 = vrot.lane.b32.xlu0 %v588, 8
    %v761 = vpop.permute.xlu0 %760
    %762 = vrot.lane.b32.xlu0 %v589, 8
    %v763 = vpop.permute.xlu0 %762
    %764 = vrot.lane.b32.xlu0 %v590, 8
    %v765 = vpop.permute.xlu0 %764
    %766 = vrot.lane.b32.xlu0 %v591, 8
    %v767 = vpop.permute.xlu0 %766
    %768 = vrot.lane.b32.xlu0 %v592, 8
    %v769 = vpop.permute.xlu0 %768
    %770 = vrot.lane.b32.xlu0 %v593, 8
    %v771 = vpop.permute.xlu0 %770
    %772 = vrot.lane.b32.xlu0 %v594, 8
    %v773 = vpop.permute.xlu0 %772
    %774 = vrot.lane.b32.xlu0 %v595, 8
    %v775 = vpop.permute.xlu0 %774
    %776 = vrot.lane.b32.xlu0 %v596, 8
    %v777 = vpop.permute.xlu0 %776
    %778 = vrot.lane.b32.xlu0 %v597, 8
    %v779 = vpop.permute.xlu0 %778
    %780 = vrot.lane.b32.xlu0 %v598, 8
    %v781 = vpop.permute.xlu0 %780
    %782 = vrot.lane.b32.xlu0 %v599, 8
    %v783 = vpop.permute.xlu0 %782
    %784 = vrot.lane.b32.xlu0 %v600, 8
    %v785 = vpop.permute.xlu0 %784
    %786 = vrot.lane.b32.xlu0 %v601, 8
    %v787 = vpop.permute.xlu0 %786
    %788 = vrot.lane.b32.xlu0 %v602, 8
    %v789 = vpop.permute.xlu0 %788
    %790 = vrot.lane.b32.xlu0 %v603, 8
    %v791 = vpop.permute.xlu0 %790
    %792 = vrot.lane.b32.xlu0 %v604, 8
    %v793 = vpop.permute.xlu0 %792
    %794 = vrot.lane.b32.xlu0 %v605, 8
    %v795 = vpop.permute.xlu0 %794
    %796 = vrot.lane.b32.xlu0 %v606, 8
    %v797 = vpop.permute.xlu0 %796
    %798 = vrot.lane.b32.xlu0 %v607, 8
    %v799 = vpop.permute.xlu0 %798
    %vm864 = vcmask 97344
    %865 = vst.msk [vmem:[#allocation2] sm:$0xff] %vm864, %v673
    %866 = vst.msk [vmem:[#allocation2 + $0x8] sm:$0xff] %vm864, %v675
    %867 = vst.msk [vmem:[#allocation2 + $0x10] sm:$0xff] %vm864, %v677
    %868 = vst.msk [vmem:[#allocation2 + $0x18] sm:$0xff] %vm864, %v679
    %869 = vst.msk [vmem:[#allocation2 + $0x20] sm:$0xff] %vm864, %v681
    %870 = vst.msk [vmem:[#allocation2 + $0x28] sm:$0xff] %vm864, %v683
    %871 = vst.msk [vmem:[#allocation2 + $0x30] sm:$0xff] %vm864, %v685
    %872 = vst.msk [vmem:[#allocation2 + $0x38] sm:$0xff] %vm864, %v687
    %873 = vst.msk [vmem:[#allocation2 + $0x40] sm:$0xff] %vm864, %v689
    %874 = vst.msk [vmem:[#allocation2 + $0x48] sm:$0xff] %vm864, %v691
    %875 = vst.msk [vmem:[#allocation2 + $0x50] sm:$0xff] %vm864, %v693
    %876 = vst.msk [vmem:[#allocation2 + $0x58] sm:$0xff] %vm864, %v695
    %877 = vst.msk [vmem:[#allocation2 + $0x60] sm:$0xff] %vm864, %v697
    %878 = vst.msk [vmem:[#allocation2 + $0x68] sm:$0xff] %vm864, %v699
    %879 = vst.msk [vmem:[#allocation2 + $0x70] sm:$0xff] %vm864, %v701
    %880 = vst.msk [vmem:[#allocation2 + $0x78] sm:$0xff] %vm864, %v703
    %881 = vst.msk [vmem:[#allocation2 + $0x80] sm:$0xff] %vm864, %v705
    %882 = vst.msk [vmem:[#allocation2 + $0x88] sm:$0xff] %vm864, %v707
    %883 = vst.msk [vmem:[#allocation2 + $0x90] sm:$0xff] %vm864, %v709
    %884 = vst.msk [vmem:[#allocation2 + $0x98] sm:$0xff] %vm864, %v711
    %885 = vst.msk [vmem:[#allocation2 + $0xa0] sm:$0xff] %vm864, %v713
    %886 = vst.msk [vmem:[#allocation2 + $0xa8] sm:$0xff] %vm864, %v715
    %887 = vst.msk [vmem:[#allocation2 + $0xb0] sm:$0xff] %vm864, %v717
    %888 = vst.msk [vmem:[#allocation2 + $0xb8] sm:$0xff] %vm864, %v719
    %889 = vst.msk [vmem:[#allocation2 + $0xc0] sm:$0xff] %vm864, %v721
    %890 = vst.msk [vmem:[#allocation2 + $0xc8] sm:$0xff] %vm864, %v723
    %891 = vst.msk [vmem:[#allocation2 + $0xd0] sm:$0xff] %vm864, %v725
    %892 = vst.msk [vmem:[#allocation2 + $0xd8] sm:$0xff] %vm864, %v727
    %893 = vst.msk [vmem:[#allocation2 + $0xe0] sm:$0xff] %vm864, %v729
    %894 = vst.msk [vmem:[#allocation2 + $0xe8] sm:$0xff] %vm864, %v731
    %895 = vst.msk [vmem:[#allocation2 + $0xf0] sm:$0xff] %vm864, %v733
    %896 = vst.msk [vmem:[#allocation2 + $0xf8] sm:$0xff] %vm864, %v735
    %897 = vst.msk [vmem:[#allocation2 + $0x100] sm:$0xff] %vm864, %v737
    %898 = vst.msk [vmem:[#allocation2 + $0x108] sm:$0xff] %vm864, %v739
    %899 = vst.msk [vmem:[#allocation2 + $0x110] sm:$0xff] %vm864, %v741
    %900 = vst.msk [vmem:[#allocation2 + $0x118] sm:$0xff] %vm864, %v743
    %901 = vst.msk [vmem:[#allocation2 + $0x120] sm:$0xff] %vm864, %v745
    %902 = vst.msk [vmem:[#allocation2 + $0x128] sm:$0xff] %vm864, %v747
    %903 = vst.msk [vmem:[#allocation2 + $0x130] sm:$0xff] %vm864, %v749
    %904 = vst.msk [vmem:[#allocation2 + $0x138] sm:$0xff] %vm864, %v751
    %905 = vst.msk [vmem:[#allocation2 + $0x140] sm:$0xff] %vm864, %v753
    %906 = vst.msk [vmem:[#allocation2 + $0x148] sm:$0xff] %vm864, %v755
    %907 = vst.msk [vmem:[#allocation2 + $0x150] sm:$0xff] %vm864, %v757
    %908 = vst.msk [vmem:[#allocation2 + $0x158] sm:$0xff] %vm864, %v759
    %909 = vst.msk [vmem:[#allocation2 + $0x160] sm:$0xff] %vm864, %v761
    %910 = vst.msk [vmem:[#allocation2 + $0x168] sm:$0xff] %vm864, %v763
    %911 = vst.msk [vmem:[#allocation2 + $0x170] sm:$0xff] %vm864, %v765
    %912 = vst.msk [vmem:[#allocation2 + $0x178] sm:$0xff] %vm864, %v767
    %913 = vst.msk [vmem:[#allocation2 + $0x180] sm:$0xff] %vm864, %v769
    %914 = vst.msk [vmem:[#allocation2 + $0x188] sm:$0xff] %vm864, %v771
    %915 = vst.msk [vmem:[#allocation2 + $0x190] sm:$0xff] %vm864, %v773
    %916 = vst.msk [vmem:[#allocation2 + $0x198] sm:$0xff] %vm864, %v775
    %917 = vst.msk [vmem:[#allocation2 + $0x1a0] sm:$0xff] %vm864, %v777
    %918 = vst.msk [vmem:[#allocation2 + $0x1a8] sm:$0xff] %vm864, %v779
    %919 = vst.msk [vmem:[#allocation2 + $0x1b0] sm:$0xff] %vm864, %v781
    %920 = vst.msk [vmem:[#allocation2 + $0x1b8] sm:$0xff] %vm864, %v783
    %921 = vst.msk [vmem:[#allocation2 + $0x1c0] sm:$0xff] %vm864, %v785
    %922 = vst.msk [vmem:[#allocation2 + $0x1c8] sm:$0xff] %vm864, %v787
    %923 = vst.msk [vmem:[#allocation2 + $0x1d0] sm:$0xff] %vm864, %v789
    %924 = vst.msk [vmem:[#allocation2 + $0x1d8] sm:$0xff] %vm864, %v791
    %925 = vst.msk [vmem:[#allocation2 + $0x1e0] sm:$0xff] %vm864, %v793
    %926 = vst.msk [vmem:[#allocation2 + $0x1e8] sm:$0xff] %vm864, %v795
    %927 = vst.msk [vmem:[#allocation2 + $0x1f0] sm:$0xff] %vm864, %v797
    %928 = vst.msk [vmem:[#allocation2 + $0x1f8] sm:$0xff] %vm864, %v799
    %s929 = scalar_lea.vmem %s0, 24
    %v930 = vld [vmem:[%s929] sm:$0xff]
    %v931 = vld [vmem:[%s929 + $0x8] sm:$0xff]
    %v932 = vld [vmem:[%s929 + $0x18] sm:$0xff]
    %v933 = vld [vmem:[%s929 + $0x20] sm:$0xff]
    %v934 = vld [vmem:[%s929 + $0x30] sm:$0xff]
    %v935 = vld [vmem:[%s929 + $0x38] sm:$0xff]
    %v936 = vld [vmem:[%s929 + $0x48] sm:$0xff]
    %v937 = vld [vmem:[%s929 + $0x50] sm:$0xff]
    %v938 = vld [vmem:[%s929 + $0x60] sm:$0xff]
    %v939 = vld [vmem:[%s929 + $0x68] sm:$0xff]
    %v940 = vld [vmem:[%s929 + $0x78] sm:$0xff]
    %v941 = vld [vmem:[%s929 + $0x80] sm:$0xff]
    %v942 = vld [vmem:[%s929 + $0x90] sm:$0xff]
    %v943 = vld [vmem:[%s929 + $0x98] sm:$0xff]
    %v944 = vld [vmem:[%s929 + $0xa8] sm:$0xff]
    %v945 = vld [vmem:[%s929 + $0xb0] sm:$0xff]
    %v946 = vld [vmem:[%s929 + $0xc0] sm:$0xff]
    %v947 = vld [vmem:[%s929 + $0xc8] sm:$0xff]
    %v948 = vld [vmem:[%s929 + $0xd8] sm:$0xff]
    %v949 = vld [vmem:[%s929 + $0xe0] sm:$0xff]
    %v950 = vld [vmem:[%s929 + $0xf0] sm:$0xff]
    %v951 = vld [vmem:[%s929 + $0xf8] sm:$0xff]
    %v952 = vld [vmem:[%s929 + $0x108] sm:$0xff]
    %v953 = vld [vmem:[%s929 + $0x110] sm:$0xff]
    %v954 = vld [vmem:[%s929 + $0x120] sm:$0xff]
    %v955 = vld [vmem:[%s929 + $0x128] sm:$0xff]
    %v956 = vld [vmem:[%s929 + $0x138] sm:$0xff]
    %v957 = vld [vmem:[%s929 + $0x140] sm:$0xff]
    %v958 = vld [vmem:[%s929 + $0x150] sm:$0xff]
    %v959 = vld [vmem:[%s929 + $0x158] sm:$0xff]
    %v960 = vld [vmem:[%s929 + $0x168] sm:$0xff]
    %v961 = vld [vmem:[%s929 + $0x170] sm:$0xff]
    %v962 = vld [vmem:[%s929 + $0x1b0] sm:$0xff]
    %v963 = vld [vmem:[%s929 + $0x1b8] sm:$0xff]
    %v964 = vld [vmem:[%s929 + $0x1c8] sm:$0xff]
    %v965 = vld [vmem:[%s929 + $0x1d0] sm:$0xff]
    %v966 = vld [vmem:[%s929 + $0x1e0] sm:$0xff]
    %v967 = vld [vmem:[%s929 + $0x1e8] sm:$0xff]
    %v968 = vld [vmem:[%s929 + $0x1f8] sm:$0xff]
    %v969 = vld [vmem:[%s929 + $0x200] sm:$0xff]
    %v970 = vld [vmem:[%s929 + $0x210] sm:$0xff]
    %v971 = vld [vmem:[%s929 + $0x218] sm:$0xff]
    %v972 = vld [vmem:[%s929 + $0x228] sm:$0xff]
    %v973 = vld [vmem:[%s929 + $0x230] sm:$0xff]
    %v974 = vld [vmem:[%s929 + $0x240] sm:$0xff]
    %v975 = vld [vmem:[%s929 + $0x248] sm:$0xff]
    %v976 = vld [vmem:[%s929 + $0x258] sm:$0xff]
    %v977 = vld [vmem:[%s929 + $0x260] sm:$0xff]
    %v978 = vld [vmem:[%s929 + $0x270] sm:$0xff]
    %v979 = vld [vmem:[%s929 + $0x278] sm:$0xff]
    %v980 = vld [vmem:[%s929 + $0x288] sm:$0xff]
    %v981 = vld [vmem:[%s929 + $0x290] sm:$0xff]
    %v982 = vld [vmem:[%s929 + $0x2a0] sm:$0xff]
    %v983 = vld [vmem:[%s929 + $0x2a8] sm:$0xff]
    %v984 = vld [vmem:[%s929 + $0x2b8] sm:$0xff]
    %v985 = vld [vmem:[%s929 + $0x2c0] sm:$0xff]
    %v986 = vld [vmem:[%s929 + $0x2d0] sm:$0xff]
    %v987 = vld [vmem:[%s929 + $0x2d8] sm:$0xff]
    %v988 = vld [vmem:[%s929 + $0x2e8] sm:$0xff]
    %v989 = vld [vmem:[%s929 + $0x2f0] sm:$0xff]
    %v990 = vld [vmem:[%s929 + $0x300] sm:$0xff]
    %v991 = vld [vmem:[%s929 + $0x308] sm:$0xff]
    %v992 = vld [vmem:[%s929 + $0x318] sm:$0xff]
    %v993 = vld [vmem:[%s929 + $0x320] sm:$0xff]
    %1058 = vrot.lane.b32.xlu0 %v930, 12
    %v1059 = vpop.permute.xlu0 %1058
    %1060 = vrot.lane.b32.xlu0 %v931, 12
    %v1061 = vpop.permute.xlu0 %1060
    %1062 = vrot.lane.b32.xlu0 %v932, 12
    %v1063 = vpop.permute.xlu0 %1062
    %1064 = vrot.lane.b32.xlu0 %v933, 12
    %v1065 = vpop.permute.xlu0 %1064
    %1066 = vrot.lane.b32.xlu0 %v934, 12
    %v1067 = vpop.permute.xlu0 %1066
    %1068 = vrot.lane.b32.xlu0 %v935, 12
    %v1069 = vpop.permute.xlu0 %1068
    %1070 = vrot.lane.b32.xlu0 %v936, 12
    %v1071 = vpop.permute.xlu0 %1070
    %1072 = vrot.lane.b32.xlu0 %v937, 12
    %v1073 = vpop.permute.xlu0 %1072
    %1074 = vrot.lane.b32.xlu0 %v938, 12
    %v1075 = vpop.permute.xlu0 %1074
    %1076 = vrot.lane.b32.xlu0 %v939, 12
    %v1077 = vpop.permute.xlu0 %1076
    %1078 = vrot.lane.b32.xlu0 %v940, 12
    %v1079 = vpop.permute.xlu0 %1078
    %1080 = vrot.lane.b32.xlu0 %v941, 12
    %v1081 = vpop.permute.xlu0 %1080
    %1082 = vrot.lane.b32.xlu0 %v942, 12
    %v1083 = vpop.permute.xlu0 %1082
    %1084 = vrot.lane.b32.xlu0 %v943, 12
    %v1085 = vpop.permute.xlu0 %1084
    %1086 = vrot.lane.b32.xlu0 %v944, 12
    %v1087 = vpop.permute.xlu0 %1086
    %1088 = vrot.lane.b32.xlu0 %v945, 12
    %v1089 = vpop.permute.xlu0 %1088
    %1090 = vrot.lane.b32.xlu0 %v946, 12
    %v1091 = vpop.permute.xlu0 %1090
    %1092 = vrot.lane.b32.xlu0 %v947, 12
    %v1093 = vpop.permute.xlu0 %1092
    %1094 = vrot.lane.b32.xlu0 %v948, 12
    %v1095 = vpop.permute.xlu0 %1094
    %1096 = vrot.lane.b32.xlu0 %v949, 12
    %v1097 = vpop.permute.xlu0 %1096
    %1098 = vrot.lane.b32.xlu0 %v950, 12
    %v1099 = vpop.permute.xlu0 %1098
    %1100 = vrot.lane.b32.xlu0 %v951, 12
    %v1101 = vpop.permute.xlu0 %1100
    %1102 = vrot.lane.b32.xlu0 %v952, 12
    %v1103 = vpop.permute.xlu0 %1102
    %1104 = vrot.lane.b32.xlu0 %v953, 12
    %v1105 = vpop.permute.xlu0 %1104
    %1106 = vrot.lane.b32.xlu0 %v954, 12
    %v1107 = vpop.permute.xlu0 %1106
    %1108 = vrot.lane.b32.xlu0 %v955, 12
    %v1109 = vpop.permute.xlu0 %1108
    %1110 = vrot.lane.b32.xlu0 %v956, 12
    %v1111 = vpop.permute.xlu0 %1110
    %1112 = vrot.lane.b32.xlu0 %v957, 12
    %v1113 = vpop.permute.xlu0 %1112
    %1114 = vrot.lane.b32.xlu0 %v958, 12
    %v1115 = vpop.permute.xlu0 %1114
    %1116 = vrot.lane.b32.xlu0 %v959, 12
    %v1117 = vpop.permute.xlu0 %1116
    %1118 = vrot.lane.b32.xlu0 %v960, 12
    %v1119 = vpop.permute.xlu0 %1118
    %1120 = vrot.lane.b32.xlu0 %v961, 12
    %v1121 = vpop.permute.xlu0 %1120
    %1122 = vrot.lane.b32.xlu0 %v962, 12
    %v1123 = vpop.permute.xlu0 %1122
    %1124 = vrot.lane.b32.xlu0 %v963, 12
    %v1125 = vpop.permute.xlu0 %1124
    %1126 = vrot.lane.b32.xlu0 %v964, 12
    %v1127 = vpop.permute.xlu0 %1126
    %1128 = vrot.lane.b32.xlu0 %v965, 12
    %v1129 = vpop.permute.xlu0 %1128
    %1130 = vrot.lane.b32.xlu0 %v966, 12
    %v1131 = vpop.permute.xlu0 %1130
    %1132 = vrot.lane.b32.xlu0 %v967, 12
    %v1133 = vpop.permute.xlu0 %1132
    %1134 = vrot.lane.b32.xlu0 %v968, 12
    %v1135 = vpop.permute.xlu0 %1134
    %1136 = vrot.lane.b32.xlu0 %v969, 12
    %v1137 = vpop.permute.xlu0 %1136
    %1138 = vrot.lane.b32.xlu0 %v970, 12
    %v1139 = vpop.permute.xlu0 %1138
    %1140 = vrot.lane.b32.xlu0 %v971, 12
    %v1141 = vpop.permute.xlu0 %1140
    %1142 = vrot.lane.b32.xlu0 %v972, 12
    %v1143 = vpop.permute.xlu0 %1142
    %1144 = vrot.lane.b32.xlu0 %v973, 12
    %v1145 = vpop.permute.xlu0 %1144
    %1146 = vrot.lane.b32.xlu0 %v974, 12
    %v1147 = vpop.permute.xlu0 %1146
    %1148 = vrot.lane.b32.xlu0 %v975, 12
    %v1149 = vpop.permute.xlu0 %1148
    %1150 = vrot.lane.b32.xlu0 %v976, 12
    %v1151 = vpop.permute.xlu0 %1150
    %1152 = vrot.lane.b32.xlu0 %v977, 12
    %v1153 = vpop.permute.xlu0 %1152
    %1154 = vrot.lane.b32.xlu0 %v978, 12
    %v1155 = vpop.permute.xlu0 %1154
    %1156 = vrot.lane.b32.xlu0 %v979, 12
    %v1157 = vpop.permute.xlu0 %1156
    %1158 = vrot.lane.b32.xlu0 %v980, 12
    %v1159 = vpop.permute.xlu0 %1158
    %1160 = vrot.lane.b32.xlu0 %v981, 12
    %v1161 = vpop.permute.xlu0 %1160
    %1162 = vrot.lane.b32.xlu0 %v982, 12
    %v1163 = vpop.permute.xlu0 %1162
    %1164 = vrot.lane.b32.xlu0 %v983, 12
    %v1165 = vpop.permute.xlu0 %1164
    %1166 = vrot.lane.b32.xlu0 %v984, 12
    %v1167 = vpop.permute.xlu0 %1166
    %1168 = vrot.lane.b32.xlu0 %v985, 12
    %v1169 = vpop.permute.xlu0 %1168
    %1170 = vrot.lane.b32.xlu0 %v986, 12
    %v1171 = vpop.permute.xlu0 %1170
    %1172 = vrot.lane.b32.xlu0 %v987, 12
    %v1173 = vpop.permute.xlu0 %1172
    %1174 = vrot.lane.b32.xlu0 %v988, 12
    %v1175 = vpop.permute.xlu0 %1174
    %1176 = vrot.lane.b32.xlu0 %v989, 12
    %v1177 = vpop.permute.xlu0 %1176
    %1178 = vrot.lane.b32.xlu0 %v990, 12
    %v1179 = vpop.permute.xlu0 %1178
    %1180 = vrot.lane.b32.xlu0 %v991, 12
    %v1181 = vpop.permute.xlu0 %1180
    %1182 = vrot.lane.b32.xlu0 %v992, 12
    %v1183 = vpop.permute.xlu0 %1182
    %1184 = vrot.lane.b32.xlu0 %v993, 12
    %v1185 = vpop.permute.xlu0 %1184
    %vm1250 = vcmask 130144
    %1251 = vst.msk [vmem:[#allocation2] sm:$0xff] %vm1250, %v1059
    %1252 = vst.msk [vmem:[#allocation2 + $0x8] sm:$0xff] %vm1250, %v1061
    %1253 = vst.msk [vmem:[#allocation2 + $0x10] sm:$0xff] %vm1250, %v1063
    %1254 = vst.msk [vmem:[#allocation2 + $0x18] sm:$0xff] %vm1250, %v1065
    %1255 = vst.msk [vmem:[#allocation2 + $0x20] sm:$0xff] %vm1250, %v1067
    %1256 = vst.msk [vmem:[#allocation2 + $0x28] sm:$0xff] %vm1250, %v1069
    %1257 = vst.msk [vmem:[#allocation2 + $0x30] sm:$0xff] %vm1250, %v1071
    %1258 = vst.msk [vmem:[#allocation2 + $0x38] sm:$0xff] %vm1250, %v1073
    %1259 = vst.msk [vmem:[#allocation2 + $0x40] sm:$0xff] %vm1250, %v1075
    %1260 = vst.msk [vmem:[#allocation2 + $0x48] sm:$0xff] %vm1250, %v1077
    %1261 = vst.msk [vmem:[#allocation2 + $0x50] sm:$0xff] %vm1250, %v1079
    %1262 = vst.msk [vmem:[#allocation2 + $0x58] sm:$0xff] %vm1250, %v1081
    %1263 = vst.msk [vmem:[#allocation2 + $0x60] sm:$0xff] %vm1250, %v1083
    %1264 = vst.msk [vmem:[#allocation2 + $0x68] sm:$0xff] %vm1250, %v1085
    %1265 = vst.msk [vmem:[#allocation2 + $0x70] sm:$0xff] %vm1250, %v1087
    %1266 = vst.msk [vmem:[#allocation2 + $0x78] sm:$0xff] %vm1250, %v1089
    %1267 = vst.msk [vmem:[#allocation2 + $0x80] sm:$0xff] %vm1250, %v1091
    %1268 = vst.msk [vmem:[#allocation2 + $0x88] sm:$0xff] %vm1250, %v1093
    %1269 = vst.msk [vmem:[#allocation2 + $0x90] sm:$0xff] %vm1250, %v1095
    %1270 = vst.msk [vmem:[#allocation2 + $0x98] sm:$0xff] %vm1250, %v1097
    %1271 = vst.msk [vmem:[#allocation2 + $0xa0] sm:$0xff] %vm1250, %v1099
    %1272 = vst.msk [vmem:[#allocation2 + $0xa8] sm:$0xff] %vm1250, %v1101
    %1273 = vst.msk [vmem:[#allocation2 + $0xb0] sm:$0xff] %vm1250, %v1103
    %1274 = vst.msk [vmem:[#allocation2 + $0xb8] sm:$0xff] %vm1250, %v1105
    %1275 = vst.msk [vmem:[#allocation2 + $0xc0] sm:$0xff] %vm1250, %v1107
    %1276 = vst.msk [vmem:[#allocation2 + $0xc8] sm:$0xff] %vm1250, %v1109
    %1277 = vst.msk [vmem:[#allocation2 + $0xd0] sm:$0xff] %vm1250, %v1111
    %1278 = vst.msk [vmem:[#allocation2 + $0xd8] sm:$0xff] %vm1250, %v1113
    %1279 = vst.msk [vmem:[#allocation2 + $0xe0] sm:$0xff] %vm1250, %v1115
    %1280 = vst.msk [vmem:[#allocation2 + $0xe8] sm:$0xff] %vm1250, %v1117
    %1281 = vst.msk [vmem:[#allocation2 + $0xf0] sm:$0xff] %vm1250, %v1119
    %1282 = vst.msk [vmem:[#allocation2 + $0xf8] sm:$0xff] %vm1250, %v1121
    %1283 = vst.msk [vmem:[#allocation2 + $0x100] sm:$0xff] %vm1250, %v1123
    %1284 = vst.msk [vmem:[#allocation2 + $0x108] sm:$0xff] %vm1250, %v1125
    %1285 = vst.msk [vmem:[#allocation2 + $0x110] sm:$0xff] %vm1250, %v1127
    %1286 = vst.msk [vmem:[#allocation2 + $0x118] sm:$0xff] %vm1250, %v1129
    %1287 = vst.msk [vmem:[#allocation2 + $0x120] sm:$0xff] %vm1250, %v1131
    %1288 = vst.msk [vmem:[#allocation2 + $0x128] sm:$0xff] %vm1250, %v1133
    %1289 = vst.msk [vmem:[#allocation2 + $0x130] sm:$0xff] %vm1250, %v1135
    %1290 = vst.msk [vmem:[#allocation2 + $0x138] sm:$0xff] %vm1250, %v1137
    %1291 = vst.msk [vmem:[#allocation2 + $0x140] sm:$0xff] %vm1250, %v1139
    %1292 = vst.msk [vmem:[#allocation2 + $0x148] sm:$0xff] %vm1250, %v1141
    %1293 = vst.msk [vmem:[#allocation2 + $0x150] sm:$0xff] %vm1250, %v1143
    %1294 = vst.msk [vmem:[#allocation2 + $0x158] sm:$0xff] %vm1250, %v1145
    %1295 = vst.msk [vmem:[#allocation2 + $0x160] sm:$0xff] %vm1250, %v1147
    %1296 = vst.msk [vmem:[#allocation2 + $0x168] sm:$0xff] %vm1250, %v1149
    %1297 = vst.msk [vmem:[#allocation2 + $0x170] sm:$0xff] %vm1250, %v1151
    %1298 = vst.msk [vmem:[#allocation2 + $0x178] sm:$0xff] %vm1250, %v1153
    %1299 = vst.msk [vmem:[#allocation2 + $0x180] sm:$0xff] %vm1250, %v1155
    %1300 = vst.msk [vmem:[#allocation2 + $0x188] sm:$0xff] %vm1250, %v1157
    %1301 = vst.msk [vmem:[#allocation2 + $0x190] sm:$0xff] %vm1250, %v1159
    %1302 = vst.msk [vmem:[#allocation2 + $0x198] sm:$0xff] %vm1250, %v1161
    %1303 = vst.msk [vmem:[#allocation2 + $0x1a0] sm:$0xff] %vm1250, %v1163
    %1304 = vst.msk [vmem:[#allocation2 + $0x1a8] sm:$0xff] %vm1250, %v1165
    %1305 = vst.msk [vmem:[#allocation2 + $0x1b0] sm:$0xff] %vm1250, %v1167
    %1306 = vst.msk [vmem:[#allocation2 + $0x1b8] sm:$0xff] %vm1250, %v1169
    %1307 = vst.msk [vmem:[#allocation2 + $0x1c0] sm:$0xff] %vm1250, %v1171
    %1308 = vst.msk [vmem:[#allocation2 + $0x1c8] sm:$0xff] %vm1250, %v1173
    %1309 = vst.msk [vmem:[#allocation2 + $0x1d0] sm:$0xff] %vm1250, %v1175
    %1310 = vst.msk [vmem:[#allocation2 + $0x1d8] sm:$0xff] %vm1250, %v1177
    %1311 = vst.msk [vmem:[#allocation2 + $0x1e0] sm:$0xff] %vm1250, %v1179
    %1312 = vst.msk [vmem:[#allocation2 + $0x1e8] sm:$0xff] %vm1250, %v1181
    %1313 = vst.msk [vmem:[#allocation2 + $0x1f0] sm:$0xff] %vm1250, %v1183
    %1314 = vst.msk [vmem:[#allocation2 + $0x1f8] sm:$0xff] %vm1250, %v1185
    %v1315 = vld [vmem:[%s929 + $0x1] sm:$0xff]
    %v1316 = vld [vmem:[%s929 + $0x9] sm:$0xff]
    %v1317 = vld [vmem:[%s929 + $0x19] sm:$0xff]
    %v1318 = vld [vmem:[%s929 + $0x21] sm:$0xff]
    %v1319 = vld [vmem:[%s929 + $0x31] sm:$0xff]
    %v1320 = vld [vmem:[%s929 + $0x39] sm:$0xff]
    %v1321 = vld [vmem:[%s929 + $0x49] sm:$0xff]
    %v1322 = vld [vmem:[%s929 + $0x51] sm:$0xff]
    %v1323 = vld [vmem:[%s929 + $0x61] sm:$0xff]
    %v1324 = vld [vmem:[%s929 + $0x69] sm:$0xff]
    %v1325 = vld [vmem:[%s929 + $0x79] sm:$0xff]
    %v1326 = vld [vmem:[%s929 + $0x81] sm:$0xff]
    %v1327 = vld [vmem:[%s929 + $0x91] sm:$0xff]
    %v1328 = vld [vmem:[%s929 + $0x99] sm:$0xff]
    %v1329 = vld [vmem:[%s929 + $0xa9] sm:$0xff]
    %v1330 = vld [vmem:[%s929 + $0xb1] sm:$0xff]
    %v1331 = vld [vmem:[%s929 + $0xc1] sm:$0xff]
    %v1332 = vld [vmem:[%s929 + $0xc9] sm:$0xff]
    %v1333 = vld [vmem:[%s929 + $0xd9] sm:$0xff]
    %v1334 = vld [vmem:[%s929 + $0xe1] sm:$0xff]
    %v1335 = vld [vmem:[%s929 + $0xf1] sm:$0xff]
    %v1336 = vld [vmem:[%s929 + $0xf9] sm:$0xff]
    %v1337 = vld [vmem:[%s929 + $0x109] sm:$0xff]
    %v1338 = vld [vmem:[%s929 + $0x111] sm:$0xff]
    %v1339 = vld [vmem:[%s929 + $0x121] sm:$0xff]
    %v1340 = vld [vmem:[%s929 + $0x129] sm:$0xff]
    %v1341 = vld [vmem:[%s929 + $0x139] sm:$0xff]
    %v1342 = vld [vmem:[%s929 + $0x141] sm:$0xff]
    %v1343 = vld [vmem:[%s929 + $0x151] sm:$0xff]
    %v1344 = vld [vmem:[%s929 + $0x159] sm:$0xff]
    %v1345 = vld [vmem:[%s929 + $0x169] sm:$0xff]
    %v1346 = vld [vmem:[%s929 + $0x171] sm:$0xff]
    %v1347 = vld [vmem:[%s929 + $0x1b1] sm:$0xff]
    %v1348 = vld [vmem:[%s929 + $0x1b9] sm:$0xff]
    %v1349 = vld [vmem:[%s929 + $0x1c9] sm:$0xff]
    %v1350 = vld [vmem:[%s929 + $0x1d1] sm:$0xff]
    %v1351 = vld [vmem:[%s929 + $0x1e1] sm:$0xff]
    %v1352 = vld [vmem:[%s929 + $0x1e9] sm:$0xff]
    %v1353 = vld [vmem:[%s929 + $0x1f9] sm:$0xff]
    %v1354 = vld [vmem:[%s929 + $0x201] sm:$0xff]
    %v1355 = vld [vmem:[%s929 + $0x211] sm:$0xff]
    %v1356 = vld [vmem:[%s929 + $0x219] sm:$0xff]
    %v1357 = vld [vmem:[%s929 + $0x229] sm:$0xff]
    %v1358 = vld [vmem:[%s929 + $0x231] sm:$0xff]
    %v1359 = vld [vmem:[%s929 + $0x241] sm:$0xff]
    %v1360 = vld [vmem:[%s929 + $0x249] sm:$0xff]
    %v1361 = vld [vmem:[%s929 + $0x259] sm:$0xff]
    %v1362 = vld [vmem:[%s929 + $0x261] sm:$0xff]
    %v1363 = vld [vmem:[%s929 + $0x271] sm:$0xff]
    %v1364 = vld [vmem:[%s929 + $0x279] sm:$0xff]
    %v1365 = vld [vmem:[%s929 + $0x289] sm:$0xff]
    %v1366 = vld [vmem:[%s929 + $0x291] sm:$0xff]
    %v1367 = vld [vmem:[%s929 + $0x2a1] sm:$0xff]
    %v1368 = vld [vmem:[%s929 + $0x2a9] sm:$0xff]
    %v1369 = vld [vmem:[%s929 + $0x2b9] sm:$0xff]
    %v1370 = vld [vmem:[%s929 + $0x2c1] sm:$0xff]
    %v1371 = vld [vmem:[%s929 + $0x2d1] sm:$0xff]
    %v1372 = vld [vmem:[%s929 + $0x2d9] sm:$0xff]
    %v1373 = vld [vmem:[%s929 + $0x2e9] sm:$0xff]
    %v1374 = vld [vmem:[%s929 + $0x2f1] sm:$0xff]
    %v1375 = vld [vmem:[%s929 + $0x301] sm:$0xff]
    %v1376 = vld [vmem:[%s929 + $0x309] sm:$0xff]
    %v1377 = vld [vmem:[%s929 + $0x319] sm:$0xff]
    %v1378 = vld [vmem:[%s929 + $0x321] sm:$0xff]
    %1443 = vrot.lane.b32.xlu0 %v1315, 16
    %v1444 = vpop.permute.xlu0 %1443
    %1445 = vrot.lane.b32.xlu0 %v1316, 16
    %v1446 = vpop.permute.xlu0 %1445
    %1447 = vrot.lane.b32.xlu0 %v1317, 16
    %v1448 = vpop.permute.xlu0 %1447
    %1449 = vrot.lane.b32.xlu0 %v1318, 16
    %v1450 = vpop.permute.xlu0 %1449
    %1451 = vrot.lane.b32.xlu0 %v1319, 16
    %v1452 = vpop.permute.xlu0 %1451
    %1453 = vrot.lane.b32.xlu0 %v1320, 16
    %v1454 = vpop.permute.xlu0 %1453
    %1455 = vrot.lane.b32.xlu0 %v1321, 16
    %v1456 = vpop.permute.xlu0 %1455
    %1457 = vrot.lane.b32.xlu0 %v1322, 16
    %v1458 = vpop.permute.xlu0 %1457
    %1459 = vrot.lane.b32.xlu0 %v1323, 16
    %v1460 = vpop.permute.xlu0 %1459
    %1461 = vrot.lane.b32.xlu0 %v1324, 16
    %v1462 = vpop.permute.xlu0 %1461
    %1463 = vrot.lane.b32.xlu0 %v1325, 16
    %v1464 = vpop.permute.xlu0 %1463
    %1465 = vrot.lane.b32.xlu0 %v1326, 16
    %v1466 = vpop.permute.xlu0 %1465
    %1467 = vrot.lane.b32.xlu0 %v1327, 16
    %v1468 = vpop.permute.xlu0 %1467
    %1469 = vrot.lane.b32.xlu0 %v1328, 16
    %v1470 = vpop.permute.xlu0 %1469
    %1471 = vrot.lane.b32.xlu0 %v1329, 16
    %v1472 = vpop.permute.xlu0 %1471
    %1473 = vrot.lane.b32.xlu0 %v1330, 16
    %v1474 = vpop.permute.xlu0 %1473
    %1475 = vrot.lane.b32.xlu0 %v1331, 16
    %v1476 = vpop.permute.xlu0 %1475
    %1477 = vrot.lane.b32.xlu0 %v1332, 16
    %v1478 = vpop.permute.xlu0 %1477
    %1479 = vrot.lane.b32.xlu0 %v1333, 16
    %v1480 = vpop.permute.xlu0 %1479
    %1481 = vrot.lane.b32.xlu0 %v1334, 16
    %v1482 = vpop.permute.xlu0 %1481
    %1483 = vrot.lane.b32.xlu0 %v1335, 16
    %v1484 = vpop.permute.xlu0 %1483
    %1485 = vrot.lane.b32.xlu0 %v1336, 16
    %v1486 = vpop.permute.xlu0 %1485
    %1487 = vrot.lane.b32.xlu0 %v1337, 16
    %v1488 = vpop.permute.xlu0 %1487
    %1489 = vrot.lane.b32.xlu0 %v1338, 16
    %v1490 = vpop.permute.xlu0 %1489
    %1491 = vrot.lane.b32.xlu0 %v1339, 16
    %v1492 = vpop.permute.xlu0 %1491
    %1493 = vrot.lane.b32.xlu0 %v1340, 16
    %v1494 = vpop.permute.xlu0 %1493
    %1495 = vrot.lane.b32.xlu0 %v1341, 16
    %v1496 = vpop.permute.xlu0 %1495
    %1497 = vrot.lane.b32.xlu0 %v1342, 16
    %v1498 = vpop.permute.xlu0 %1497
    %1499 = vrot.lane.b32.xlu0 %v1343, 16
    %v1500 = vpop.permute.xlu0 %1499
    %1501 = vrot.lane.b32.xlu0 %v1344, 16
    %v1502 = vpop.permute.xlu0 %1501
    %1503 = vrot.lane.b32.xlu0 %v1345, 16
    %v1504 = vpop.permute.xlu0 %1503
    %1505 = vrot.lane.b32.xlu0 %v1346, 16
    %v1506 = vpop.permute.xlu0 %1505
    %1507 = vrot.lane.b32.xlu0 %v1347, 16
    %v1508 = vpop.permute.xlu0 %1507
    %1509 = vrot.lane.b32.xlu0 %v1348, 16
    %v1510 = vpop.permute.xlu0 %1509
    %1511 = vrot.lane.b32.xlu0 %v1349, 16
    %v1512 = vpop.permute.xlu0 %1511
    %1513 = vrot.lane.b32.xlu0 %v1350, 16
    %v1514 = vpop.permute.xlu0 %1513
    %1515 = vrot.lane.b32.xlu0 %v1351, 16
    %v1516 = vpop.permute.xlu0 %1515
    %1517 = vrot.lane.b32.xlu0 %v1352, 16
    %v1518 = vpop.permute.xlu0 %1517
    %1519 = vrot.lane.b32.xlu0 %v1353, 16
    %v1520 = vpop.permute.xlu0 %1519
    %1521 = vrot.lane.b32.xlu0 %v1354, 16
    %v1522 = vpop.permute.xlu0 %1521
    %1523 = vrot.lane.b32.xlu0 %v1355, 16
    %v1524 = vpop.permute.xlu0 %1523
    %1525 = vrot.lane.b32.xlu0 %v1356, 16
    %v1526 = vpop.permute.xlu0 %1525
    %1527 = vrot.lane.b32.xlu0 %v1357, 16
    %v1528 = vpop.permute.xlu0 %1527
    %1529 = vrot.lane.b32.xlu0 %v1358, 16
    %v1530 = vpop.permute.xlu0 %1529
    %1531 = vrot.lane.b32.xlu0 %v1359, 16
    %v1532 = vpop.permute.xlu0 %1531
    %1533 = vrot.lane.b32.xlu0 %v1360, 16
    %v1534 = vpop.permute.xlu0 %1533
    %1535 = vrot.lane.b32.xlu0 %v1361, 16
    %v1536 = vpop.permute.xlu0 %1535
    %1537 = vrot.lane.b32.xlu0 %v1362, 16
    %v1538 = vpop.permute.xlu0 %1537
    %1539 = vrot.lane.b32.xlu0 %v1363, 16
    %v1540 = vpop.permute.xlu0 %1539
    %1541 = vrot.lane.b32.xlu0 %v1364, 16
    %v1542 = vpop.permute.xlu0 %1541
    %1543 = vrot.lane.b32.xlu0 %v1365, 16
    %v1544 = vpop.permute.xlu0 %1543
    %1545 = vrot.lane.b32.xlu0 %v1366, 16
    %v1546 = vpop.permute.xlu0 %1545
    %1547 = vrot.lane.b32.xlu0 %v1367, 16
    %v1548 = vpop.permute.xlu0 %1547
    %1549 = vrot.lane.b32.xlu0 %v1368, 16
    %v1550 = vpop.permute.xlu0 %1549
    %1551 = vrot.lane.b32.xlu0 %v1369, 16
    %v1552 = vpop.permute.xlu0 %1551
    %1553 = vrot.lane.b32.xlu0 %v1370, 16
    %v1554 = vpop.permute.xlu0 %1553
    %1555 = vrot.lane.b32.xlu0 %v1371, 16
    %v1556 = vpop.permute.xlu0 %1555
    %1557 = vrot.lane.b32.xlu0 %v1372, 16
    %v1558 = vpop.permute.xlu0 %1557
    %1559 = vrot.lane.b32.xlu0 %v1373, 16
    %v1560 = vpop.permute.xlu0 %1559
    %1561 = vrot.lane.b32.xlu0 %v1374, 16
    %v1562 = vpop.permute.xlu0 %1561
    %1563 = vrot.lane.b32.xlu0 %v1375, 16
    %v1564 = vpop.permute.xlu0 %1563
    %1565 = vrot.lane.b32.xlu0 %v1376, 16
    %v1566 = vpop.permute.xlu0 %1565
    %1567 = vrot.lane.b32.xlu0 %v1377, 16
    %v1568 = vpop.permute.xlu0 %1567
    %1569 = vrot.lane.b32.xlu0 %v1378, 16
    %v1570 = vpop.permute.xlu0 %1569
    %vm1635 = vcmask 162944
    %1636 = vst.msk [vmem:[#allocation2] sm:$0xff] %vm1635, %v1444
    %1637 = vst.msk [vmem:[#allocation2 + $0x8] sm:$0xff] %vm1635, %v1446
    %1638 = vst.msk [vmem:[#allocation2 + $0x10] sm:$0xff] %vm1635, %v1448
    %1639 = vst.msk [vmem:[#allocation2 + $0x18] sm:$0xff] %vm1635, %v1450
    %1640 = vst.msk [vmem:[#allocation2 + $0x20] sm:$0xff] %vm1635, %v1452
    %1641 = vst.msk [vmem:[#allocation2 + $0x28] sm:$0xff] %vm1635, %v1454
    %1642 = vst.msk [vmem:[#allocation2 + $0x30] sm:$0xff] %vm1635, %v1456
    %1643 = vst.msk [vmem:[#allocation2 + $0x38] sm:$0xff] %vm1635, %v1458
    %1644 = vst.msk [vmem:[#allocation2 + $0x40] sm:$0xff] %vm1635, %v1460
    %1645 = vst.msk [vmem:[#allocation2 + $0x48] sm:$0xff] %vm1635, %v1462
    %1646 = vst.msk [vmem:[#allocation2 + $0x50] sm:$0xff] %vm1635, %v1464
    %1647 = vst.msk [vmem:[#allocation2 + $0x58] sm:$0xff] %vm1635, %v1466
    %1648 = vst.msk [vmem:[#allocation2 + $0x60] sm:$0xff] %vm1635, %v1468
    %1649 = vst.msk [vmem:[#allocation2 + $0x68] sm:$0xff] %vm1635, %v1470
    %1650 = vst.msk [vmem:[#allocation2 + $0x70] sm:$0xff] %vm1635, %v1472
    %1651 = vst.msk [vmem:[#allocation2 + $0x78] sm:$0xff] %vm1635, %v1474
    %1652 = vst.msk [vmem:[#allocation2 + $0x80] sm:$0xff] %vm1635, %v1476
    %1653 = vst.msk [vmem:[#allocation2 + $0x88] sm:$0xff] %vm1635, %v1478
    %1654 = vst.msk [vmem:[#allocation2 + $0x90] sm:$0xff] %vm1635, %v1480
    %1655 = vst.msk [vmem:[#allocation2 + $0x98] sm:$0xff] %vm1635, %v1482
    %1656 = vst.msk [vmem:[#allocation2 + $0xa0] sm:$0xff] %vm1635, %v1484
    %1657 = vst.msk [vmem:[#allocation2 + $0xa8] sm:$0xff] %vm1635, %v1486
    %1658 = vst.msk [vmem:[#allocation2 + $0xb0] sm:$0xff] %vm1635, %v1488
    %1659 = vst.msk [vmem:[#allocation2 + $0xb8] sm:$0xff] %vm1635, %v1490
    %1660 = vst.msk [vmem:[#allocation2 + $0xc0] sm:$0xff] %vm1635, %v1492
    %1661 = vst.msk [vmem:[#allocation2 + $0xc8] sm:$0xff] %vm1635, %v1494
    %1662 = vst.msk [vmem:[#allocation2 + $0xd0] sm:$0xff] %vm1635, %v1496
    %1663 = vst.msk [vmem:[#allocation2 + $0xd8] sm:$0xff] %vm1635, %v1498
    %1664 = vst.msk [vmem:[#allocation2 + $0xe0] sm:$0xff] %vm1635, %v1500
    %1665 = vst.msk [vmem:[#allocation2 + $0xe8] sm:$0xff] %vm1635, %v1502
    %1666 = vst.msk [vmem:[#allocation2 + $0xf0] sm:$0xff] %vm1635, %v1504
    %1667 = vst.msk [vmem:[#allocation2 + $0xf8] sm:$0xff] %vm1635, %v1506
    %1668 = vst.msk [vmem:[#allocation2 + $0x100] sm:$0xff] %vm1635, %v1508
    %1669 = vst.msk [vmem:[#allocation2 + $0x108] sm:$0xff] %vm1635, %v1510
    %1670 = vst.msk [vmem:[#allocation2 + $0x110] sm:$0xff] %vm1635, %v1512
    %1671 = vst.msk [vmem:[#allocation2 + $0x118] sm:$0xff] %vm1635, %v1514
    %1672 = vst.msk [vmem:[#allocation2 + $0x120] sm:$0xff] %vm1635, %v1516
    %1673 = vst.msk [vmem:[#allocation2 + $0x128] sm:$0xff] %vm1635, %v1518
    %1674 = vst.msk [vmem:[#allocation2 + $0x130] sm:$0xff] %vm1635, %v1520
    %1675 = vst.msk [vmem:[#allocation2 + $0x138] sm:$0xff] %vm1635, %v1522
    %1676 = vst.msk [vmem:[#allocation2 + $0x140] sm:$0xff] %vm1635, %v1524
    %1677 = vst.msk [vmem:[#allocation2 + $0x148] sm:$0xff] %vm1635, %v1526
    %1678 = vst.msk [vmem:[#allocation2 + $0x150] sm:$0xff] %vm1635, %v1528
    %1679 = vst.msk [vmem:[#allocation2 + $0x158] sm:$0xff] %vm1635, %v1530
    %1680 = vst.msk [vmem:[#allocation2 + $0x160] sm:$0xff] %vm1635, %v1532
    %1681 = vst.msk [vmem:[#allocation2 + $0x168] sm:$0xff] %vm1635, %v1534
    %1682 = vst.msk [vmem:[#allocation2 + $0x170] sm:$0xff] %vm1635, %v1536
    %1683 = vst.msk [vmem:[#allocation2 + $0x178] sm:$0xff] %vm1635, %v1538
    %1684 = vst.msk [vmem:[#allocation2 + $0x180] sm:$0xff] %vm1635, %v1540
    %1685 = vst.msk [vmem:[#allocation2 + $0x188] sm:$0xff] %vm1635, %v1542
    %1686 = vst.msk [vmem:[#allocation2 + $0x190] sm:$0xff] %vm1635, %v1544
    %1687 = vst.msk [vmem:[#allocation2 + $0x198] sm:$0xff] %vm1635, %v1546
    %1688 = vst.msk [vmem:[#allocation2 + $0x1a0] sm:$0xff] %vm1635, %v1548
    %1689 = vst.msk [vmem:[#allocation2 + $0x1a8] sm:$0xff] %vm1635, %v1550
    %1690 = vst.msk [vmem:[#allocation2 + $0x1b0] sm:$0xff] %vm1635, %v1552
    %1691 = vst.msk [vmem:[#allocation2 + $0x1b8] sm:$0xff] %vm1635, %v1554
    %1692 = vst.msk [vmem:[#allocation2 + $0x1c0] sm:$0xff] %vm1635, %v1556
    %1693 = vst.msk [vmem:[#allocation2 + $0x1c8] sm:$0xff] %vm1635, %v1558
    %1694 = vst.msk [vmem:[#allocation2 + $0x1d0] sm:$0xff] %vm1635, %v1560
    %1695 = vst.msk [vmem:[#allocation2 + $0x1d8] sm:$0xff] %vm1635, %v1562
    %1696 = vst.msk [vmem:[#allocation2 + $0x1e0] sm:$0xff] %vm1635, %v1564
    %1697 = vst.msk [vmem:[#allocation2 + $0x1e8] sm:$0xff] %vm1635, %v1566
    %1698 = vst.msk [vmem:[#allocation2 + $0x1f0] sm:$0xff] %vm1635, %v1568
    %1699 = vst.msk [vmem:[#allocation2 + $0x1f8] sm:$0xff] %vm1635, %v1570
    %v1700 = vld [vmem:[%s929 + $0x2] sm:$0xff]
    %v1701 = vld [vmem:[%s929 + $0xa] sm:$0xff]
    %v1702 = vld [vmem:[%s929 + $0x1a] sm:$0xff]
    %v1703 = vld [vmem:[%s929 + $0x22] sm:$0xff]
    %v1704 = vld [vmem:[%s929 + $0x32] sm:$0xff]
    %v1705 = vld [vmem:[%s929 + $0x3a] sm:$0xff]
    %v1706 = vld [vmem:[%s929 + $0x4a] sm:$0xff]
    %v1707 = vld [vmem:[%s929 + $0x52] sm:$0xff]
    %v1708 = vld [vmem:[%s929 + $0x62] sm:$0xff]
    %v1709 = vld [vmem:[%s929 + $0x6a] sm:$0xff]
    %v1710 = vld [vmem:[%s929 + $0x7a] sm:$0xff]
    %v1711 = vld [vmem:[%s929 + $0x82] sm:$0xff]
    %v1712 = vld [vmem:[%s929 + $0x92] sm:$0xff]
    %v1713 = vld [vmem:[%s929 + $0x9a] sm:$0xff]
    %v1714 = vld [vmem:[%s929 + $0xaa] sm:$0xff]
    %v1715 = vld [vmem:[%s929 + $0xb2] sm:$0xff]
    %v1716 = vld [vmem:[%s929 + $0xc2] sm:$0xff]
    %v1717 = vld [vmem:[%s929 + $0xca] sm:$0xff]
    %v1718 = vld [vmem:[%s929 + $0xda] sm:$0xff]
    %v1719 = vld [vmem:[%s929 + $0xe2] sm:$0xff]
    %v1720 = vld [vmem:[%s929 + $0xf2] sm:$0xff]
    %v1721 = vld [vmem:[%s929 + $0xfa] sm:$0xff]
    %v1722 = vld [vmem:[%s929 + $0x10a] sm:$0xff]
    %v1723 = vld [vmem:[%s929 + $0x112] sm:$0xff]
    %v1724 = vld [vmem:[%s929 + $0x122] sm:$0xff]
    %v1725 = vld [vmem:[%s929 + $0x12a] sm:$0xff]
    %v1726 = vld [vmem:[%s929 + $0x13a] sm:$0xff]
    %v1727 = vld [vmem:[%s929 + $0x142] sm:$0xff]
    %v1728 = vld [vmem:[%s929 + $0x152] sm:$0xff]
    %v1729 = vld [vmem:[%s929 + $0x15a] sm:$0xff]
    %v1730 = vld [vmem:[%s929 + $0x16a] sm:$0xff]
    %v1731 = vld [vmem:[%s929 + $0x172] sm:$0xff]
    %v1732 = vld [vmem:[%s929 + $0x1b2] sm:$0xff]
    %v1733 = vld [vmem:[%s929 + $0x1ba] sm:$0xff]
    %v1734 = vld [vmem:[%s929 + $0x1ca] sm:$0xff]
    %v1735 = vld [vmem:[%s929 + $0x1d2] sm:$0xff]
    %v1736 = vld [vmem:[%s929 + $0x1e2] sm:$0xff]
    %v1737 = vld [vmem:[%s929 + $0x1ea] sm:$0xff]
    %v1738 = vld [vmem:[%s929 + $0x1fa] sm:$0xff]
    %v1739 = vld [vmem:[%s929 + $0x202] sm:$0xff]
    %v1740 = vld [vmem:[%s929 + $0x212] sm:$0xff]
    %v1741 = vld [vmem:[%s929 + $0x21a] sm:$0xff]
    %v1742 = vld [vmem:[%s929 + $0x22a] sm:$0xff]
    %v1743 = vld [vmem:[%s929 + $0x232] sm:$0xff]
    %v1744 = vld [vmem:[%s929 + $0x242] sm:$0xff]
    %v1745 = vld [vmem:[%s929 + $0x24a] sm:$0xff]
    %v1746 = vld [vmem:[%s929 + $0x25a] sm:$0xff]
    %v1747 = vld [vmem:[%s929 + $0x262] sm:$0xff]
    %v1748 = vld [vmem:[%s929 + $0x272] sm:$0xff]
    %v1749 = vld [vmem:[%s929 + $0x27a] sm:$0xff]
    %v1750 = vld [vmem:[%s929 + $0x28a] sm:$0xff]
    %v1751 = vld [vmem:[%s929 + $0x292] sm:$0xff]
    %v1752 = vld [vmem:[%s929 + $0x2a2] sm:$0xff]
    %v1753 = vld [vmem:[%s929 + $0x2aa] sm:$0xff]
    %v1754 = vld [vmem:[%s929 + $0x2ba] sm:$0xff]
    %v1755 = vld [vmem:[%s929 + $0x2c2] sm:$0xff]
    %v1756 = vld [vmem:[%s929 + $0x2d2] sm:$0xff]
    %v1757 = vld [vmem:[%s929 + $0x2da] sm:$0xff]
    %v1758 = vld [vmem:[%s929 + $0x2ea] sm:$0xff]
    %v1759 = vld [vmem:[%s929 + $0x2f2] sm:$0xff]
    %v1760 = vld [vmem:[%s929 + $0x302] sm:$0xff]
    %v1761 = vld [vmem:[%s929 + $0x30a] sm:$0xff]
    %v1762 = vld [vmem:[%s929 + $0x31a] sm:$0xff]
    %v1763 = vld [vmem:[%s929 + $0x322] sm:$0xff]
    %1828 = vrot.lane.b32.xlu0 %v1700, 20
    %v1829 = vpop.permute.xlu0 %1828
    %1830 = vrot.lane.b32.xlu0 %v1701, 20
    %v1831 = vpop.permute.xlu0 %1830
    %1832 = vrot.lane.b32.xlu0 %v1702, 20
    %v1833 = vpop.permute.xlu0 %1832
    %1834 = vrot.lane.b32.xlu0 %v1703, 20
    %v1835 = vpop.permute.xlu0 %1834
    %1836 = vrot.lane.b32.xlu0 %v1704, 20
    %v1837 = vpop.permute.xlu0 %1836
    %1838 = vrot.lane.b32.xlu0 %v1705, 20
    %v1839 = vpop.permute.xlu0 %1838
    %1840 = vrot.lane.b32.xlu0 %v1706, 20
    %v1841 = vpop.permute.xlu0 %1840
    %1842 = vrot.lane.b32.xlu0 %v1707, 20
    %v1843 = vpop.permute.xlu0 %1842
    %1844 = vrot.lane.b32.xlu0 %v1708, 20
    %v1845 = vpop.permute.xlu0 %1844
    %1846 = vrot.lane.b32.xlu0 %v1709, 20
    %v1847 = vpop.permute.xlu0 %1846
    %1848 = vrot.lane.b32.xlu0 %v1710, 20
    %v1849 = vpop.permute.xlu0 %1848
    %1850 = vrot.lane.b32.xlu0 %v1711, 20
    %v1851 = vpop.permute.xlu0 %1850
    %1852 = vrot.lane.b32.xlu0 %v1712, 20
    %v1853 = vpop.permute.xlu0 %1852
    %1854 = vrot.lane.b32.xlu0 %v1713, 20
    %v1855 = vpop.permute.xlu0 %1854
    %1856 = vrot.lane.b32.xlu0 %v1714, 20
    %v1857 = vpop.permute.xlu0 %1856
    %1858 = vrot.lane.b32.xlu0 %v1715, 20
    %v1859 = vpop.permute.xlu0 %1858
    %1860 = vrot.lane.b32.xlu0 %v1716, 20
    %v1861 = vpop.permute.xlu0 %1860
    %1862 = vrot.lane.b32.xlu0 %v1717, 20
    %v1863 = vpop.permute.xlu0 %1862
    %1864 = vrot.lane.b32.xlu0 %v1718, 20
    %v1865 = vpop.permute.xlu0 %1864
    %1866 = vrot.lane.b32.xlu0 %v1719, 20
    %v1867 = vpop.permute.xlu0 %1866
    %1868 = vrot.lane.b32.xlu0 %v1720, 20
    %v1869 = vpop.permute.xlu0 %1868
    %1870 = vrot.lane.b32.xlu0 %v1721, 20
    %v1871 = vpop.permute.xlu0 %1870
    %1872 = vrot.lane.b32.xlu0 %v1722, 20
    %v1873 = vpop.permute.xlu0 %1872
    %1874 = vrot.lane.b32.xlu0 %v1723, 20
    %v1875 = vpop.permute.xlu0 %1874
    %1876 = vrot.lane.b32.xlu0 %v1724, 20
    %v1877 = vpop.permute.xlu0 %1876
    %1878 = vrot.lane.b32.xlu0 %v1725, 20
    %v1879 = vpop.permute.xlu0 %1878
    %1880 = vrot.lane.b32.xlu0 %v1726, 20
    %v1881 = vpop.permute.xlu0 %1880
    %1882 = vrot.lane.b32.xlu0 %v1727, 20
    %v1883 = vpop.permute.xlu0 %1882
    %1884 = vrot.lane.b32.xlu0 %v1728, 20
    %v1885 = vpop.permute.xlu0 %1884
    %1886 = vrot.lane.b32.xlu0 %v1729, 20
    %v1887 = vpop.permute.xlu0 %1886
    %1888 = vrot.lane.b32.xlu0 %v1730, 20
    %v1889 = vpop.permute.xlu0 %1888
    %1890 = vrot.lane.b32.xlu0 %v1731, 20
    %v1891 = vpop.permute.xlu0 %1890
    %1892 = vrot.lane.b32.xlu0 %v1732, 20
    %v1893 = vpop.permute.xlu0 %1892
    %1894 = vrot.lane.b32.xlu0 %v1733, 20
    %v1895 = vpop.permute.xlu0 %1894
    %1896 = vrot.lane.b32.xlu0 %v1734, 20
    %v1897 = vpop.permute.xlu0 %1896
    %1898 = vrot.lane.b32.xlu0 %v1735, 20
    %v1899 = vpop.permute.xlu0 %1898
    %1900 = vrot.lane.b32.xlu0 %v1736, 20
    %v1901 = vpop.permute.xlu0 %1900
    %1902 = vrot.lane.b32.xlu0 %v1737, 20
    %v1903 = vpop.permute.xlu0 %1902
    %1904 = vrot.lane.b32.xlu0 %v1738, 20
    %v1905 = vpop.permute.xlu0 %1904
    %1906 = vrot.lane.b32.xlu0 %v1739, 20
    %v1907 = vpop.permute.xlu0 %1906
    %1908 = vrot.lane.b32.xlu0 %v1740, 20
    %v1909 = vpop.permute.xlu0 %1908
    %1910 = vrot.lane.b32.xlu0 %v1741, 20
    %v1911 = vpop.permute.xlu0 %1910
    %1912 = vrot.lane.b32.xlu0 %v1742, 20
    %v1913 = vpop.permute.xlu0 %1912
    %1914 = vrot.lane.b32.xlu0 %v1743, 20
    %v1915 = vpop.permute.xlu0 %1914
    %1916 = vrot.lane.b32.xlu0 %v1744, 20
    %v1917 = vpop.permute.xlu0 %1916
    %1918 = vrot.lane.b32.xlu0 %v1745, 20
    %v1919 = vpop.permute.xlu0 %1918
    %1920 = vrot.lane.b32.xlu0 %v1746, 20
    %v1921 = vpop.permute.xlu0 %1920
    %1922 = vrot.lane.b32.xlu0 %v1747, 20
    %v1923 = vpop.permute.xlu0 %1922
    %1924 = vrot.lane.b32.xlu0 %v1748, 20
    %v1925 = vpop.permute.xlu0 %1924
    %1926 = vrot.lane.b32.xlu0 %v1749, 20
    %v1927 = vpop.permute.xlu0 %1926
    %1928 = vrot.lane.b32.xlu0 %v1750, 20
    %v1929 = vpop.permute.xlu0 %1928
    %1930 = vrot.lane.b32.xlu0 %v1751, 20
    %v1931 = vpop.permute.xlu0 %1930
    %1932 = vrot.lane.b32.xlu0 %v1752, 20
    %v1933 = vpop.permute.xlu0 %1932
    %1934 = vrot.lane.b32.xlu0 %v1753, 20
    %v1935 = vpop.permute.xlu0 %1934
    %1936 = vrot.lane.b32.xlu0 %v1754, 20
    %v1937 = vpop.permute.xlu0 %1936
    %1938 = vrot.lane.b32.xlu0 %v1755, 20
    %v1939 = vpop.permute.xlu0 %1938
    %1940 = vrot.lane.b32.xlu0 %v1756, 20
    %v1941 = vpop.permute.xlu0 %1940
    %1942 = vrot.lane.b32.xlu0 %v1757, 20
    %v1943 = vpop.permute.xlu0 %1942
    %1944 = vrot.lane.b32.xlu0 %v1758, 20
    %v1945 = vpop.permute.xlu0 %1944
    %1946 = vrot.lane.b32.xlu0 %v1759, 20
    %v1947 = vpop.permute.xlu0 %1946
    %1948 = vrot.lane.b32.xlu0 %v1760, 20
    %v1949 = vpop.permute.xlu0 %1948
    %1950 = vrot.lane.b32.xlu0 %v1761, 20
    %v1951 = vpop.permute.xlu0 %1950
    %1952 = vrot.lane.b32.xlu0 %v1762, 20
    %v1953 = vpop.permute.xlu0 %1952
    %1954 = vrot.lane.b32.xlu0 %v1763, 20
    %v1955 = vpop.permute.xlu0 %1954
    %vm2020 = vcmask 195744
    %2021 = vst.msk [vmem:[#allocation2] sm:$0xff] %vm2020, %v1829
    %2022 = vst.msk [vmem:[#allocation2 + $0x8] sm:$0xff] %vm2020, %v1831
    %2023 = vst.msk [vmem:[#allocation2 + $0x10] sm:$0xff] %vm2020, %v1833
    %2024 = vst.msk [vmem:[#allocation2 + $0x18] sm:$0xff] %vm2020, %v1835
    %2025 = vst.msk [vmem:[#allocation2 + $0x20] sm:$0xff] %vm2020, %v1837
    %2026 = vst.msk [vmem:[#allocation2 + $0x28] sm:$0xff] %vm2020, %v1839
    %2027 = vst.msk [vmem:[#allocation2 + $0x30] sm:$0xff] %vm2020, %v1841
    %2028 = vst.msk [vmem:[#allocation2 + $0x38] sm:$0xff] %vm2020, %v1843
    %2029 = vst.msk [vmem:[#allocation2 + $0x40] sm:$0xff] %vm2020, %v1845
    %2030 = vst.msk [vmem:[#allocation2 + $0x48] sm:$0xff] %vm2020, %v1847
    %2031 = vst.msk [vmem:[#allocation2 + $0x50] sm:$0xff] %vm2020, %v1849
    %2032 = vst.msk [vmem:[#allocation2 + $0x58] sm:$0xff] %vm2020, %v1851
    %2033 = vst.msk [vmem:[#allocation2 + $0x60] sm:$0xff] %vm2020, %v1853
    %2034 = vst.msk [vmem:[#allocation2 + $0x68] sm:$0xff] %vm2020, %v1855
    %2035 = vst.msk [vmem:[#allocation2 + $0x70] sm:$0xff] %vm2020, %v1857
    %2036 = vst.msk [vmem:[#allocation2 + $0x78] sm:$0xff] %vm2020, %v1859
    %2037 = vst.msk [vmem:[#allocation2 + $0x80] sm:$0xff] %vm2020, %v1861
    %2038 = vst.msk [vmem:[#allocation2 + $0x88] sm:$0xff] %vm2020, %v1863
    %2039 = vst.msk [vmem:[#allocation2 + $0x90] sm:$0xff] %vm2020, %v1865
    %2040 = vst.msk [vmem:[#allocation2 + $0x98] sm:$0xff] %vm2020, %v1867
    %2041 = vst.msk [vmem:[#allocation2 + $0xa0] sm:$0xff] %vm2020, %v1869
    %2042 = vst.msk [vmem:[#allocation2 + $0xa8] sm:$0xff] %vm2020, %v1871
    %2043 = vst.msk [vmem:[#allocation2 + $0xb0] sm:$0xff] %vm2020, %v1873
    %2044 = vst.msk [vmem:[#allocation2 + $0xb8] sm:$0xff] %vm2020, %v1875
    %2045 = vst.msk [vmem:[#allocation2 + $0xc0] sm:$0xff] %vm2020, %v1877
    %2046 = vst.msk [vmem:[#allocation2 + $0xc8] sm:$0xff] %vm2020, %v1879
    %2047 = vst.msk [vmem:[#allocation2 + $0xd0] sm:$0xff] %vm2020, %v1881
    %2048 = vst.msk [vmem:[#allocation2 + $0xd8] sm:$0xff] %vm2020, %v1883
    %2049 = vst.msk [vmem:[#allocation2 + $0xe0] sm:$0xff] %vm2020, %v1885
    %2050 = vst.msk [vmem:[#allocation2 + $0xe8] sm:$0xff] %vm2020, %v1887
    %2051 = vst.msk [vmem:[#allocation2 + $0xf0] sm:$0xff] %vm2020, %v1889
    %2052 = vst.msk [vmem:[#allocation2 + $0xf8] sm:$0xff] %vm2020, %v1891
    %2053 = vst.msk [vmem:[#allocation2 + $0x100] sm:$0xff] %vm2020, %v1893
    %2054 = vst.msk [vmem:[#allocation2 + $0x108] sm:$0xff] %vm2020, %v1895
    %2055 = vst.msk [vmem:[#allocation2 + $0x110] sm:$0xff] %vm2020, %v1897
    %2056 = vst.msk [vmem:[#allocation2 + $0x118] sm:$0xff] %vm2020, %v1899
    %2057 = vst.msk [vmem:[#allocation2 + $0x120] sm:$0xff] %vm2020, %v1901
    %2058 = vst.msk [vmem:[#allocation2 + $0x128] sm:$0xff] %vm2020, %v1903
    %2059 = vst.msk [vmem:[#allocation2 + $0x130] sm:$0xff] %vm2020, %v1905
    %2060 = vst.msk [vmem:[#allocation2 + $0x138] sm:$0xff] %vm2020, %v1907
    %2061 = vst.msk [vmem:[#allocation2 + $0x140] sm:$0xff] %vm2020, %v1909
    %2062 = vst.msk [vmem:[#allocation2 + $0x148] sm:$0xff] %vm2020, %v1911
    %2063 = vst.msk [vmem:[#allocation2 + $0x150] sm:$0xff] %vm2020, %v1913
    %2064 = vst.msk [vmem:[#allocation2 + $0x158] sm:$0xff] %vm2020, %v1915
    %2065 = vst.msk [vmem:[#allocation2 + $0x160] sm:$0xff] %vm2020, %v1917
    %2066 = vst.msk [vmem:[#allocation2 + $0x168] sm:$0xff] %vm2020, %v1919
    %2067 = vst.msk [vmem:[#allocation2 + $0x170] sm:$0xff] %vm2020, %v1921
    %2068 = vst.msk [vmem:[#allocation2 + $0x178] sm:$0xff] %vm2020, %v1923
    %2069 = vst.msk [vmem:[#allocation2 + $0x180] sm:$0xff] %vm2020, %v1925
    %2070 = vst.msk [vmem:[#allocation2 + $0x188] sm:$0xff] %vm2020, %v1927
    %2071 = vst.msk [vmem:[#allocation2 + $0x190] sm:$0xff] %vm2020, %v1929
    %2072 = vst.msk [vmem:[#allocation2 + $0x198] sm:$0xff] %vm2020, %v1931
    %2073 = vst.msk [vmem:[#allocation2 + $0x1a0] sm:$0xff] %vm2020, %v1933
    %2074 = vst.msk [vmem:[#allocation2 + $0x1a8] sm:$0xff] %vm2020, %v1935
    %2075 = vst.msk [vmem:[#allocation2 + $0x1b0] sm:$0xff] %vm2020, %v1937
    %2076 = vst.msk [vmem:[#allocation2 + $0x1b8] sm:$0xff] %vm2020, %v1939
    %2077 = vst.msk [vmem:[#allocation2 + $0x1c0] sm:$0xff] %vm2020, %v1941
    %2078 = vst.msk [vmem:[#allocation2 + $0x1c8] sm:$0xff] %vm2020, %v1943
    %2079 = vst.msk [vmem:[#allocation2 + $0x1d0] sm:$0xff] %vm2020, %v1945
    %2080 = vst.msk [vmem:[#allocation2 + $0x1d8] sm:$0xff] %vm2020, %v1947
    %2081 = vst.msk [vmem:[#allocation2 + $0x1e0] sm:$0xff] %vm2020, %v1949
    %2082 = vst.msk [vmem:[#allocation2 + $0x1e8] sm:$0xff] %vm2020, %v1951
    %2083 = vst.msk [vmem:[#allocation2 + $0x1f0] sm:$0xff] %vm2020, %v1953
    %2084 = vst.msk [vmem:[#allocation2 + $0x1f8] sm:$0xff] %vm2020, %v1955
    %s2085 = scalar_lea.vmem %s0, 48
    %v2086 = vld [vmem:[%s2085] sm:$0xff]
    %v2087 = vld [vmem:[%s2085 + $0x8] sm:$0xff]
    %v2088 = vld [vmem:[%s2085 + $0x18] sm:$0xff]
    %v2089 = vld [vmem:[%s2085 + $0x20] sm:$0xff]
    %v2090 = vld [vmem:[%s2085 + $0x30] sm:$0xff]
    %v2091 = vld [vmem:[%s2085 + $0x38] sm:$0xff]
    %v2092 = vld [vmem:[%s2085 + $0x48] sm:$0xff]
    %v2093 = vld [vmem:[%s2085 + $0x50] sm:$0xff]
    %v2094 = vld [vmem:[%s2085 + $0x60] sm:$0xff]
    %v2095 = vld [vmem:[%s2085 + $0x68] sm:$0xff]
    %v2096 = vld [vmem:[%s2085 + $0x78] sm:$0xff]
    %v2097 = vld [vmem:[%s2085 + $0x80] sm:$0xff]
    %v2098 = vld [vmem:[%s2085 + $0x90] sm:$0xff]
    %v2099 = vld [vmem:[%s2085 + $0x98] sm:$0xff]
    %v2100 = vld [vmem:[%s2085 + $0xa8] sm:$0xff]
    %v2101 = vld [vmem:[%s2085 + $0xb0] sm:$0xff]
    %v2102 = vld [vmem:[%s2085 + $0xc0] sm:$0xff]
    %v2103 = vld [vmem:[%s2085 + $0xc8] sm:$0xff]
    %v2104 = vld [vmem:[%s2085 + $0xd8] sm:$0xff]
    %v2105 = vld [vmem:[%s2085 + $0xe0] sm:$0xff]
    %v2106 = vld [vmem:[%s2085 + $0xf0] sm:$0xff]
    %v2107 = vld [vmem:[%s2085 + $0xf8] sm:$0xff]
    %v2108 = vld [vmem:[%s2085 + $0x108] sm:$0xff]
    %v2109 = vld [vmem:[%s2085 + $0x110] sm:$0xff]
    %v2110 = vld [vmem:[%s2085 + $0x120] sm:$0xff]
    %v2111 = vld [vmem:[%s2085 + $0x128] sm:$0xff]
    %v2112 = vld [vmem:[%s2085 + $0x138] sm:$0xff]
    %v2113 = vld [vmem:[%s2085 + $0x140] sm:$0xff]
    %v2114 = vld [vmem:[%s2085 + $0x150] sm:$0xff]
    %v2115 = vld [vmem:[%s2085 + $0x158] sm:$0xff]
    %v2116 = vld [vmem:[%s2085 + $0x168] sm:$0xff]
    %v2117 = vld [vmem:[%s2085 + $0x170] sm:$0xff]
    %v2118 = vld [vmem:[%s2085 + $0x1b0] sm:$0xff]
    %v2119 = vld [vmem:[%s2085 + $0x1b8] sm:$0xff]
    %v2120 = vld [vmem:[%s2085 + $0x1c8] sm:$0xff]
    %v2121 = vld [vmem:[%s2085 + $0x1d0] sm:$0xff]
    %v2122 = vld [vmem:[%s2085 + $0x1e0] sm:$0xff]
    %v2123 = vld [vmem:[%s2085 + $0x1e8] sm:$0xff]
    %v2124 = vld [vmem:[%s2085 + $0x1f8] sm:$0xff]
    %v2125 = vld [vmem:[%s2085 + $0x200] sm:$0xff]
    %v2126 = vld [vmem:[%s2085 + $0x210] sm:$0xff]
    %v2127 = vld [vmem:[%s2085 + $0x218] sm:$0xff]
    %v2128 = vld [vmem:[%s2085 + $0x228] sm:$0xff]
    %v2129 = vld [vmem:[%s2085 + $0x230] sm:$0xff]
    %v2130 = vld [vmem:[%s2085 + $0x240] sm:$0xff]
    %v2131 = vld [vmem:[%s2085 + $0x248] sm:$0xff]
    %v2132 = vld [vmem:[%s2085 + $0x258] sm:$0xff]
    %v2133 = vld [vmem:[%s2085 + $0x260] sm:$0xff]
    %v2134 = vld [vmem:[%s2085 + $0x270] sm:$0xff]
    %v2135 = vld [vmem:[%s2085 + $0x278] sm:$0xff]
    %v2136 = vld [vmem:[%s2085 + $0x288] sm:$0xff]
    %v2137 = vld [vmem:[%s2085 + $0x290] sm:$0xff]
    %v2138 = vld [vmem:[%s2085 + $0x2a0] sm:$0xff]
    %v2139 = vld [vmem:[%s2085 + $0x2a8] sm:$0xff]
    %v2140 = vld [vmem:[%s2085 + $0x2b8] sm:$0xff]
    %v2141 = vld [vmem:[%s2085 + $0x2c0] sm:$0xff]
    %v2142 = vld [vmem:[%s2085 + $0x2d0] sm:$0xff]
    %v2143 = vld [vmem:[%s2085 + $0x2d8] sm:$0xff]
    %v2144 = vld [vmem:[%s2085 + $0x2e8] sm:$0xff]
    %v2145 = vld [vmem:[%s2085 + $0x2f0] sm:$0xff]
    %v2146 = vld [vmem:[%s2085 + $0x300] sm:$0xff]
    %v2147 = vld [vmem:[%s2085 + $0x308] sm:$0xff]
    %v2148 = vld [vmem:[%s2085 + $0x318] sm:$0xff]
    %v2149 = vld [vmem:[%s2085 + $0x320] sm:$0xff]
    %2214 = vrot.lane.b32.xlu0 %v2086, 24
    %v2215 = vpop.permute.xlu0 %2214
    %2216 = vrot.lane.b32.xlu0 %v2087, 24
    %v2217 = vpop.permute.xlu0 %2216
    %2218 = vrot.lane.b32.xlu0 %v2088, 24
    %v2219 = vpop.permute.xlu0 %2218
    %2220 = vrot.lane.b32.xlu0 %v2089, 24
    %v2221 = vpop.permute.xlu0 %2220
    %2222 = vrot.lane.b32.xlu0 %v2090, 24
    %v2223 = vpop.permute.xlu0 %2222
    %2224 = vrot.lane.b32.xlu0 %v2091, 24
    %v2225 = vpop.permute.xlu0 %2224
    %2226 = vrot.lane.b32.xlu0 %v2092, 24
    %v2227 = vpop.permute.xlu0 %2226
    %2228 = vrot.lane.b32.xlu0 %v2093, 24
    %v2229 = vpop.permute.xlu0 %2228
    %2230 = vrot.lane.b32.xlu0 %v2094, 24
    %v2231 = vpop.permute.xlu0 %2230
    %2232 = vrot.lane.b32.xlu0 %v2095, 24
    %v2233 = vpop.permute.xlu0 %2232
    %2234 = vrot.lane.b32.xlu0 %v2096, 24
    %v2235 = vpop.permute.xlu0 %2234
    %2236 = vrot.lane.b32.xlu0 %v2097, 24
    %v2237 = vpop.permute.xlu0 %2236
    %2238 = vrot.lane.b32.xlu0 %v2098, 24
    %v2239 = vpop.permute.xlu0 %2238
    %2240 = vrot.lane.b32.xlu0 %v2099, 24
    %v2241 = vpop.permute.xlu0 %2240
    %2242 = vrot.lane.b32.xlu0 %v2100, 24
    %v2243 = vpop.permute.xlu0 %2242
    %2244 = vrot.lane.b32.xlu0 %v2101, 24
    %v2245 = vpop.permute.xlu0 %2244
    %2246 = vrot.lane.b32.xlu0 %v2102, 24
    %v2247 = vpop.permute.xlu0 %2246
    %2248 = vrot.lane.b32.xlu0 %v2103, 24
    %v2249 = vpop.permute.xlu0 %2248
    %2250 = vrot.lane.b32.xlu0 %v2104, 24
    %v2251 = vpop.permute.xlu0 %2250
    %2252 = vrot.lane.b32.xlu0 %v2105, 24
    %v2253 = vpop.permute.xlu0 %2252
    %2254 = vrot.lane.b32.xlu0 %v2106, 24
    %v2255 = vpop.permute.xlu0 %2254
    %2256 = vrot.lane.b32.xlu0 %v2107, 24
    %v2257 = vpop.permute.xlu0 %2256
    %2258 = vrot.lane.b32.xlu0 %v2108, 24
    %v2259 = vpop.permute.xlu0 %2258
    %2260 = vrot.lane.b32.xlu0 %v2109, 24
    %v2261 = vpop.permute.xlu0 %2260
    %2262 = vrot.lane.b32.xlu0 %v2110, 24
    %v2263 = vpop.permute.xlu0 %2262
    %2264 = vrot.lane.b32.xlu0 %v2111, 24
    %v2265 = vpop.permute.xlu0 %2264
    %2266 = vrot.lane.b32.xlu0 %v2112, 24
    %v2267 = vpop.permute.xlu0 %2266
    %2268 = vrot.lane.b32.xlu0 %v2113, 24
    %v2269 = vpop.permute.xlu0 %2268
    %2270 = vrot.lane.b32.xlu0 %v2114, 24
    %v2271 = vpop.permute.xlu0 %2270
    %2272 = vrot.lane.b32.xlu0 %v2115, 24
    %v2273 = vpop.permute.xlu0 %2272
    %2274 = vrot.lane.b32.xlu0 %v2116, 24
    %v2275 = vpop.permute.xlu0 %2274
    %2276 = vrot.lane.b32.xlu0 %v2117, 24
    %v2277 = vpop.permute.xlu0 %2276
    %2278 = vrot.lane.b32.xlu0 %v2118, 24
    %v2279 = vpop.permute.xlu0 %2278
    %2280 = vrot.lane.b32.xlu0 %v2119, 24
    %v2281 = vpop.permute.xlu0 %2280
    %2282 = vrot.lane.b32.xlu0 %v2120, 24
    %v2283 = vpop.permute.xlu0 %2282
    %2284 = vrot.lane.b32.xlu0 %v2121, 24
    %v2285 = vpop.permute.xlu0 %2284
    %2286 = vrot.lane.b32.xlu0 %v2122, 24
    %v2287 = vpop.permute.xlu0 %2286
    %2288 = vrot.lane.b32.xlu0 %v2123, 24
    %v2289 = vpop.permute.xlu0 %2288
    %2290 = vrot.lane.b32.xlu0 %v2124, 24
    %v2291 = vpop.permute.xlu0 %2290
    %2292 = vrot.lane.b32.xlu0 %v2125, 24
    %v2293 = vpop.permute.xlu0 %2292
    %2294 = vrot.lane.b32.xlu0 %v2126, 24
    %v2295 = vpop.permute.xlu0 %2294
    %2296 = vrot.lane.b32.xlu0 %v2127, 24
    %v2297 = vpop.permute.xlu0 %2296
    %2298 = vrot.lane.b32.xlu0 %v2128, 24
    %v2299 = vpop.permute.xlu0 %2298
    %2300 = vrot.lane.b32.xlu0 %v2129, 24
    %v2301 = vpop.permute.xlu0 %2300
    %2302 = vrot.lane.b32.xlu0 %v2130, 24
    %v2303 = vpop.permute.xlu0 %2302
    %2304 = vrot.lane.b32.xlu0 %v2131, 24
    %v2305 = vpop.permute.xlu0 %2304
    %2306 = vrot.lane.b32.xlu0 %v2132, 24
    %v2307 = vpop.permute.xlu0 %2306
    %2308 = vrot.lane.b32.xlu0 %v2133, 24
    %v2309 = vpop.permute.xlu0 %2308
    %2310 = vrot.lane.b32.xlu0 %v2134, 24
    %v2311 = vpop.permute.xlu0 %2310
    %2312 = vrot.lane.b32.xlu0 %v2135, 24
    %v2313 = vpop.permute.xlu0 %2312
    %2314 = vrot.lane.b32.xlu0 %v2136, 24
    %v2315 = vpop.permute.xlu0 %2314
    %2316 = vrot.lane.b32.xlu0 %v2137, 24
    %v2317 = vpop.permute.xlu0 %2316
    %2318 = vrot.lane.b32.xlu0 %v2138, 24
    %v2319 = vpop.permute.xlu0 %2318
    %2320 = vrot.lane.b32.xlu0 %v2139, 24
    %v2321 = vpop.permute.xlu0 %2320
    %2322 = vrot.lane.b32.xlu0 %v2140, 24
    %v2323 = vpop.permute.xlu0 %2322
    %2324 = vrot.lane.b32.xlu0 %v2141, 24
    %v2325 = vpop.permute.xlu0 %2324
    %2326 = vrot.lane.b32.xlu0 %v2142, 24
    %v2327 = vpop.permute.xlu0 %2326
    %2328 = vrot.lane.b32.xlu0 %v2143, 24
    %v2329 = vpop.permute.xlu0 %2328
    %2330 = vrot.lane.b32.xlu0 %v2144, 24
    %v2331 = vpop.permute.xlu0 %2330
    %2332 = vrot.lane.b32.xlu0 %v2145, 24
    %v2333 = vpop.permute.xlu0 %2332
    %2334 = vrot.lane.b32.xlu0 %v2146, 24
    %v2335 = vpop.permute.xlu0 %2334
    %2336 = vrot.lane.b32.xlu0 %v2147, 24
    %v2337 = vpop.permute.xlu0 %2336
    %2338 = vrot.lane.b32.xlu0 %v2148, 24
    %v2339 = vpop.permute.xlu0 %2338
    %2340 = vrot.lane.b32.xlu0 %v2149, 24
    %v2341 = vpop.permute.xlu0 %2340
    %vm2406 = vcmask 228544
    %2407 = vst.msk [vmem:[#allocation2] sm:$0xff] %vm2406, %v2215
    %2408 = vst.msk [vmem:[#allocation2 + $0x8] sm:$0xff] %vm2406, %v2217
    %2409 = vst.msk [vmem:[#allocation2 + $0x10] sm:$0xff] %vm2406, %v2219
    %2410 = vst.msk [vmem:[#allocation2 + $0x18] sm:$0xff] %vm2406, %v2221
    %2411 = vst.msk [vmem:[#allocation2 + $0x20] sm:$0xff] %vm2406, %v2223
    %2412 = vst.msk [vmem:[#allocation2 + $0x28] sm:$0xff] %vm2406, %v2225
    %2413 = vst.msk [vmem:[#allocation2 + $0x30] sm:$0xff] %vm2406, %v2227
    %2414 = vst.msk [vmem:[#allocation2 + $0x38] sm:$0xff] %vm2406, %v2229
    %2415 = vst.msk [vmem:[#allocation2 + $0x40] sm:$0xff] %vm2406, %v2231
    %2416 = vst.msk [vmem:[#allocation2 + $0x48] sm:$0xff] %vm2406, %v2233
    %2417 = vst.msk [vmem:[#allocation2 + $0x50] sm:$0xff] %vm2406, %v2235
    %2418 = vst.msk [vmem:[#allocation2 + $0x58] sm:$0xff] %vm2406, %v2237
    %2419 = vst.msk [vmem:[#allocation2 + $0x60] sm:$0xff] %vm2406, %v2239
    %2420 = vst.msk [vmem:[#allocation2 + $0x68] sm:$0xff] %vm2406, %v2241
    %2421 = vst.msk [vmem:[#allocation2 + $0x70] sm:$0xff] %vm2406, %v2243
    %2422 = vst.msk [vmem:[#allocation2 + $0x78] sm:$0xff] %vm2406, %v2245
    %2423 = vst.msk [vmem:[#allocation2 + $0x80] sm:$0xff] %vm2406, %v2247
    %2424 = vst.msk [vmem:[#allocation2 + $0x88] sm:$0xff] %vm2406, %v2249
    %2425 = vst.msk [vmem:[#allocation2 + $0x90] sm:$0xff] %vm2406, %v2251
    %2426 = vst.msk [vmem:[#allocation2 + $0x98] sm:$0xff] %vm2406, %v2253
    %2427 = vst.msk [vmem:[#allocation2 + $0xa0] sm:$0xff] %vm2406, %v2255
    %2428 = vst.msk [vmem:[#allocation2 + $0xa8] sm:$0xff] %vm2406, %v2257
    %2429 = vst.msk [vmem:[#allocation2 + $0xb0] sm:$0xff] %vm2406, %v2259
    %2430 = vst.msk [vmem:[#allocation2 + $0xb8] sm:$0xff] %vm2406, %v2261
    %2431 = vst.msk [vmem:[#allocation2 + $0xc0] sm:$0xff] %vm2406, %v2263
    %2432 = vst.msk [vmem:[#allocation2 + $0xc8] sm:$0xff] %vm2406, %v2265
    %2433 = vst.msk [vmem:[#allocation2 + $0xd0] sm:$0xff] %vm2406, %v2267
    %2434 = vst.msk [vmem:[#allocation2 + $0xd8] sm:$0xff] %vm2406, %v2269
    %2435 = vst.msk [vmem:[#allocation2 + $0xe0] sm:$0xff] %vm2406, %v2271
    %2436 = vst.msk [vmem:[#allocation2 + $0xe8] sm:$0xff] %vm2406, %v2273
    %2437 = vst.msk [vmem:[#allocation2 + $0xf0] sm:$0xff] %vm2406, %v2275
    %2438 = vst.msk [vmem:[#allocation2 + $0xf8] sm:$0xff] %vm2406, %v2277
    %2439 = vst.msk [vmem:[#allocation2 + $0x100] sm:$0xff] %vm2406, %v2279
    %2440 = vst.msk [vmem:[#allocation2 + $0x108] sm:$0xff] %vm2406, %v2281
    %2441 = vst.msk [vmem:[#allocation2 + $0x110] sm:$0xff] %vm2406, %v2283
    %2442 = vst.msk [vmem:[#allocation2 + $0x118] sm:$0xff] %vm2406, %v2285
    %2443 = vst.msk [vmem:[#allocation2 + $0x120] sm:$0xff] %vm2406, %v2287
    %2444 = vst.msk [vmem:[#allocation2 + $0x128] sm:$0xff] %vm2406, %v2289
    %2445 = vst.msk [vmem:[#allocation2 + $0x130] sm:$0xff] %vm2406, %v2291
    %2446 = vst.msk [vmem:[#allocation2 + $0x138] sm:$0xff] %vm2406, %v2293
    %2447 = vst.msk [vmem:[#allocation2 + $0x140] sm:$0xff] %vm2406, %v2295
    %2448 = vst.msk [vmem:[#allocation2 + $0x148] sm:$0xff] %vm2406, %v2297
    %2449 = vst.msk [vmem:[#allocation2 + $0x150] sm:$0xff] %vm2406, %v2299
    %2450 = vst.msk [vmem:[#allocation2 + $0x158] sm:$0xff] %vm2406, %v2301
    %2451 = vst.msk [vmem:[#allocation2 + $0x160] sm:$0xff] %vm2406, %v2303
    %2452 = vst.msk [vmem:[#allocation2 + $0x168] sm:$0xff] %vm2406, %v2305
    %2453 = vst.msk [vmem:[#allocation2 + $0x170] sm:$0xff] %vm2406, %v2307
    %2454 = vst.msk [vmem:[#allocation2 + $0x178] sm:$0xff] %vm2406, %v2309
    %2455 = vst.msk [vmem:[#allocation2 + $0x180] sm:$0xff] %vm2406, %v2311
    %2456 = vst.msk [vmem:[#allocation2 + $0x188] sm:$0xff] %vm2406, %v2313
    %2457 = vst.msk [vmem:[#allocation2 + $0x190] sm:$0xff] %vm2406, %v2315
    %2458 = vst.msk [vmem:[#allocation2 + $0x198] sm:$0xff] %vm2406, %v2317
    %2459 = vst.msk [vmem:[#allocation2 + $0x1a0] sm:$0xff] %vm2406, %v2319
    %2460 = vst.msk [vmem:[#allocation2 + $0x1a8] sm:$0xff] %vm2406, %v2321
    %2461 = vst.msk [vmem:[#allocation2 + $0x1b0] sm:$0xff] %vm2406, %v2323
    %2462 = vst.msk [vmem:[#allocation2 + $0x1b8] sm:$0xff] %vm2406, %v2325
    %2463 = vst.msk [vmem:[#allocation2 + $0x1c0] sm:$0xff] %vm2406, %v2327
    %2464 = vst.msk [vmem:[#allocation2 + $0x1c8] sm:$0xff] %vm2406, %v2329
    %2465 = vst.msk [vmem:[#allocation2 + $0x1d0] sm:$0xff] %vm2406, %v2331
    %2466 = vst.msk [vmem:[#allocation2 + $0x1d8] sm:$0xff] %vm2406, %v2333
    %2467 = vst.msk [vmem:[#allocation2 + $0x1e0] sm:$0xff] %vm2406, %v2335
    %2468 = vst.msk [vmem:[#allocation2 + $0x1e8] sm:$0xff] %vm2406, %v2337
    %2469 = vst.msk [vmem:[#allocation2 + $0x1f0] sm:$0xff] %vm2406, %v2339
    %2470 = vst.msk [vmem:[#allocation2 + $0x1f8] sm:$0xff] %vm2406, %v2341
    %v2471 = vld [vmem:[%s2085 + $0x1] sm:$0xff]
    %v2472 = vld [vmem:[%s2085 + $0x9] sm:$0xff]
    %v2473 = vld [vmem:[%s2085 + $0x19] sm:$0xff]
    %v2474 = vld [vmem:[%s2085 + $0x21] sm:$0xff]
    %v2475 = vld [vmem:[%s2085 + $0x31] sm:$0xff]
    %v2476 = vld [vmem:[%s2085 + $0x39] sm:$0xff]
    %v2477 = vld [vmem:[%s2085 + $0x49] sm:$0xff]
    %v2478 = vld [vmem:[%s2085 + $0x51] sm:$0xff]
    %v2479 = vld [vmem:[%s2085 + $0x61] sm:$0xff]
    %v2480 = vld [vmem:[%s2085 + $0x69] sm:$0xff]
    %v2481 = vld [vmem:[%s2085 + $0x79] sm:$0xff]
    %v2482 = vld [vmem:[%s2085 + $0x81] sm:$0xff]
    %v2483 = vld [vmem:[%s2085 + $0x91] sm:$0xff]
    %v2484 = vld [vmem:[%s2085 + $0x99] sm:$0xff]
    %v2485 = vld [vmem:[%s2085 + $0xa9] sm:$0xff]
    %v2486 = vld [vmem:[%s2085 + $0xb1] sm:$0xff]
    %v2487 = vld [vmem:[%s2085 + $0xc1] sm:$0xff]
    %v2488 = vld [vmem:[%s2085 + $0xc9] sm:$0xff]
    %v2489 = vld [vmem:[%s2085 + $0xd9] sm:$0xff]
    %v2490 = vld [vmem:[%s2085 + $0xe1] sm:$0xff]
    %v2491 = vld [vmem:[%s2085 + $0xf1] sm:$0xff]
    %v2492 = vld [vmem:[%s2085 + $0xf9] sm:$0xff]
    %v2493 = vld [vmem:[%s2085 + $0x109] sm:$0xff]
    %v2494 = vld [vmem:[%s2085 + $0x111] sm:$0xff]
    %v2495 = vld [vmem:[%s2085 + $0x121] sm:$0xff]
    %v2496 = vld [vmem:[%s2085 + $0x129] sm:$0xff]
    %v2497 = vld [vmem:[%s2085 + $0x139] sm:$0xff]
    %v2498 = vld [vmem:[%s2085 + $0x141] sm:$0xff]
    %v2499 = vld [vmem:[%s2085 + $0x151] sm:$0xff]
    %v2500 = vld [vmem:[%s2085 + $0x159] sm:$0xff]
    %v2501 = vld [vmem:[%s2085 + $0x169] sm:$0xff]
    %v2502 = vld [vmem:[%s2085 + $0x171] sm:$0xff]
    %v2503 = vld [vmem:[%s2085 + $0x1b1] sm:$0xff]
    %v2504 = vld [vmem:[%s2085 + $0x1b9] sm:$0xff]
    %v2505 = vld [vmem:[%s2085 + $0x1c9] sm:$0xff]
    %v2506 = vld [vmem:[%s2085 + $0x1d1] sm:$0xff]
    %v2507 = vld [vmem:[%s2085 + $0x1e1] sm:$0xff]
    %v2508 = vld [vmem:[%s2085 + $0x1e9] sm:$0xff]
    %v2509 = vld [vmem:[%s2085 + $0x1f9] sm:$0xff]
    %v2510 = vld [vmem:[%s2085 + $0x201] sm:$0xff]
    %v2511 = vld [vmem:[%s2085 + $0x211] sm:$0xff]
    %v2512 = vld [vmem:[%s2085 + $0x219] sm:$0xff]
    %v2513 = vld [vmem:[%s2085 + $0x229] sm:$0xff]
    %v2514 = vld [vmem:[%s2085 + $0x231] sm:$0xff]
    %v2515 = vld [vmem:[%s2085 + $0x241] sm:$0xff]
    %v2516 = vld [vmem:[%s2085 + $0x249] sm:$0xff]
    %v2517 = vld [vmem:[%s2085 + $0x259] sm:$0xff]
    %v2518 = vld [vmem:[%s2085 + $0x261] sm:$0xff]
    %v2519 = vld [vmem:[%s2085 + $0x271] sm:$0xff]
    %v2520 = vld [vmem:[%s2085 + $0x279] sm:$0xff]
    %v2521 = vld [vmem:[%s2085 + $0x289] sm:$0xff]
    %v2522 = vld [vmem:[%s2085 + $0x291] sm:$0xff]
    %v2523 = vld [vmem:[%s2085 + $0x2a1] sm:$0xff]
    %v2524 = vld [vmem:[%s2085 + $0x2a9] sm:$0xff]
    %v2525 = vld [vmem:[%s2085 + $0x2b9] sm:$0xff]
    %v2526 = vld [vmem:[%s2085 + $0x2c1] sm:$0xff]
    %v2527 = vld [vmem:[%s2085 + $0x2d1] sm:$0xff]
    %v2528 = vld [vmem:[%s2085 + $0x2d9] sm:$0xff]
    %v2529 = vld [vmem:[%s2085 + $0x2e9] sm:$0xff]
    %v2530 = vld [vmem:[%s2085 + $0x2f1] sm:$0xff]
    %v2531 = vld [vmem:[%s2085 + $0x301] sm:$0xff]
    %v2532 = vld [vmem:[%s2085 + $0x309] sm:$0xff]
    %v2533 = vld [vmem:[%s2085 + $0x319] sm:$0xff]
    %v2534 = vld [vmem:[%s2085 + $0x321] sm:$0xff]
    %2599 = vrot.lane.b32.xlu0 %v2471, 28
    %v2600 = vpop.permute.xlu0 %2599
    %2601 = vrot.lane.b32.xlu0 %v2472, 28
    %v2602 = vpop.permute.xlu0 %2601
    %2603 = vrot.lane.b32.xlu0 %v2473, 28
    %v2604 = vpop.permute.xlu0 %2603
    %2605 = vrot.lane.b32.xlu0 %v2474, 28
    %v2606 = vpop.permute.xlu0 %2605
    %2607 = vrot.lane.b32.xlu0 %v2475, 28
    %v2608 = vpop.permute.xlu0 %2607
    %2609 = vrot.lane.b32.xlu0 %v2476, 28
    %v2610 = vpop.permute.xlu0 %2609
    %2611 = vrot.lane.b32.xlu0 %v2477, 28
    %v2612 = vpop.permute.xlu0 %2611
    %2613 = vrot.lane.b32.xlu0 %v2478, 28
    %v2614 = vpop.permute.xlu0 %2613
    %2615 = vrot.lane.b32.xlu0 %v2479, 28
    %v2616 = vpop.permute.xlu0 %2615
    %2617 = vrot.lane.b32.xlu0 %v2480, 28
    %v2618 = vpop.permute.xlu0 %2617
    %2619 = vrot.lane.b32.xlu0 %v2481, 28
    %v2620 = vpop.permute.xlu0 %2619
    %2621 = vrot.lane.b32.xlu0 %v2482, 28
    %v2622 = vpop.permute.xlu0 %2621
    %2623 = vrot.lane.b32.xlu0 %v2483, 28
    %v2624 = vpop.permute.xlu0 %2623
    %2625 = vrot.lane.b32.xlu0 %v2484, 28
    %v2626 = vpop.permute.xlu0 %2625
    %2627 = vrot.lane.b32.xlu0 %v2485, 28
    %v2628 = vpop.permute.xlu0 %2627
    %2629 = vrot.lane.b32.xlu0 %v2486, 28
    %v2630 = vpop.permute.xlu0 %2629
    %2631 = vrot.lane.b32.xlu0 %v2487, 28
    %v2632 = vpop.permute.xlu0 %2631
    %2633 = vrot.lane.b32.xlu0 %v2488, 28
    %v2634 = vpop.permute.xlu0 %2633
    %2635 = vrot.lane.b32.xlu0 %v2489, 28
    %v2636 = vpop.permute.xlu0 %2635
    %2637 = vrot.lane.b32.xlu0 %v2490, 28
    %v2638 = vpop.permute.xlu0 %2637
    %2639 = vrot.lane.b32.xlu0 %v2491, 28
    %v2640 = vpop.permute.xlu0 %2639
    %2641 = vrot.lane.b32.xlu0 %v2492, 28
    %v2642 = vpop.permute.xlu0 %2641
    %2643 = vrot.lane.b32.xlu0 %v2493, 28
    %v2644 = vpop.permute.xlu0 %2643
    %2645 = vrot.lane.b32.xlu0 %v2494, 28
    %v2646 = vpop.permute.xlu0 %2645
    %2647 = vrot.lane.b32.xlu0 %v2495, 28
    %v2648 = vpop.permute.xlu0 %2647
    %2649 = vrot.lane.b32.xlu0 %v2496, 28
    %v2650 = vpop.permute.xlu0 %2649
    %2651 = vrot.lane.b32.xlu0 %v2497, 28
    %v2652 = vpop.permute.xlu0 %2651
    %2653 = vrot.lane.b32.xlu0 %v2498, 28
    %v2654 = vpop.permute.xlu0 %2653
    %2655 = vrot.lane.b32.xlu0 %v2499, 28
    %v2656 = vpop.permute.xlu0 %2655
    %2657 = vrot.lane.b32.xlu0 %v2500, 28
    %v2658 = vpop.permute.xlu0 %2657
    %2659 = vrot.lane.b32.xlu0 %v2501, 28
    %v2660 = vpop.permute.xlu0 %2659
    %2661 = vrot.lane.b32.xlu0 %v2502, 28
    %v2662 = vpop.permute.xlu0 %2661
    %2663 = vrot.lane.b32.xlu0 %v2503, 28
    %v2664 = vpop.permute.xlu0 %2663
    %2665 = vrot.lane.b32.xlu0 %v2504, 28
    %v2666 = vpop.permute.xlu0 %2665
    %2667 = vrot.lane.b32.xlu0 %v2505, 28
    %v2668 = vpop.permute.xlu0 %2667
    %2669 = vrot.lane.b32.xlu0 %v2506, 28
    %v2670 = vpop.permute.xlu0 %2669
    %2671 = vrot.lane.b32.xlu0 %v2507, 28
    %v2672 = vpop.permute.xlu0 %2671
    %2673 = vrot.lane.b32.xlu0 %v2508, 28
    %v2674 = vpop.permute.xlu0 %2673
    %2675 = vrot.lane.b32.xlu0 %v2509, 28
    %v2676 = vpop.permute.xlu0 %2675
    %2677 = vrot.lane.b32.xlu0 %v2510, 28
    %v2678 = vpop.permute.xlu0 %2677
    %2679 = vrot.lane.b32.xlu0 %v2511, 28
    %v2680 = vpop.permute.xlu0 %2679
    %2681 = vrot.lane.b32.xlu0 %v2512, 28
    %v2682 = vpop.permute.xlu0 %2681
    %2683 = vrot.lane.b32.xlu0 %v2513, 28
    %v2684 = vpop.permute.xlu0 %2683
    %2685 = vrot.lane.b32.xlu0 %v2514, 28
    %v2686 = vpop.permute.xlu0 %2685
    %2687 = vrot.lane.b32.xlu0 %v2515, 28
    %v2688 = vpop.permute.xlu0 %2687
    %2689 = vrot.lane.b32.xlu0 %v2516, 28
    %v2690 = vpop.permute.xlu0 %2689
    %2691 = vrot.lane.b32.xlu0 %v2517, 28
    %v2692 = vpop.permute.xlu0 %2691
    %2693 = vrot.lane.b32.xlu0 %v2518, 28
    %v2694 = vpop.permute.xlu0 %2693
    %2695 = vrot.lane.b32.xlu0 %v2519, 28
    %v2696 = vpop.permute.xlu0 %2695
    %2697 = vrot.lane.b32.xlu0 %v2520, 28
    %v2698 = vpop.permute.xlu0 %2697
    %2699 = vrot.lane.b32.xlu0 %v2521, 28
    %v2700 = vpop.permute.xlu0 %2699
    %2701 = vrot.lane.b32.xlu0 %v2522, 28
    %v2702 = vpop.permute.xlu0 %2701
    %2703 = vrot.lane.b32.xlu0 %v2523, 28
    %v2704 = vpop.permute.xlu0 %2703
    %2705 = vrot.lane.b32.xlu0 %v2524, 28
    %v2706 = vpop.permute.xlu0 %2705
    %2707 = vrot.lane.b32.xlu0 %v2525, 28
    %v2708 = vpop.permute.xlu0 %2707
    %2709 = vrot.lane.b32.xlu0 %v2526, 28
    %v2710 = vpop.permute.xlu0 %2709
    %2711 = vrot.lane.b32.xlu0 %v2527, 28
    %v2712 = vpop.permute.xlu0 %2711
    %2713 = vrot.lane.b32.xlu0 %v2528, 28
    %v2714 = vpop.permute.xlu0 %2713
    %2715 = vrot.lane.b32.xlu0 %v2529, 28
    %v2716 = vpop.permute.xlu0 %2715
    %2717 = vrot.lane.b32.xlu0 %v2530, 28
    %v2718 = vpop.permute.xlu0 %2717
    %2719 = vrot.lane.b32.xlu0 %v2531, 28
    %v2720 = vpop.permute.xlu0 %2719
    %2721 = vrot.lane.b32.xlu0 %v2532, 28
    %v2722 = vpop.permute.xlu0 %2721
    %2723 = vrot.lane.b32.xlu0 %v2533, 28
    %v2724 = vpop.permute.xlu0 %2723
    %2725 = vrot.lane.b32.xlu0 %v2534, 28
    %v2726 = vpop.permute.xlu0 %2725
    %vm2791 = vcmask 261344
    %2792 = vst.msk [vmem:[#allocation2] sm:$0xff] %vm2791, %v2600
    %2793 = vst.msk [vmem:[#allocation2 + $0x8] sm:$0xff] %vm2791, %v2602
    %2794 = vst.msk [vmem:[#allocation2 + $0x10] sm:$0xff] %vm2791, %v2604
    %2795 = vst.msk [vmem:[#allocation2 + $0x18] sm:$0xff] %vm2791, %v2606
    %2796 = vst.msk [vmem:[#allocation2 + $0x20] sm:$0xff] %vm2791, %v2608
    %2797 = vst.msk [vmem:[#allocation2 + $0x28] sm:$0xff] %vm2791, %v2610
    %2798 = vst.msk [vmem:[#allocation2 + $0x30] sm:$0xff] %vm2791, %v2612
    %2799 = vst.msk [vmem:[#allocation2 + $0x38] sm:$0xff] %vm2791, %v2614
    %2800 = vst.msk [vmem:[#allocation2 + $0x40] sm:$0xff] %vm2791, %v2616
    %2801 = vst.msk [vmem:[#allocation2 + $0x48] sm:$0xff] %vm2791, %v2618
    %2802 = vst.msk [vmem:[#allocation2 + $0x50] sm:$0xff] %vm2791, %v2620
    %2803 = vst.msk [vmem:[#allocation2 + $0x58] sm:$0xff] %vm2791, %v2622
    %2804 = vst.msk [vmem:[#allocation2 + $0x60] sm:$0xff] %vm2791, %v2624
    %2805 = vst.msk [vmem:[#allocation2 + $0x68] sm:$0xff] %vm2791, %v2626
    %2806 = vst.msk [vmem:[#allocation2 + $0x70] sm:$0xff] %vm2791, %v2628
    %2807 = vst.msk [vmem:[#allocation2 + $0x78] sm:$0xff] %vm2791, %v2630
    %2808 = vst.msk [vmem:[#allocation2 + $0x80] sm:$0xff] %vm2791, %v2632
    %2809 = vst.msk [vmem:[#allocation2 + $0x88] sm:$0xff] %vm2791, %v2634
    %2810 = vst.msk [vmem:[#allocation2 + $0x90] sm:$0xff] %vm2791, %v2636
    %2811 = vst.msk [vmem:[#allocation2 + $0x98] sm:$0xff] %vm2791, %v2638
    %2812 = vst.msk [vmem:[#allocation2 + $0xa0] sm:$0xff] %vm2791, %v2640
    %2813 = vst.msk [vmem:[#allocation2 + $0xa8] sm:$0xff] %vm2791, %v2642
    %2814 = vst.msk [vmem:[#allocation2 + $0xb0] sm:$0xff] %vm2791, %v2644
    %2815 = vst.msk [vmem:[#allocation2 + $0xb8] sm:$0xff] %vm2791, %v2646
    %2816 = vst.msk [vmem:[#allocation2 + $0xc0] sm:$0xff] %vm2791, %v2648
    %2817 = vst.msk [vmem:[#allocation2 + $0xc8] sm:$0xff] %vm2791, %v2650
    %2818 = vst.msk [vmem:[#allocation2 + $0xd0] sm:$0xff] %vm2791, %v2652
    %2819 = vst.msk [vmem:[#allocation2 + $0xd8] sm:$0xff] %vm2791, %v2654
    %2820 = vst.msk [vmem:[#allocation2 + $0xe0] sm:$0xff] %vm2791, %v2656
    %2821 = vst.msk [vmem:[#allocation2 + $0xe8] sm:$0xff] %vm2791, %v2658
    %2822 = vst.msk [vmem:[#allocation2 + $0xf0] sm:$0xff] %vm2791, %v2660
    %2823 = vst.msk [vmem:[#allocation2 + $0xf8] sm:$0xff] %vm2791, %v2662
    %2824 = vst.msk [vmem:[#allocation2 + $0x100] sm:$0xff] %vm2791, %v2664
    %2825 = vst.msk [vmem:[#allocation2 + $0x108] sm:$0xff] %vm2791, %v2666
    %2826 = vst.msk [vmem:[#allocation2 + $0x110] sm:$0xff] %vm2791, %v2668
    %2827 = vst.msk [vmem:[#allocation2 + $0x118] sm:$0xff] %vm2791, %v2670
    %2828 = vst.msk [vmem:[#allocation2 + $0x120] sm:$0xff] %vm2791, %v2672
    %2829 = vst.msk [vmem:[#allocation2 + $0x128] sm:$0xff] %vm2791, %v2674
    %2830 = vst.msk [vmem:[#allocation2 + $0x130] sm:$0xff] %vm2791, %v2676
    %2831 = vst.msk [vmem:[#allocation2 + $0x138] sm:$0xff] %vm2791, %v2678
    %2832 = vst.msk [vmem:[#allocation2 + $0x140] sm:$0xff] %vm2791, %v2680
    %2833 = vst.msk [vmem:[#allocation2 + $0x148] sm:$0xff] %vm2791, %v2682
    %2834 = vst.msk [vmem:[#allocation2 + $0x150] sm:$0xff] %vm2791, %v2684
    %2835 = vst.msk [vmem:[#allocation2 + $0x158] sm:$0xff] %vm2791, %v2686
    %2836 = vst.msk [vmem:[#allocation2 + $0x160] sm:$0xff] %vm2791, %v2688
    %2837 = vst.msk [vmem:[#allocation2 + $0x168] sm:$0xff] %vm2791, %v2690
    %2838 = vst.msk [vmem:[#allocation2 + $0x170] sm:$0xff] %vm2791, %v2692
    %2839 = vst.msk [vmem:[#allocation2 + $0x178] sm:$0xff] %vm2791, %v2694
    %2840 = vst.msk [vmem:[#allocation2 + $0x180] sm:$0xff] %vm2791, %v2696
    %2841 = vst.msk [vmem:[#allocation2 + $0x188] sm:$0xff] %vm2791, %v2698
    %2842 = vst.msk [vmem:[#allocation2 + $0x190] sm:$0xff] %vm2791, %v2700
    %2843 = vst.msk [vmem:[#allocation2 + $0x198] sm:$0xff] %vm2791, %v2702
    %2844 = vst.msk [vmem:[#allocation2 + $0x1a0] sm:$0xff] %vm2791, %v2704
    %2845 = vst.msk [vmem:[#allocation2 + $0x1a8] sm:$0xff] %vm2791, %v2706
    %2846 = vst.msk [vmem:[#allocation2 + $0x1b0] sm:$0xff] %vm2791, %v2708
    %2847 = vst.msk [vmem:[#allocation2 + $0x1b8] sm:$0xff] %vm2791, %v2710
    %2848 = vst.msk [vmem:[#allocation2 + $0x1c0] sm:$0xff] %vm2791, %v2712
    %2849 = vst.msk [vmem:[#allocation2 + $0x1c8] sm:$0xff] %vm2791, %v2714
    %2850 = vst.msk [vmem:[#allocation2 + $0x1d0] sm:$0xff] %vm2791, %v2716
    %2851 = vst.msk [vmem:[#allocation2 + $0x1d8] sm:$0xff] %vm2791, %v2718
    %2852 = vst.msk [vmem:[#allocation2 + $0x1e0] sm:$0xff] %vm2791, %v2720
    %2853 = vst.msk [vmem:[#allocation2 + $0x1e8] sm:$0xff] %vm2791, %v2722
    %2854 = vst.msk [vmem:[#allocation2 + $0x1f0] sm:$0xff] %vm2791, %v2724
    %2855 = vst.msk [vmem:[#allocation2 + $0x1f8] sm:$0xff] %vm2791, %v2726
    %v2856 = vld [vmem:[%s2085 + $0x2] sm:$0xff]
    %v2857 = vld [vmem:[%s2085 + $0xa] sm:$0xff]
    %v2858 = vld [vmem:[%s2085 + $0x1a] sm:$0xff]
    %v2859 = vld [vmem:[%s2085 + $0x22] sm:$0xff]
    %v2860 = vld [vmem:[%s2085 + $0x32] sm:$0xff]
    %v2861 = vld [vmem:[%s2085 + $0x3a] sm:$0xff]
    %v2862 = vld [vmem:[%s2085 + $0x4a] sm:$0xff]
    %v2863 = vld [vmem:[%s2085 + $0x52] sm:$0xff]
    %v2864 = vld [vmem:[%s2085 + $0x62] sm:$0xff]
    %v2865 = vld [vmem:[%s2085 + $0x6a] sm:$0xff]
    %v2866 = vld [vmem:[%s2085 + $0x7a] sm:$0xff]
    %v2867 = vld [vmem:[%s2085 + $0x82] sm:$0xff]
    %v2868 = vld [vmem:[%s2085 + $0x92] sm:$0xff]
    %v2869 = vld [vmem:[%s2085 + $0x9a] sm:$0xff]
    %v2870 = vld [vmem:[%s2085 + $0xaa] sm:$0xff]
    %v2871 = vld [vmem:[%s2085 + $0xb2] sm:$0xff]
    %v2872 = vld [vmem:[%s2085 + $0xc2] sm:$0xff]
    %v2873 = vld [vmem:[%s2085 + $0xca] sm:$0xff]
    %v2874 = vld [vmem:[%s2085 + $0xda] sm:$0xff]
    %v2875 = vld [vmem:[%s2085 + $0xe2] sm:$0xff]
    %v2876 = vld [vmem:[%s2085 + $0xf2] sm:$0xff]
    %v2877 = vld [vmem:[%s2085 + $0xfa] sm:$0xff]
    %v2878 = vld [vmem:[%s2085 + $0x10a] sm:$0xff]
    %v2879 = vld [vmem:[%s2085 + $0x112] sm:$0xff]
    %v2880 = vld [vmem:[%s2085 + $0x122] sm:$0xff]
    %v2881 = vld [vmem:[%s2085 + $0x12a] sm:$0xff]
    %v2882 = vld [vmem:[%s2085 + $0x13a] sm:$0xff]
    %v2883 = vld [vmem:[%s2085 + $0x142] sm:$0xff]
    %v2884 = vld [vmem:[%s2085 + $0x152] sm:$0xff]
    %v2885 = vld [vmem:[%s2085 + $0x15a] sm:$0xff]
    %v2886 = vld [vmem:[%s2085 + $0x16a] sm:$0xff]
    %v2887 = vld [vmem:[%s2085 + $0x172] sm:$0xff]
    %v2888 = vld [vmem:[%s2085 + $0x1b2] sm:$0xff]
    %v2889 = vld [vmem:[%s2085 + $0x1ba] sm:$0xff]
    %v2890 = vld [vmem:[%s2085 + $0x1ca] sm:$0xff]
    %v2891 = vld [vmem:[%s2085 + $0x1d2] sm:$0xff]
    %v2892 = vld [vmem:[%s2085 + $0x1e2] sm:$0xff]
    %v2893 = vld [vmem:[%s2085 + $0x1ea] sm:$0xff]
    %v2894 = vld [vmem:[%s2085 + $0x1fa] sm:$0xff]
    %v2895 = vld [vmem:[%s2085 + $0x202] sm:$0xff]
    %v2896 = vld [vmem:[%s2085 + $0x212] sm:$0xff]
    %v2897 = vld [vmem:[%s2085 + $0x21a] sm:$0xff]
    %v2898 = vld [vmem:[%s2085 + $0x22a] sm:$0xff]
    %v2899 = vld [vmem:[%s2085 + $0x232] sm:$0xff]
    %v2900 = vld [vmem:[%s2085 + $0x242] sm:$0xff]
    %v2901 = vld [vmem:[%s2085 + $0x24a] sm:$0xff]
    %v2902 = vld [vmem:[%s2085 + $0x25a] sm:$0xff]
    %v2903 = vld [vmem:[%s2085 + $0x262] sm:$0xff]
    %v2904 = vld [vmem:[%s2085 + $0x272] sm:$0xff]
    %v2905 = vld [vmem:[%s2085 + $0x27a] sm:$0xff]
    %v2906 = vld [vmem:[%s2085 + $0x28a] sm:$0xff]
    %v2907 = vld [vmem:[%s2085 + $0x292] sm:$0xff]
    %v2908 = vld [vmem:[%s2085 + $0x2a2] sm:$0xff]
    %v2909 = vld [vmem:[%s2085 + $0x2aa] sm:$0xff]
    %v2910 = vld [vmem:[%s2085 + $0x2ba] sm:$0xff]
    %v2911 = vld [vmem:[%s2085 + $0x2c2] sm:$0xff]
    %v2912 = vld [vmem:[%s2085 + $0x2d2] sm:$0xff]
    %v2913 = vld [vmem:[%s2085 + $0x2da] sm:$0xff]
    %v2914 = vld [vmem:[%s2085 + $0x2ea] sm:$0xff]
    %v2915 = vld [vmem:[%s2085 + $0x2f2] sm:$0xff]
    %v2916 = vld [vmem:[%s2085 + $0x302] sm:$0xff]
    %v2917 = vld [vmem:[%s2085 + $0x30a] sm:$0xff]
    %v2918 = vld [vmem:[%s2085 + $0x31a] sm:$0xff]
    %v2919 = vld [vmem:[%s2085 + $0x322] sm:$0xff]
    %2984 = vrot.lane.b32.xlu0 %v2856, 32
    %v2985 = vpop.permute.xlu0 %2984
    %2986 = vrot.lane.b32.xlu0 %v2857, 32
    %v2987 = vpop.permute.xlu0 %2986
    %2988 = vrot.lane.b32.xlu0 %v2858, 32
    %v2989 = vpop.permute.xlu0 %2988
    %2990 = vrot.lane.b32.xlu0 %v2859, 32
    %v2991 = vpop.permute.xlu0 %2990
    %2992 = vrot.lane.b32.xlu0 %v2860, 32
    %v2993 = vpop.permute.xlu0 %2992
    %2994 = vrot.lane.b32.xlu0 %v2861, 32
    %v2995 = vpop.permute.xlu0 %2994
    %2996 = vrot.lane.b32.xlu0 %v2862, 32
    %v2997 = vpop.permute.xlu0 %2996
    %2998 = vrot.lane.b32.xlu0 %v2863, 32
    %v2999 = vpop.permute.xlu0 %2998
    %3000 = vrot.lane.b32.xlu0 %v2864, 32
    %v3001 = vpop.permute.xlu0 %3000
    %3002 = vrot.lane.b32.xlu0 %v2865, 32
    %v3003 = vpop.permute.xlu0 %3002
    %3004 = vrot.lane.b32.xlu0 %v2866, 32
    %v3005 = vpop.permute.xlu0 %3004
    %3006 = vrot.lane.b32.xlu0 %v2867, 32
    %v3007 = vpop.permute.xlu0 %3006
    %3008 = vrot.lane.b32.xlu0 %v2868, 32
    %v3009 = vpop.permute.xlu0 %3008
    %3010 = vrot.lane.b32.xlu0 %v2869, 32
    %v3011 = vpop.permute.xlu0 %3010
    %3012 = vrot.lane.b32.xlu0 %v2870, 32
    %v3013 = vpop.permute.xlu0 %3012
    %3014 = vrot.lane.b32.xlu0 %v2871, 32
    %v3015 = vpop.permute.xlu0 %3014
    %3016 = vrot.lane.b32.xlu0 %v2872, 32
    %v3017 = vpop.permute.xlu0 %3016
    %3018 = vrot.lane.b32.xlu0 %v2873, 32
    %v3019 = vpop.permute.xlu0 %3018
    %3020 = vrot.lane.b32.xlu0 %v2874, 32
    %v3021 = vpop.permute.xlu0 %3020
    %3022 = vrot.lane.b32.xlu0 %v2875, 32
    %v3023 = vpop.permute.xlu0 %3022
    %3024 = vrot.lane.b32.xlu0 %v2876, 32
    %v3025 = vpop.permute.xlu0 %3024
    %3026 = vrot.lane.b32.xlu0 %v2877, 32
    %v3027 = vpop.permute.xlu0 %3026
    %3028 = vrot.lane.b32.xlu0 %v2878, 32
    %v3029 = vpop.permute.xlu0 %3028
    %3030 = vrot.lane.b32.xlu0 %v2879, 32
    %v3031 = vpop.permute.xlu0 %3030
    %3032 = vrot.lane.b32.xlu0 %v2880, 32
    %v3033 = vpop.permute.xlu0 %3032
    %3034 = vrot.lane.b32.xlu0 %v2881, 32
    %v3035 = vpop.permute.xlu0 %3034
    %3036 = vrot.lane.b32.xlu0 %v2882, 32
    %v3037 = vpop.permute.xlu0 %3036
    %3038 = vrot.lane.b32.xlu0 %v2883, 32
    %v3039 = vpop.permute.xlu0 %3038
    %3040 = vrot.lane.b32.xlu0 %v2884, 32
    %v3041 = vpop.permute.xlu0 %3040
    %3042 = vrot.lane.b32.xlu0 %v2885, 32
    %v3043 = vpop.permute.xlu0 %3042
    %3044 = vrot.lane.b32.xlu0 %v2886, 32
    %v3045 = vpop.permute.xlu0 %3044
    %3046 = vrot.lane.b32.xlu0 %v2887, 32
    %v3047 = vpop.permute.xlu0 %3046
    %3048 = vrot.lane.b32.xlu0 %v2888, 32
    %v3049 = vpop.permute.xlu0 %3048
    %3050 = vrot.lane.b32.xlu0 %v2889, 32
    %v3051 = vpop.permute.xlu0 %3050
    %3052 = vrot.lane.b32.xlu0 %v2890, 32
    %v3053 = vpop.permute.xlu0 %3052
    %3054 = vrot.lane.b32.xlu0 %v2891, 32
    %v3055 = vpop.permute.xlu0 %3054
    %3056 = vrot.lane.b32.xlu0 %v2892, 32
    %v3057 = vpop.permute.xlu0 %3056
    %3058 = vrot.lane.b32.xlu0 %v2893, 32
    %v3059 = vpop.permute.xlu0 %3058
    %3060 = vrot.lane.b32.xlu0 %v2894, 32
    %v3061 = vpop.permute.xlu0 %3060
    %3062 = vrot.lane.b32.xlu0 %v2895, 32
    %v3063 = vpop.permute.xlu0 %3062
    %3064 = vrot.lane.b32.xlu0 %v2896, 32
    %v3065 = vpop.permute.xlu0 %3064
    %3066 = vrot.lane.b32.xlu0 %v2897, 32
    %v3067 = vpop.permute.xlu0 %3066
    %3068 = vrot.lane.b32.xlu0 %v2898, 32
    %v3069 = vpop.permute.xlu0 %3068
    %3070 = vrot.lane.b32.xlu0 %v2899, 32
    %v3071 = vpop.permute.xlu0 %3070
    %3072 = vrot.lane.b32.xlu0 %v2900, 32
    %v3073 = vpop.permute.xlu0 %3072
    %3074 = vrot.lane.b32.xlu0 %v2901, 32
    %v3075 = vpop.permute.xlu0 %3074
    %3076 = vrot.lane.b32.xlu0 %v2902, 32
    %v3077 = vpop.permute.xlu0 %3076
    %3078 = vrot.lane.b32.xlu0 %v2903, 32
    %v3079 = vpop.permute.xlu0 %3078
    %3080 = vrot.lane.b32.xlu0 %v2904, 32
    %v3081 = vpop.permute.xlu0 %3080
    %3082 = vrot.lane.b32.xlu0 %v2905, 32
    %v3083 = vpop.permute.xlu0 %3082
    %3084 = vrot.lane.b32.xlu0 %v2906, 32
    %v3085 = vpop.permute.xlu0 %3084
    %3086 = vrot.lane.b32.xlu0 %v2907, 32
    %v3087 = vpop.permute.xlu0 %3086
    %3088 = vrot.lane.b32.xlu0 %v2908, 32
    %v3089 = vpop.permute.xlu0 %3088
    %3090 = vrot.lane.b32.xlu0 %v2909, 32
    %v3091 = vpop.permute.xlu0 %3090
    %3092 = vrot.lane.b32.xlu0 %v2910, 32
    %v3093 = vpop.permute.xlu0 %3092
    %3094 = vrot.lane.b32.xlu0 %v2911, 32
    %v3095 = vpop.permute.xlu0 %3094
    %3096 = vrot.lane.b32.xlu0 %v2912, 32
    %v3097 = vpop.permute.xlu0 %3096
    %3098 = vrot.lane.b32.xlu0 %v2913, 32
    %v3099 = vpop.permute.xlu0 %3098
    %3100 = vrot.lane.b32.xlu0 %v2914, 32
    %v3101 = vpop.permute.xlu0 %3100
    %3102 = vrot.lane.b32.xlu0 %v2915, 32
    %v3103 = vpop.permute.xlu0 %3102
    %3104 = vrot.lane.b32.xlu0 %v2916, 32
    %v3105 = vpop.permute.xlu0 %3104
    %3106 = vrot.lane.b32.xlu0 %v2917, 32
    %v3107 = vpop.permute.xlu0 %3106
    %3108 = vrot.lane.b32.xlu0 %v2918, 32
    %v3109 = vpop.permute.xlu0 %3108
    %3110 = vrot.lane.b32.xlu0 %v2919, 32
    %v3111 = vpop.permute.xlu0 %3110
    %vm3176 = vcmask 294144
    %3177 = vst.msk [vmem:[#allocation2] sm:$0xff] %vm3176, %v2985
    %3178 = vst.msk [vmem:[#allocation2 + $0x8] sm:$0xff] %vm3176, %v2987
    %3179 = vst.msk [vmem:[#allocation2 + $0x10] sm:$0xff] %vm3176, %v2989
    %3180 = vst.msk [vmem:[#allocation2 + $0x18] sm:$0xff] %vm3176, %v2991
    %3181 = vst.msk [vmem:[#allocation2 + $0x20] sm:$0xff] %vm3176, %v2993
    %3182 = vst.msk [vmem:[#allocation2 + $0x28] sm:$0xff] %vm3176, %v2995
    %3183 = vst.msk [vmem:[#allocation2 + $0x30] sm:$0xff] %vm3176, %v2997
    %3184 = vst.msk [vmem:[#allocation2 + $0x38] sm:$0xff] %vm3176, %v2999
    %3185 = vst.msk [vmem:[#allocation2 + $0x40] sm:$0xff] %vm3176, %v3001
    %3186 = vst.msk [vmem:[#allocation2 + $0x48] sm:$0xff] %vm3176, %v3003
    %3187 = vst.msk [vmem:[#allocation2 + $0x50] sm:$0xff] %vm3176, %v3005
    %3188 = vst.msk [vmem:[#allocation2 + $0x58] sm:$0xff] %vm3176, %v3007
    %3189 = vst.msk [vmem:[#allocation2 + $0x60] sm:$0xff] %vm3176, %v3009
    %3190 = vst.msk [vmem:[#allocation2 + $0x68] sm:$0xff] %vm3176, %v3011
    %3191 = vst.msk [vmem:[#allocation2 + $0x70] sm:$0xff] %vm3176, %v3013
    %3192 = vst.msk [vmem:[#allocation2 + $0x78] sm:$0xff] %vm3176, %v3015
    %3193 = vst.msk [vmem:[#allocation2 + $0x80] sm:$0xff] %vm3176, %v3017
    %3194 = vst.msk [vmem:[#allocation2 + $0x88] sm:$0xff] %vm3176, %v3019
    %3195 = vst.msk [vmem:[#allocation2 + $0x90] sm:$0xff] %vm3176, %v3021
    %3196 = vst.msk [vmem:[#allocation2 + $0x98] sm:$0xff] %vm3176, %v3023
    %3197 = vst.msk [vmem:[#allocation2 + $0xa0] sm:$0xff] %vm3176, %v3025
    %3198 = vst.msk [vmem:[#allocation2 + $0xa8] sm:$0xff] %vm3176, %v3027
    %3199 = vst.msk [vmem:[#allocation2 + $0xb0] sm:$0xff] %vm3176, %v3029
    %3200 = vst.msk [vmem:[#allocation2 + $0xb8] sm:$0xff] %vm3176, %v3031
    %3201 = vst.msk [vmem:[#allocation2 + $0xc0] sm:$0xff] %vm3176, %v3033
    %3202 = vst.msk [vmem:[#allocation2 + $0xc8] sm:$0xff] %vm3176, %v3035
    %3203 = vst.msk [vmem:[#allocation2 + $0xd0] sm:$0xff] %vm3176, %v3037
    %3204 = vst.msk [vmem:[#allocation2 + $0xd8] sm:$0xff] %vm3176, %v3039
    %3205 = vst.msk [vmem:[#allocation2 + $0xe0] sm:$0xff] %vm3176, %v3041
    %3206 = vst.msk [vmem:[#allocation2 + $0xe8] sm:$0xff] %vm3176, %v3043
    %3207 = vst.msk [vmem:[#allocation2 + $0xf0] sm:$0xff] %vm3176, %v3045
    %3208 = vst.msk [vmem:[#allocation2 + $0xf8] sm:$0xff] %vm3176, %v3047
    %3209 = vst.msk [vmem:[#allocation2 + $0x100] sm:$0xff] %vm3176, %v3049
    %3210 = vst.msk [vmem:[#allocation2 + $0x108] sm:$0xff] %vm3176, %v3051
    %3211 = vst.msk [vmem:[#allocation2 + $0x110] sm:$0xff] %vm3176, %v3053
    %3212 = vst.msk [vmem:[#allocation2 + $0x118] sm:$0xff] %vm3176, %v3055
    %3213 = vst.msk [vmem:[#allocation2 + $0x120] sm:$0xff] %vm3176, %v3057
    %3214 = vst.msk [vmem:[#allocation2 + $0x128] sm:$0xff] %vm3176, %v3059
    %3215 = vst.msk [vmem:[#allocation2 + $0x130] sm:$0xff] %vm3176, %v3061
    %3216 = vst.msk [vmem:[#allocation2 + $0x138] sm:$0xff] %vm3176, %v3063
    %3217 = vst.msk [vmem:[#allocation2 + $0x140] sm:$0xff] %vm3176, %v3065
    %3218 = vst.msk [vmem:[#allocation2 + $0x148] sm:$0xff] %vm3176, %v3067
    %3219 = vst.msk [vmem:[#allocation2 + $0x150] sm:$0xff] %vm3176, %v3069
    %3220 = vst.msk [vmem:[#allocation2 + $0x158] sm:$0xff] %vm3176, %v3071
    %3221 = vst.msk [vmem:[#allocation2 + $0x160] sm:$0xff] %vm3176, %v3073
    %3222 = vst.msk [vmem:[#allocation2 + $0x168] sm:$0xff] %vm3176, %v3075
    %3223 = vst.msk [vmem:[#allocation2 + $0x170] sm:$0xff] %vm3176, %v3077
    %3224 = vst.msk [vmem:[#allocation2 + $0x178] sm:$0xff] %vm3176, %v3079
    %3225 = vst.msk [vmem:[#allocation2 + $0x180] sm:$0xff] %vm3176, %v3081
    %3226 = vst.msk [vmem:[#allocation2 + $0x188] sm:$0xff] %vm3176, %v3083
    %3227 = vst.msk [vmem:[#allocation2 + $0x190] sm:$0xff] %vm3176, %v3085
    %3228 = vst.msk [vmem:[#allocation2 + $0x198] sm:$0xff] %vm3176, %v3087
    %3229 = vst.msk [vmem:[#allocation2 + $0x1a0] sm:$0xff] %vm3176, %v3089
    %3230 = vst.msk [vmem:[#allocation2 + $0x1a8] sm:$0xff] %vm3176, %v3091
    %3231 = vst.msk [vmem:[#allocation2 + $0x1b0] sm:$0xff] %vm3176, %v3093
    %3232 = vst.msk [vmem:[#allocation2 + $0x1b8] sm:$0xff] %vm3176, %v3095
    %3233 = vst.msk [vmem:[#allocation2 + $0x1c0] sm:$0xff] %vm3176, %v3097
    %3234 = vst.msk [vmem:[#allocation2 + $0x1c8] sm:$0xff] %vm3176, %v3099
    %3235 = vst.msk [vmem:[#allocation2 + $0x1d0] sm:$0xff] %vm3176, %v3101
    %3236 = vst.msk [vmem:[#allocation2 + $0x1d8] sm:$0xff] %vm3176, %v3103
    %3237 = vst.msk [vmem:[#allocation2 + $0x1e0] sm:$0xff] %vm3176, %v3105
    %3238 = vst.msk [vmem:[#allocation2 + $0x1e8] sm:$0xff] %vm3176, %v3107
    %3239 = vst.msk [vmem:[#allocation2 + $0x1f0] sm:$0xff] %vm3176, %v3109
    %3240 = vst.msk [vmem:[#allocation2 + $0x1f8] sm:$0xff] %vm3176, %v3111
    %v3241 = vld [vmem:[#allocation2] sm:$0xff]
    %v3242 = vld [vmem:[#allocation2 + $0x8] sm:$0xff]
    %v3243 = vld [vmem:[#allocation2 + $0x10] sm:$0xff]
    %v3244 = vld [vmem:[#allocation2 + $0x18] sm:$0xff]
    %v3245 = vld [vmem:[#allocation2 + $0x20] sm:$0xff]
    %v3246 = vld [vmem:[#allocation2 + $0x28] sm:$0xff]
    %v3247 = vld [vmem:[#allocation2 + $0x30] sm:$0xff]
    %v3248 = vld [vmem:[#allocation2 + $0x38] sm:$0xff]
    %v3249 = vld [vmem:[#allocation2 + $0x40] sm:$0xff]
    %v3250 = vld [vmem:[#allocation2 + $0x48] sm:$0xff]
    %v3251 = vld [vmem:[#allocation2 + $0x50] sm:$0xff]
    %v3252 = vld [vmem:[#allocation2 + $0x58] sm:$0xff]
    %v3253 = vld [vmem:[#allocation2 + $0x60] sm:$0xff]
    %v3254 = vld [vmem:[#allocation2 + $0x68] sm:$0xff]
    %v3255 = vld [vmem:[#allocation2 + $0x70] sm:$0xff]
    %v3256 = vld [vmem:[#allocation2 + $0x78] sm:$0xff]
    %v3257 = vld [vmem:[#allocation2 + $0x80] sm:$0xff]
    %v3258 = vld [vmem:[#allocation2 + $0x88] sm:$0xff]
    %v3259 = vld [vmem:[#allocation2 + $0x90] sm:$0xff]
    %v3260 = vld [vmem:[#allocation2 + $0x98] sm:$0xff]
    %v3261 = vld [vmem:[#allocation2 + $0xa0] sm:$0xff]
    %v3262 = vld [vmem:[#allocation2 + $0xa8] sm:$0xff]
    %v3263 = vld [vmem:[#allocation2 + $0xb0] sm:$0xff]
    %v3264 = vld [vmem:[#allocation2 + $0xb8] sm:$0xff]
    %v3265 = vld [vmem:[#allocation2 + $0xc0] sm:$0xff]
    %v3266 = vld [vmem:[#allocation2 + $0xc8] sm:$0xff]
    %v3267 = vld [vmem:[#allocation2 + $0xd0] sm:$0xff]
    %v3268 = vld [vmem:[#allocation2 + $0xd8] sm:$0xff]
    %v3269 = vld [vmem:[#allocation2 + $0xe0] sm:$0xff]
    %v3270 = vld [vmem:[#allocation2 + $0xe8] sm:$0xff]
    %v3271 = vld [vmem:[#allocation2 + $0xf0] sm:$0xff]
    %v3272 = vld [vmem:[#allocation2 + $0xf8] sm:$0xff]
    %v3273 = vld [vmem:[#allocation2 + $0x100] sm:$0xff]
    %v3274 = vld [vmem:[#allocation2 + $0x108] sm:$0xff]
    %v3275 = vld [vmem:[#allocation2 + $0x110] sm:$0xff]
    %v3276 = vld [vmem:[#allocation2 + $0x118] sm:$0xff]
    %v3277 = vld [vmem:[#allocation2 + $0x120] sm:$0xff]
    %v3278 = vld [vmem:[#allocation2 + $0x128] sm:$0xff]
    %v3279 = vld [vmem:[#allocation2 + $0x130] sm:$0xff]
    %v3280 = vld [vmem:[#allocation2 + $0x138] sm:$0xff]
    %v3281 = vld [vmem:[#allocation2 + $0x140] sm:$0xff]
    %v3282 = vld [vmem:[#allocation2 + $0x148] sm:$0xff]
    %v3283 = vld [vmem:[#allocation2 + $0x150] sm:$0xff]
    %v3284 = vld [vmem:[#allocation2 + $0x158] sm:$0xff]
    %v3285 = vld [vmem:[#allocation2 + $0x160] sm:$0xff]
    %v3286 = vld [vmem:[#allocation2 + $0x168] sm:$0xff]
    %v3287 = vld [vmem:[#allocation2 + $0x170] sm:$0xff]
    %v3288 = vld [vmem:[#allocation2 + $0x178] sm:$0xff]
    %v3289 = vld [vmem:[#allocation2 + $0x180] sm:$0xff]
    %v3290 = vld [vmem:[#allocation2 + $0x188] sm:$0xff]
    %v3291 = vld [vmem:[#allocation2 + $0x190] sm:$0xff]
    %v3292 = vld [vmem:[#allocation2 + $0x198] sm:$0xff]
    %v3293 = vld [vmem:[#allocation2 + $0x1a0] sm:$0xff]
    %v3294 = vld [vmem:[#allocation2 + $0x1a8] sm:$0xff]
    %v3295 = vld [vmem:[#allocation2 + $0x1b0] sm:$0xff]
    %v3296 = vld [vmem:[#allocation2 + $0x1b8] sm:$0xff]
    %v3297 = vld [vmem:[#allocation2 + $0x1c0] sm:$0xff]
    %v3298 = vld [vmem:[#allocation2 + $0x1c8] sm:$0xff]
    %v3299 = vld [vmem:[#allocation2 + $0x1d0] sm:$0xff]
    %v3300 = vld [vmem:[#allocation2 + $0x1d8] sm:$0xff]
    %v3301 = vld [vmem:[#allocation2 + $0x1e0] sm:$0xff]
    %v3302 = vld [vmem:[#allocation2 + $0x1e8] sm:$0xff]
    %v3303 = vld [vmem:[#allocation2 + $0x1f0] sm:$0xff]
    %v3304 = vld [vmem:[#allocation2 + $0x1f8] sm:$0xff]
    %v3305 = vld [vmem:[%s1] sm:$0xff]
    %v3306 = vld [vmem:[%s1 + $0x8] sm:$0xff]
    %v3307 = vld [vmem:[%s1 + $0x10] sm:$0xff]
    %v3308 = vld [vmem:[%s1 + $0x18] sm:$0xff]
    %v3309 = vld [vmem:[%s1 + $0x20] sm:$0xf]
    %v3310 = vld [vmem:[%s2] sm:$0x1]
    %v3312 = vlaneseq
    %v3313 = vshrl.u32 %v3312, 7
    %v3314 = vsub.s32 0, %v3313
    %v3315 = vrot.slane %v3310, %v3314
    %vm3317 = vcmask 293888
    %v3319 = vsel %vm3317, %v3241, 0
    %v3322 = vsel %vm3317, %v3242, 0
    %v3325 = vsel %vm3317, %v3243, 0
    %v3328 = vsel %vm3317, %v3244, 0
    %v3331 = vsel %vm3317, %v3245, 0
    %v3334 = vsel %vm3317, %v3246, 0
    %v3337 = vsel %vm3317, %v3247, 0
    %v3340 = vsel %vm3317, %v3248, 0
    %v3343 = vsel %vm3317, %v3249, 0
    %v3346 = vsel %vm3317, %v3250, 0
    %v3349 = vsel %vm3317, %v3251, 0
    %v3352 = vsel %vm3317, %v3252, 0
    %v3355 = vsel %vm3317, %v3253, 0
    %v3358 = vsel %vm3317, %v3254, 0
    %v3361 = vsel %vm3317, %v3255, 0
    %v3364 = vsel %vm3317, %v3256, 0
    %v3367 = vsel %vm3317, %v3257, 0
    %v3370 = vsel %vm3317, %v3258, 0
    %v3373 = vsel %vm3317, %v3259, 0
    %v3376 = vsel %vm3317, %v3260, 0
    %v3379 = vsel %vm3317, %v3261, 0
    %v3382 = vsel %vm3317, %v3262, 0
    %v3385 = vsel %vm3317, %v3263, 0
    %v3388 = vsel %vm3317, %v3264, 0
    %v3391 = vsel %vm3317, %v3265, 0
    %v3394 = vsel %vm3317, %v3266, 0
    %v3397 = vsel %vm3317, %v3267, 0
    %v3400 = vsel %vm3317, %v3268, 0
    %v3403 = vsel %vm3317, %v3269, 0
    %v3406 = vsel %vm3317, %v3270, 0
    %v3409 = vsel %vm3317, %v3271, 0
    %v3412 = vsel %vm3317, %v3272, 0
    %v3415 = vsel %vm3317, %v3273, 0
    %v3418 = vsel %vm3317, %v3274, 0
    %v3421 = vsel %vm3317, %v3275, 0
    %v3424 = vsel %vm3317, %v3276, 0
    %v3427 = vsel %vm3317, %v3277, 0
    %v3430 = vsel %vm3317, %v3278, 0
    %v3433 = vsel %vm3317, %v3279, 0
    %v3436 = vsel %vm3317, %v3280, 0
    %v3439 = vsel %vm3317, %v3281, 0
    %v3442 = vsel %vm3317, %v3282, 0
    %v3445 = vsel %vm3317, %v3283, 0
    %v3448 = vsel %vm3317, %v3284, 0
    %v3451 = vsel %vm3317, %v3285, 0
    %v3454 = vsel %vm3317, %v3286, 0
    %v3457 = vsel %vm3317, %v3287, 0
    %v3460 = vsel %vm3317, %v3288, 0
    %v3463 = vsel %vm3317, %v3289, 0
    %v3466 = vsel %vm3317, %v3290, 0
    %v3469 = vsel %vm3317, %v3291, 0
    %v3472 = vsel %vm3317, %v3292, 0
    %v3475 = vsel %vm3317, %v3293, 0
    %v3478 = vsel %vm3317, %v3294, 0
    %v3481 = vsel %vm3317, %v3295, 0
    %v3484 = vsel %vm3317, %v3296, 0
    %v3487 = vsel %vm3317, %v3297, 0
    %v3490 = vsel %vm3317, %v3298, 0
    %v3493 = vsel %vm3317, %v3299, 0
    %v3496 = vsel %vm3317, %v3300, 0
    %v3499 = vsel %vm3317, %v3301, 0
    %v3502 = vsel %vm3317, %v3302, 0
    %v3505 = vsel %vm3317, %v3303, 0
    %v3508 = vsel %vm3317, %v3304, 0
    %vm3510 = vcmask 1043456
    %v3512 = vsel %vm3510, %v3309, 0
    %3514 = vmatprep.subr.mxu0 0.0
    %3515 = vmatpush1.msra.mxu0 %v3305
    %3516 = vmatprep.subr.mxu0 0.0
    %3517 = vmatpush1.msra.mxu0 %v3306
    %3518 = vmatprep.subr.mxu0 0.0
    %3519 = vmatpush1.msra.mxu0 %v3307
    %3520 = vmatprep.subr.mxu0 0.0
    %3521 = vmatpush1.msra.mxu0 %v3308
    %3522 = vmatprep.subr.mxu0 0.0
    %3523 = vmatpush1.msra.mxu0 %v3512
    %3524 = vmatprep.subr.mxu0 0.0
    %3525 = vmatpush1.msra.mxu0 0.0
    %3526 = vmatprep.subr.mxu0 0.0
    %3527 = vmatpush1.msra.mxu0 0.0
    %3528 = vmatprep.subr.mxu0 0.0
    %3529 = vmatpush1.msra.mxu0 0.0
    %3530 = vmatprep.subr.mxu0 0.0
    %3531 = vmatpush1.msra.mxu0 0.0
    %3532 = vmatprep.subr.mxu0 0.0
    %3533 = vmatpush1.msra.mxu0 0.0
    %3534 = vmatprep.subr.mxu0 0.0
    %3535 = vmatpush1.msra.mxu0 0.0
    %3536 = vmatprep.subr.mxu0 0.0
    %3537 = vmatpush1.msra.mxu0 0.0
    %3538 = vmatprep.subr.mxu0 0.0
    %3539 = vmatpush1.msra.mxu0 0.0
    %3540 = vmatprep.subr.mxu0 0.0
    %3541 = vmatpush1.msra.mxu0 0.0
    %3542 = vmatprep.subr.mxu0 0.0
    %3543 = vmatpush1.msra.mxu0 0.0
    %3544 = vmatprep.subr.mxu0 0.0
    %3545 = vmatpush1.msra.mxu0 0.0
    %3546 = vmatprep.subr.mxu0 0.0
    %3547 = vmatpush1.msra.mxu0 0.0
    %3548 = vmatprep.subr.mxu0 0.0
    %3549 = vmatpush1.msra.mxu0 0.0
    %3550 = vmatprep.subr.mxu0 0.0
    %3551 = vmatpush1.msra.mxu0 0.0
    %3552 = vmatprep.subr.mxu0 0.0
    %3553 = vmatpush1.msra.mxu0 0.0
    %3554 = vmatprep.subr.mxu0 0.0
    %3555 = vmatpush1.msra.mxu0 0.0
    %3556 = vmatprep.subr.mxu0 0.0
    %3557 = vmatpush1.msra.mxu0 0.0
    %3558 = vmatprep.subr.mxu0 0.0
    %3559 = vmatpush1.msra.mxu0 0.0
    %3560 = vmatprep.subr.mxu0 0.0
    %3561 = vmatpush1.msra.mxu0 0.0
    %3562 = vmatprep.subr.mxu0 0.0
    %3563 = vmatpush1.msra.mxu0 0.0
    %3564 = vmatprep.subr.mxu0 0.0
    %3565 = vmatpush1.msra.mxu0 0.0
    %3566 = vmatprep.subr.mxu0 0.0
    %3567 = vmatpush1.msra.mxu0 0.0
    %3568 = vmatprep.subr.mxu0 0.0
    %3569 = vmatpush1.msra.mxu0 0.0
    %3570 = vmatprep.subr.mxu0 0.0
    %3571 = vmatpush1.msra.mxu0 0.0
    %3572 = vmatprep.subr.mxu0 0.0
    %3573 = vmatpush1.msra.mxu0 0.0
    %3574 = vmatprep.subr.mxu0 0.0
    %3575 = vmatpush1.msra.mxu0 0.0
    %3576 = vmatprep.subr.mxu0 0.0
    %3577 = vmatpush1.msra.mxu0 0.0
    %3578 = vmatprep.mubr.f32.mxu0 0.0
    %3579 = vmatmul.mubr.f32.gmra.mrb[0].mxu0 %v3319
    %v3580 = vpop.f32.mrb[0].mxu0
    %v3581 = vadd.f32 %v3315, %v3580
    %v3582 = vpop.f32.mrb[0].mxu0
    %3583 = vmatprep.mubr.f32.mxu0 0.0
    %3584 = vmatmul.mubr.f32.gmra.mrb[0].mxu0 %v3322
    %v3585 = vpop.f32.mrb[0].mxu0
    %v3586 = vadd.f32 %v3315, %v3585
    %v3587 = vpop.f32.mrb[0].mxu0
    %3588 = vmatprep.mubr.f32.mxu0 0.0
    %3589 = vmatmul.mubr.f32.gmra.mrb[0].mxu0 %v3325
    %v3590 = vpop.f32.mrb[0].mxu0
    %v3591 = vadd.f32 %v3315, %v3590
    %v3592 = vpop.f32.mrb[0].mxu0
    %3593 = vmatprep.mubr.f32.mxu0 0.0
    %3594 = vmatmul.mubr.f32.gmra.mrb[0].mxu0 %v3328
    %v3595 = vpop.f32.mrb[0].mxu0
    %v3596 = vadd.f32 %v3315, %v3595
    %v3597 = vpop.f32.mrb[0].mxu0
    %3598 = vmatprep.mubr.f32.mxu0 0.0
    %3599 = vmatmul.mubr.f32.gmra.mrb[0].mxu0 %v3331
    %v3600 = vpop.f32.mrb[0].mxu0
    %v3601 = vadd.f32 %v3315, %v3600
    %v3602 = vpop.f32.mrb[0].mxu0
    %3603 = vmatprep.mubr.f32.mxu0 0.0
    %3604 = vmatmul.mubr.f32.gmra.mrb[0].mxu0 %v3334
    %v3605 = vpop.f32.mrb[0].mxu0
    %v3606 = vadd.f32 %v3315, %v3605
    %v3607 = vpop.f32.mrb[0].mxu0
    %3608 = vmatprep.mubr.f32.mxu0 0.0
    %3609 = vmatmul.mubr.f32.gmra.mrb[0].mxu0 %v3337
    %v3610 = vpop.f32.mrb[0].mxu0
    %v3611 = vadd.f32 %v3315, %v3610
    %v3612 = vpop.f32.mrb[0].mxu0
    %3613 = vmatprep.mubr.f32.mxu0 0.0
    %3614 = vmatmul.mubr.f32.gmra.mrb[0].mxu0 %v3340
    %v3615 = vpop.f32.mrb[0].mxu0
    %v3616 = vadd.f32 %v3315, %v3615
    %v3617 = vpop.f32.mrb[0].mxu0
    %3618 = vmatprep.mubr.f32.mxu0 0.0
    %3619 = vmatmul.mubr.f32.gmra.mrb[0].mxu0 %v3343
    %v3620 = vpop.f32.mrb[0].mxu0
    %v3621 = vadd.f32 %v3315, %v3620
    %v3622 = vpop.f32.mrb[0].mxu0
    %3623 = vmatprep.mubr.f32.mxu0 0.0
    %3624 = vmatmul.mubr.f32.gmra.mrb[0].mxu0 %v3346
    %v3625 = vpop.f32.mrb[0].mxu0
    %v3626 = vadd.f32 %v3315, %v3625
    %v3627 = vpop.f32.mrb[0].mxu0
    %3628 = vmatprep.mubr.f32.mxu0 0.0
    %3629 = vmatmul.mubr.f32.gmra.mrb[0].mxu0 %v3349
    %v3630 = vpop.f32.mrb[0].mxu0
    %v3631 = vadd.f32 %v3315, %v3630
    %v3632 = vpop.f32.mrb[0].mxu0
    %3633 = vmatprep.mubr.f32.mxu0 0.0
    %3634 = vmatmul.mubr.f32.gmra.mrb[0].mxu0 %v3352
    %v3635 = vpop.f32.mrb[0].mxu0
    %v3636 = vadd.f32 %v3315, %v3635
    %v3637 = vpop.f32.mrb[0].mxu0
    %3638 = vmatprep.mubr.f32.mxu0 0.0
    %3639 = vmatmul.mubr.f32.gmra.mrb[0].mxu0 %v3355
    %v3640 = vpop.f32.mrb[0].mxu0
    %v3641 = vadd.f32 %v3315, %v3640
    %v3642 = vpop.f32.mrb[0].mxu0
    %3643 = vmatprep.mubr.f32.mxu0 0.0
    %3644 = vmatmul.mubr.f32.gmra.mrb[0].mxu0 %v3358
    %v3645 = vpop.f32.mrb[0].mxu0
    %v3646 = vadd.f32 %v3315, %v3645
    %v3647 = vpop.f32.mrb[0].mxu0
    %3648 = vmatprep.mubr.f32.mxu0 0.0
    %3649 = vmatmul.mubr.f32.gmra.mrb[0].mxu0 %v3361
    %v3650 = vpop.f32.mrb[0].mxu0
    %v3651 = vadd.f32 %v3315, %v3650
    %v3652 = vpop.f32.mrb[0].mxu0
    %3653 = vmatprep.mubr.f32.mxu0 0.0
    %3654 = vmatmul.mubr.f32.gmra.mrb[0].mxu0 %v3364
    %v3655 = vpop.f32.mrb[0].mxu0
    %v3656 = vadd.f32 %v3315, %v3655
    %v3657 = vpop.f32.mrb[0].mxu0
    %3658 = vmatprep.mubr.f32.mxu0 0.0
    %3659 = vmatmul.mubr.f32.gmra.mrb[0].mxu0 %v3367
    %v3660 = vpop.f32.mrb[0].mxu0
    %v3661 = vadd.f32 %v3315, %v3660
    %v3662 = vpop.f32.mrb[0].mxu0
    %3663 = vmatprep.mubr.f32.mxu0 0.0
    %3664 = vmatmul.mubr.f32.gmra.mrb[0].mxu0 %v3370
    %v3665 = vpop.f32.mrb[0].mxu0
    %v3666 = vadd.f32 %v3315, %v3665
    %v3667 = vpop.f32.mrb[0].mxu0
    %3668 = vmatprep.mubr.f32.mxu0 0.0
    %3669 = vmatmul.mubr.f32.gmra.mrb[0].mxu0 %v3373
    %v3670 = vpop.f32.mrb[0].mxu0
    %v3671 = vadd.f32 %v3315, %v3670
    %v3672 = vpop.f32.mrb[0].mxu0
    %3673 = vmatprep.mubr.f32.mxu0 0.0
    %3674 = vmatmul.mubr.f32.gmra.mrb[0].mxu0 %v3376
    %v3675 = vpop.f32.mrb[0].mxu0
    %v3676 = vadd.f32 %v3315, %v3675
    %v3677 = vpop.f32.mrb[0].mxu0
    %3678 = vmatprep.mubr.f32.mxu0 0.0
    %3679 = vmatmul.mubr.f32.gmra.mrb[0].mxu0 %v3379
    %v3680 = vpop.f32.mrb[0].mxu0
    %v3681 = vadd.f32 %v3315, %v3680
    %v3682 = vpop.f32.mrb[0].mxu0
    %3683 = vmatprep.mubr.f32.mxu0 0.0
    %3684 = vmatmul.mubr.f32.gmra.mrb[0].mxu0 %v3382
    %v3685 = vpop.f32.mrb[0].mxu0
    %v3686 = vadd.f32 %v3315, %v3685
    %v3687 = vpop.f32.mrb[0].mxu0
    %3688 = vmatprep.mubr.f32.mxu0 0.0
    %3689 = vmatmul.mubr.f32.gmra.mrb[0].mxu0 %v3385
    %v3690 = vpop.f32.mrb[0].mxu0
    %v3691 = vadd.f32 %v3315, %v3690
    %v3692 = vpop.f32.mrb[0].mxu0
    %3693 = vmatprep.mubr.f32.mxu0 0.0
    %3694 = vmatmul.mubr.f32.gmra.mrb[0].mxu0 %v3388
    %v3695 = vpop.f32.mrb[0].mxu0
    %v3696 = vadd.f32 %v3315, %v3695
    %v3697 = vpop.f32.mrb[0].mxu0
    %3698 = vmatprep.mubr.f32.mxu0 0.0
    %3699 = vmatmul.mubr.f32.gmra.mrb[0].mxu0 %v3391
    %v3700 = vpop.f32.mrb[0].mxu0
    %v3701 = vadd.f32 %v3315, %v3700
    %v3702 = vpop.f32.mrb[0].mxu0
    %3703 = vmatprep.mubr.f32.mxu0 0.0
    %3704 = vmatmul.mubr.f32.gmra.mrb[0].mxu0 %v3394
    %v3705 = vpop.f32.mrb[0].mxu0
    %v3706 = vadd.f32 %v3315, %v3705
    %v3707 = vpop.f32.mrb[0].mxu0
    %3708 = vmatprep.mubr.f32.mxu0 0.0
    %3709 = vmatmul.mubr.f32.gmra.mrb[0].mxu0 %v3397
    %v3710 = vpop.f32.mrb[0].mxu0
    %v3711 = vadd.f32 %v3315, %v3710
    %v3712 = vpop.f32.mrb[0].mxu0
    %3713 = vmatprep.mubr.f32.mxu0 0.0
    %3714 = vmatmul.mubr.f32.gmra.mrb[0].mxu0 %v3400
    %v3715 = vpop.f32.mrb[0].mxu0
    %v3716 = vadd.f32 %v3315, %v3715
    %v3717 = vpop.f32.mrb[0].mxu0
    %3718 = vmatprep.mubr.f32.mxu0 0.0
    %3719 = vmatmul.mubr.f32.gmra.mrb[0].mxu0 %v3403
    %v3720 = vpop.f32.mrb[0].mxu0
    %v3721 = vadd.f32 %v3315, %v3720
    %v3722 = vpop.f32.mrb[0].mxu0
    %3723 = vmatprep.mubr.f32.mxu0 0.0
    %3724 = vmatmul.mubr.f32.gmra.mrb[0].mxu0 %v3406
    %v3725 = vpop.f32.mrb[0].mxu0
    %v3726 = vadd.f32 %v3315, %v3725
    %v3727 = vpop.f32.mrb[0].mxu0
    %3728 = vmatprep.mubr.f32.mxu0 0.0
    %3729 = vmatmul.mubr.f32.gmra.mrb[0].mxu0 %v3409
    %v3730 = vpop.f32.mrb[0].mxu0
    %v3731 = vadd.f32 %v3315, %v3730
    %v3732 = vpop.f32.mrb[0].mxu0
    %3733 = vmatprep.mubr.f32.mxu0 0.0
    %3734 = vmatmul.mubr.f32.gmra.mrb[0].mxu0 %v3412
    %v3735 = vpop.f32.mrb[0].mxu0
    %v3736 = vadd.f32 %v3315, %v3735
    %v3737 = vpop.f32.mrb[0].mxu0
    %3738 = vmatprep.mubr.f32.mxu0 0.0
    %3739 = vmatmul.mubr.f32.gmra.mrb[0].mxu0 %v3415
    %v3740 = vpop.f32.mrb[0].mxu0
    %v3741 = vadd.f32 %v3315, %v3740
    %v3742 = vpop.f32.mrb[0].mxu0
    %3743 = vmatprep.mubr.f32.mxu0 0.0
    %3744 = vmatmul.mubr.f32.gmra.mrb[0].mxu0 %v3418
    %v3745 = vpop.f32.mrb[0].mxu0
    %v3746 = vadd.f32 %v3315, %v3745
    %v3747 = vpop.f32.mrb[0].mxu0
    %3748 = vmatprep.mubr.f32.mxu0 0.0
    %3749 = vmatmul.mubr.f32.gmra.mrb[0].mxu0 %v3421
    %v3750 = vpop.f32.mrb[0].mxu0
    %v3751 = vadd.f32 %v3315, %v3750
    %v3752 = vpop.f32.mrb[0].mxu0
    %3753 = vmatprep.mubr.f32.mxu0 0.0
    %3754 = vmatmul.mubr.f32.gmra.mrb[0].mxu0 %v3424
    %v3755 = vpop.f32.mrb[0].mxu0
    %v3756 = vadd.f32 %v3315, %v3755
    %v3757 = vpop.f32.mrb[0].mxu0
    %3758 = vmatprep.mubr.f32.mxu0 0.0
    %3759 = vmatmul.mubr.f32.gmra.mrb[0].mxu0 %v3427
    %v3760 = vpop.f32.mrb[0].mxu0
    %v3761 = vadd.f32 %v3315, %v3760
    %v3762 = vpop.f32.mrb[0].mxu0
    %3763 = vmatprep.mubr.f32.mxu0 0.0
    %3764 = vmatmul.mubr.f32.gmra.mrb[0].mxu0 %v3430
    %v3765 = vpop.f32.mrb[0].mxu0
    %v3766 = vadd.f32 %v3315, %v3765
    %v3767 = vpop.f32.mrb[0].mxu0
    %3768 = vmatprep.mubr.f32.mxu0 0.0
    %3769 = vmatmul.mubr.f32.gmra.mrb[0].mxu0 %v3433
    %v3770 = vpop.f32.mrb[0].mxu0
    %v3771 = vadd.f32 %v3315, %v3770
    %v3772 = vpop.f32.mrb[0].mxu0
    %3773 = vmatprep.mubr.f32.mxu0 0.0
    %3774 = vmatmul.mubr.f32.gmra.mrb[0].mxu0 %v3436
    %v3775 = vpop.f32.mrb[0].mxu0
    %v3776 = vadd.f32 %v3315, %v3775
    %v3777 = vpop.f32.mrb[0].mxu0
    %3778 = vmatprep.mubr.f32.mxu0 0.0
    %3779 = vmatmul.mubr.f32.gmra.mrb[0].mxu0 %v3439
    %v3780 = vpop.f32.mrb[0].mxu0
    %v3781 = vadd.f32 %v3315, %v3780
    %v3782 = vpop.f32.mrb[0].mxu0
    %3783 = vmatprep.mubr.f32.mxu0 0.0
    %3784 = vmatmul.mubr.f32.gmra.mrb[0].mxu0 %v3442
    %v3785 = vpop.f32.mrb[0].mxu0
    %v3786 = vadd.f32 %v3315, %v3785
    %v3787 = vpop.f32.mrb[0].mxu0
    %3788 = vmatprep.mubr.f32.mxu0 0.0
    %3789 = vmatmul.mubr.f32.gmra.mrb[0].mxu0 %v3445
    %v3790 = vpop.f32.mrb[0].mxu0
    %v3791 = vadd.f32 %v3315, %v3790
    %v3792 = vpop.f32.mrb[0].mxu0
    %3793 = vmatprep.mubr.f32.mxu0 0.0
    %3794 = vmatmul.mubr.f32.gmra.mrb[0].mxu0 %v3448
    %v3795 = vpop.f32.mrb[0].mxu0
    %v3796 = vadd.f32 %v3315, %v3795
    %v3797 = vpop.f32.mrb[0].mxu0
    %3798 = vmatprep.mubr.f32.mxu0 0.0
    %3799 = vmatmul.mubr.f32.gmra.mrb[0].mxu0 %v3451
    %v3800 = vpop.f32.mrb[0].mxu0
    %v3801 = vadd.f32 %v3315, %v3800
    %v3802 = vpop.f32.mrb[0].mxu0
    %3803 = vmatprep.mubr.f32.mxu0 0.0
    %3804 = vmatmul.mubr.f32.gmra.mrb[0].mxu0 %v3454
    %v3805 = vpop.f32.mrb[0].mxu0
    %v3806 = vadd.f32 %v3315, %v3805
    %v3807 = vpop.f32.mrb[0].mxu0
    %3808 = vmatprep.mubr.f32.mxu0 0.0
    %3809 = vmatmul.mubr.f32.gmra.mrb[0].mxu0 %v3457
    %v3810 = vpop.f32.mrb[0].mxu0
    %v3811 = vadd.f32 %v3315, %v3810
    %v3812 = vpop.f32.mrb[0].mxu0
    %3813 = vmatprep.mubr.f32.mxu0 0.0
    %3814 = vmatmul.mubr.f32.gmra.mrb[0].mxu0 %v3460
    %v3815 = vpop.f32.mrb[0].mxu0
    %v3816 = vadd.f32 %v3315, %v3815
    %v3817 = vpop.f32.mrb[0].mxu0
    %3818 = vmatprep.mubr.f32.mxu0 0.0
    %3819 = vmatmul.mubr.f32.gmra.mrb[0].mxu0 %v3463
    %v3820 = vpop.f32.mrb[0].mxu0
    %v3821 = vadd.f32 %v3315, %v3820
    %v3822 = vpop.f32.mrb[0].mxu0
    %3823 = vmatprep.mubr.f32.mxu0 0.0
    %3824 = vmatmul.mubr.f32.gmra.mrb[0].mxu0 %v3466
    %v3825 = vpop.f32.mrb[0].mxu0
    %v3826 = vadd.f32 %v3315, %v3825
    %v3827 = vpop.f32.mrb[0].mxu0
    %3828 = vmatprep.mubr.f32.mxu0 0.0
    %3829 = vmatmul.mubr.f32.gmra.mrb[0].mxu0 %v3469
    %v3830 = vpop.f32.mrb[0].mxu0
    %v3831 = vadd.f32 %v3315, %v3830
    %v3832 = vpop.f32.mrb[0].mxu0
    %3833 = vmatprep.mubr.f32.mxu0 0.0
    %3834 = vmatmul.mubr.f32.gmra.mrb[0].mxu0 %v3472
    %v3835 = vpop.f32.mrb[0].mxu0
    %v3836 = vadd.f32 %v3315, %v3835
    %v3837 = vpop.f32.mrb[0].mxu0
    %3838 = vmatprep.mubr.f32.mxu0 0.0
    %3839 = vmatmul.mubr.f32.gmra.mrb[0].mxu0 %v3475
    %v3840 = vpop.f32.mrb[0].mxu0
    %v3841 = vadd.f32 %v3315, %v3840
    %v3842 = vpop.f32.mrb[0].mxu0
    %3843 = vmatprep.mubr.f32.mxu0 0.0
    %3844 = vmatmul.mubr.f32.gmra.mrb[0].mxu0 %v3478
    %v3845 = vpop.f32.mrb[0].mxu0
    %v3846 = vadd.f32 %v3315, %v3845
    %v3847 = vpop.f32.mrb[0].mxu0
    %3848 = vmatprep.mubr.f32.mxu0 0.0
    %3849 = vmatmul.mubr.f32.gmra.mrb[0].mxu0 %v3481
    %v3850 = vpop.f32.mrb[0].mxu0
    %v3851 = vadd.f32 %v3315, %v3850
    %v3852 = vpop.f32.mrb[0].mxu0
    %3853 = vmatprep.mubr.f32.mxu0 0.0
    %3854 = vmatmul.mubr.f32.gmra.mrb[0].mxu0 %v3484
    %v3855 = vpop.f32.mrb[0].mxu0
    %v3856 = vadd.f32 %v3315, %v3855
    %v3857 = vpop.f32.mrb[0].mxu0
    %3858 = vmatprep.mubr.f32.mxu0 0.0
    %3859 = vmatmul.mubr.f32.gmra.mrb[0].mxu0 %v3487
    %v3860 = vpop.f32.mrb[0].mxu0
    %v3861 = vadd.f32 %v3315, %v3860
    %v3862 = vpop.f32.mrb[0].mxu0
    %3863 = vmatprep.mubr.f32.mxu0 0.0
    %3864 = vmatmul.mubr.f32.gmra.mrb[0].mxu0 %v3490
    %v3865 = vpop.f32.mrb[0].mxu0
    %v3866 = vadd.f32 %v3315, %v3865
    %v3867 = vpop.f32.mrb[0].mxu0
    %3868 = vmatprep.mubr.f32.mxu0 0.0
    %3869 = vmatmul.mubr.f32.gmra.mrb[0].mxu0 %v3493
    %v3870 = vpop.f32.mrb[0].mxu0
    %v3871 = vadd.f32 %v3315, %v3870
    %v3872 = vpop.f32.mrb[0].mxu0
    %3873 = vmatprep.mubr.f32.mxu0 0.0
    %3874 = vmatmul.mubr.f32.gmra.mrb[0].mxu0 %v3496
    %v3875 = vpop.f32.mrb[0].mxu0
    %v3876 = vadd.f32 %v3315, %v3875
    %v3877 = vpop.f32.mrb[0].mxu0
    %3878 = vmatprep.mubr.f32.mxu0 0.0
    %3879 = vmatmul.mubr.f32.gmra.mrb[0].mxu0 %v3499
    %v3880 = vpop.f32.mrb[0].mxu0
    %v3881 = vadd.f32 %v3315, %v3880
    %v3882 = vpop.f32.mrb[0].mxu0
    %3883 = vmatprep.mubr.f32.mxu0 0.0
    %3884 = vmatmul.mubr.f32.gmra.mrb[0].mxu0 %v3502
    %v3885 = vpop.f32.mrb[0].mxu0
    %v3886 = vadd.f32 %v3315, %v3885
    %v3887 = vpop.f32.mrb[0].mxu0
    %3888 = vmatprep.mubr.f32.mxu0 0.0
    %3889 = vmatmul.mubr.f32.gmra.mrb[0].mxu0 %v3505
    %v3890 = vpop.f32.mrb[0].mxu0
    %v3891 = vadd.f32 %v3315, %v3890
    %v3892 = vpop.f32.mrb[0].mxu0
    %3893 = vmatprep.mubr.f32.mxu0 0.0
    %3894 = vmatmul.mubr.f32.gmra.mrb[0].mxu0 %v3508
    %v3895 = vpop.f32.mrb[0].mxu0
    %v3896 = vadd.f32 %v3315, %v3895
    %v3897 = vpop.f32.mrb[0].mxu0
    %3898 = vdwg.mxu0
    %v3899 = vmax.f32 %v3581, 0.0
    %v3900 = vmax.f32 %v3586, 0.0
    %v3901 = vmax.f32 %v3591, 0.0
    %v3902 = vmax.f32 %v3596, 0.0
    %v3903 = vmax.f32 %v3601, 0.0
    %v3904 = vmax.f32 %v3606, 0.0
    %v3905 = vmax.f32 %v3611, 0.0
    %v3906 = vmax.f32 %v3616, 0.0
    %v3907 = vmax.f32 %v3621, 0.0
    %v3908 = vmax.f32 %v3626, 0.0
    %v3909 = vmax.f32 %v3631, 0.0
    %v3910 = vmax.f32 %v3636, 0.0
    %v3911 = vmax.f32 %v3641, 0.0
    %v3912 = vmax.f32 %v3646, 0.0
    %v3913 = vmax.f32 %v3651, 0.0
    %v3914 = vmax.f32 %v3656, 0.0
    %v3915 = vmax.f32 %v3661, 0.0
    %v3916 = vmax.f32 %v3666, 0.0
    %v3917 = vmax.f32 %v3671, 0.0
    %v3918 = vmax.f32 %v3676, 0.0
    %v3919 = vmax.f32 %v3681, 0.0
    %v3920 = vmax.f32 %v3686, 0.0
    %v3921 = vmax.f32 %v3691, 0.0
    %v3922 = vmax.f32 %v3696, 0.0
    %v3923 = vmax.f32 %v3701, 0.0
    %v3924 = vmax.f32 %v3706, 0.0
    %v3925 = vmax.f32 %v3711, 0.0
    %v3926 = vmax.f32 %v3716, 0.0
    %v3927 = vmax.f32 %v3721, 0.0
    %v3928 = vmax.f32 %v3726, 0.0
    %v3929 = vmax.f32 %v3731, 0.0
    %v3930 = vmax.f32 %v3736, 0.0
    %v3931 = vmax.f32 %v3741, 0.0
    %v3932 = vmax.f32 %v3746, 0.0
    %v3933 = vmax.f32 %v3751, 0.0
    %v3934 = vmax.f32 %v3756, 0.0
    %v3935 = vmax.f32 %v3761, 0.0
    %v3936 = vmax.f32 %v3766, 0.0
    %v3937 = vmax.f32 %v3771, 0.0
    %v3938 = vmax.f32 %v3776, 0.0
    %v3939 = vmax.f32 %v3781, 0.0
    %v3940 = vmax.f32 %v3786, 0.0
    %v3941 = vmax.f32 %v3791, 0.0
    %v3942 = vmax.f32 %v3796, 0.0
    %v3943 = vmax.f32 %v3801, 0.0
    %v3944 = vmax.f32 %v3806, 0.0
    %v3945 = vmax.f32 %v3811, 0.0
    %v3946 = vmax.f32 %v3816, 0.0
    %v3947 = vmax.f32 %v3821, 0.0
    %v3948 = vmax.f32 %v3826, 0.0
    %v3949 = vmax.f32 %v3831, 0.0
    %v3950 = vmax.f32 %v3836, 0.0
    %v3951 = vmax.f32 %v3841, 0.0
    %v3952 = vmax.f32 %v3846, 0.0
    %v3953 = vmax.f32 %v3851, 0.0
    %v3954 = vmax.f32 %v3856, 0.0
    %v3955 = vmax.f32 %v3861, 0.0
    %v3956 = vmax.f32 %v3866, 0.0
    %v3957 = vmax.f32 %v3871, 0.0
    %v3958 = vmax.f32 %v3876, 0.0
    %v3959 = vmax.f32 %v3881, 0.0
    %v3960 = vmax.f32 %v3886, 0.0
    %v3961 = vmax.f32 %v3891, 0.0
    %v3962 = vmax.f32 %v3896, 0.0
    %v3963 = vld [vmem:[%s3] sm:$0xff]
    %v3964 = vld [vmem:[%s3 + $0x8] sm:$0xff]
    %v3965 = vld [vmem:[%s3 + $0x10] sm:$0xff]
    %v3966 = vld [vmem:[%s3 + $0x18] sm:$0xff]
    %v3967 = vld [vmem:[%s3 + $0x20] sm:$0xff]
    %v3968 = vld [vmem:[%s3 + $0x28] sm:$0xff]
    %v3969 = vld [vmem:[%s3 + $0x30] sm:$0xff]
    %v3970 = vld [vmem:[%s3 + $0x38] sm:$0xff]
    %v3971 = vld [vmem:[%s3 + $0x40] sm:$0xff]
    %v3972 = vld [vmem:[%s3 + $0x48] sm:$0xff]
    %v3973 = vld [vmem:[%s3 + $0x50] sm:$0xff]
    %v3974 = vld [vmem:[%s3 + $0x58] sm:$0xff]
    %v3975 = vld [vmem:[%s3 + $0x60] sm:$0xff]
    %v3976 = vld [vmem:[%s3 + $0x68] sm:$0xff]
    %v3977 = vld [vmem:[%s3 + $0x70] sm:$0xff]
    %v3978 = vld [vmem:[%s3 + $0x78] sm:$0xff]
    %v3979 = vld [vmem:[%s3 + $0x80] sm:$0xff]
    %v3980 = vld [vmem:[%s3 + $0x88] sm:$0xff]
    %v3981 = vld [vmem:[%s3 + $0x90] sm:$0xff]
    %v3982 = vld [vmem:[%s3 + $0x98] sm:$0xff]
    %v3983 = vld [vmem:[%s3 + $0xa0] sm:$0xff]
    %v3984 = vld [vmem:[%s3 + $0xa8] sm:$0xff]
    %v3985 = vld [vmem:[%s3 + $0xb0] sm:$0xff]
    %v3986 = vld [vmem:[%s3 + $0xb8] sm:$0xff]
    %v3987 = vld [vmem:[%s3 + $0xc0] sm:$0xff]
    %v3988 = vld [vmem:[%s3 + $0xc8] sm:$0xff]
    %v3989 = vld [vmem:[%s3 + $0xd0] sm:$0xff]
    %v3990 = vld [vmem:[%s3 + $0xd8] sm:$0xff]
    %v3991 = vld [vmem:[%s3 + $0xe0] sm:$0xff]
    %v3992 = vld [vmem:[%s3 + $0xe8] sm:$0xff]
    %v3993 = vld [vmem:[%s3 + $0xf0] sm:$0xff]
    %v3994 = vld [vmem:[%s3 + $0xf8] sm:$0xff]
    %v3995 = vld [vmem:[%s3 + $0x100] sm:$0xff]
    %v3996 = vld [vmem:[%s3 + $0x108] sm:$0xff]
    %v3997 = vld [vmem:[%s3 + $0x110] sm:$0xff]
    %v3998 = vld [vmem:[%s3 + $0x118] sm:$0xff]
    %v3999 = vld [vmem:[%s3 + $0x120] sm:$0xff]
    %v4000 = vld [vmem:[%s3 + $0x128] sm:$0xff]
    %v4001 = vld [vmem:[%s3 + $0x130] sm:$0xff]
    %v4002 = vld [vmem:[%s3 + $0x138] sm:$0xff]
    %v4003 = vld [vmem:[%s3 + $0x140] sm:$0xff]
    %v4004 = vld [vmem:[%s3 + $0x148] sm:$0xff]
    %v4005 = vld [vmem:[%s3 + $0x150] sm:$0xff]
    %v4006 = vld [vmem:[%s3 + $0x158] sm:$0xff]
    %v4007 = vld [vmem:[%s3 + $0x160] sm:$0xff]
    %v4008 = vld [vmem:[%s3 + $0x168] sm:$0xff]
    %v4009 = vld [vmem:[%s3 + $0x170] sm:$0xff]
    %v4010 = vld [vmem:[%s3 + $0x178] sm:$0xff]
    %v4011 = vld [vmem:[%s3 + $0x180] sm:$0xff]
    %v4012 = vld [vmem:[%s3 + $0x188] sm:$0xff]
    %v4013 = vld [vmem:[%s3 + $0x190] sm:$0xff]
    %v4014 = vld [vmem:[%s3 + $0x198] sm:$0xff]
    %v4015 = vld [vmem:[%s3 + $0x1a0] sm:$0xff]
    %v4016 = vld [vmem:[%s3 + $0x1a8] sm:$0xff]
    %v4017 = vld [vmem:[%s3 + $0x1b0] sm:$0xff]
    %v4018 = vld [vmem:[%s3 + $0x1b8] sm:$0xff]
    %v4019 = vld [vmem:[%s3 + $0x1c0] sm:$0xff]
    %v4020 = vld [vmem:[%s3 + $0x1c8] sm:$0xff]
    %v4021 = vld [vmem:[%s3 + $0x1d0] sm:$0xff]
    %v4022 = vld [vmem:[%s3 + $0x1d8] sm:$0xff]
    %v4023 = vld [vmem:[%s3 + $0x1e0] sm:$0xff]
    %v4024 = vld [vmem:[%s3 + $0x1e8] sm:$0xff]
    %v4025 = vld [vmem:[%s3 + $0x1f0] sm:$0xff]
    %v4026 = vld [vmem:[%s3 + $0x1f8] sm:$0xff]
    %4027 = vmatprep.subr.mxu0 0.0
    %4028 = vmatpush1.msra.mxu0 %v3899
    %4029 = vmatprep.subr.mxu0 0.0
    %4030 = vmatpush1.msra.mxu0 %v3900
    %4031 = vmatprep.subr.mxu0 0.0
    %4032 = vmatpush1.msra.mxu0 %v3901
    %4033 = vmatprep.subr.mxu0 0.0
    %4034 = vmatpush1.msra.mxu0 %v3902
    %4035 = vmatprep.subr.mxu0 0.0
    %4036 = vmatpush1.msra.mxu0 %v3903
    %4037 = vmatprep.subr.mxu0 0.0
    %4038 = vmatpush1.msra.mxu0 %v3904
    %4039 = vmatprep.subr.mxu0 0.0
    %4040 = vmatpush1.msra.mxu0 %v3905
    %4041 = vmatprep.subr.mxu0 0.0
    %4042 = vmatpush1.msra.mxu0 %v3906
    %4043 = vmatprep.subr.mxu0 0.0
    %4044 = vmatpush1.msra.mxu0 %v3907
    %4045 = vmatprep.subr.mxu0 0.0
    %4046 = vmatpush1.msra.mxu0 %v3908
    %4047 = vmatprep.subr.mxu0 0.0
    %4048 = vmatpush1.msra.mxu0 %v3909
    %4049 = vmatprep.subr.mxu0 0.0
    %4050 = vmatpush1.msra.mxu0 %v3910
    %4051 = vmatprep.subr.mxu0 0.0
    %4052 = vmatpush1.msra.mxu0 %v3911
    %4053 = vmatprep.subr.mxu0 0.0
    %4054 = vmatpush1.msra.mxu0 %v3912
    %4055 = vmatprep.subr.mxu0 0.0
    %4056 = vmatpush1.msra.mxu0 %v3913
    %4057 = vmatprep.subr.mxu0 0.0
    %4058 = vmatpush1.msra.mxu0 %v3914
    %4059 = vmatprep.subr.mxu0 0.0
    %4060 = vmatpush1.msra.mxu0 %v3915
    %4061 = vmatprep.subr.mxu0 0.0
    %4062 = vmatpush1.msra.mxu0 %v3916
    %4063 = vmatprep.subr.mxu0 0.0
    %4064 = vmatpush1.msra.mxu0 %v3917
    %4065 = vmatprep.subr.mxu0 0.0
    %4066 = vmatpush1.msra.mxu0 %v3918
    %4067 = vmatprep.subr.mxu0 0.0
    %4068 = vmatpush1.msra.mxu0 %v3919
    %4069 = vmatprep.subr.mxu0 0.0
    %4070 = vmatpush1.msra.mxu0 %v3920
    %4071 = vmatprep.subr.mxu0 0.0
    %4072 = vmatpush1.msra.mxu0 %v3921
    %4073 = vmatprep.subr.mxu0 0.0
    %4074 = vmatpush1.msra.mxu0 %v3922
    %4075 = vmatprep.subr.mxu0 0.0
    %4076 = vmatpush1.msra.mxu0 %v3923
    %4077 = vmatprep.subr.mxu0 0.0
    %4078 = vmatpush1.msra.mxu0 %v3924
    %4079 = vmatprep.subr.mxu0 0.0
    %4080 = vmatpush1.msra.mxu0 %v3925
    %4081 = vmatprep.subr.mxu0 0.0
    %4082 = vmatpush1.msra.mxu0 %v3926
    %4083 = vmatprep.subr.mxu0 0.0
    %4084 = vmatpush1.msra.mxu0 %v3927
    %4085 = vmatprep.subr.mxu0 0.0
    %4086 = vmatpush1.msra.mxu0 %v3928
    %4087 = vmatprep.subr.mxu0 0.0
    %4088 = vmatpush1.msra.mxu0 %v3929
    %4089 = vmatprep.subr.mxu0 0.0
    %4090 = vmatpush1.msra.mxu0 %v3930
    %4091 = vmatprep.mubr.f32.mxu0 %v3964
    %4092 = vmatmul.mubr.f32.gmra.mrb[0].mxu0 %v3963
    %v4093 = vpop.f32.mrb[0].mxu0
    %v4094 = vadd.f32 0.0, %v4093
    %v4095 = vpop.f32.mrb[0].mxu0
    %4096 = vmatprep.mubr.f32.mxu0 %v3968
    %4097 = vmatmul.mubr.f32.gmra.mrb[0].mxu0 %v3967
    %v4098 = vpop.f32.mrb[0].mxu0
    %v4099 = vadd.f32 0.0, %v4098
    %v4100 = vpop.f32.mrb[0].mxu0
    %4101 = vmatprep.mubr.f32.mxu0 %v3972
    %4102 = vmatmul.mubr.f32.gmra.mrb[0].mxu0 %v3971
    %v4103 = vpop.f32.mrb[0].mxu0
    %v4104 = vadd.f32 0.0, %v4103
    %v4105 = vpop.f32.mrb[0].mxu0
    %4106 = vmatprep.mubr.f32.mxu0 %v3976
    %4107 = vmatmul.mubr.f32.gmra.mrb[0].mxu0 %v3975
    %v4108 = vpop.f32.mrb[0].mxu0
    %v4109 = vadd.f32 0.0, %v4108
    %v4110 = vpop.f32.mrb[0].mxu0
    %4111 = vmatprep.mubr.f32.mxu0 %v3980
    %4112 = vmatmul.mubr.f32.gmra.mrb[0].mxu0 %v3979
    %v4113 = vpop.f32.mrb[0].mxu0
    %v4114 = vadd.f32 0.0, %v4113
    %v4115 = vpop.f32.mrb[0].mxu0
    %4116 = vmatprep.mubr.f32.mxu0 %v3984
    %4117 = vmatmul.mubr.f32.gmra.mrb[0].mxu0 %v3983
    %v4118 = vpop.f32.mrb[0].mxu0
    %v4119 = vadd.f32 0.0, %v4118
    %v4120 = vpop.f32.mrb[0].mxu0
    %4121 = vmatprep.mubr.f32.mxu0 %v3988
    %4122 = vmatmul.mubr.f32.gmra.mrb[0].mxu0 %v3987
    %v4123 = vpop.f32.mrb[0].mxu0
    %v4124 = vadd.f32 0.0, %v4123
    %v4125 = vpop.f32.mrb[0].mxu0
    %4126 = vmatprep.mubr.f32.mxu0 %v3992
    %4127 = vmatmul.mubr.f32.gmra.mrb[0].mxu0 %v3991
    %v4128 = vpop.f32.mrb[0].mxu0
    %v4129 = vadd.f32 0.0, %v4128
    %v4130 = vpop.f32.mrb[0].mxu0
    %4131 = vmatprep.mubr.f32.mxu0 %v3996
    %4132 = vmatmul.mubr.f32.gmra.mrb[0].mxu0 %v3995
    %v4133 = vpop.f32.mrb[0].mxu0
    %v4134 = vadd.f32 0.0, %v4133
    %v4135 = vpop.f32.mrb[0].mxu0
    %4136 = vmatprep.mubr.f32.mxu0 %v4000
    %4137 = vmatmul.mubr.f32.gmra.mrb[0].mxu0 %v3999
    %v4138 = vpop.f32.mrb[0].mxu0
    %v4139 = vadd.f32 0.0, %v4138
    %v4140 = vpop.f32.mrb[0].mxu0
    %4141 = vmatprep.mubr.f32.mxu0 %v4004
    %4142 = vmatmul.mubr.f32.gmra.mrb[0].mxu0 %v4003
    %v4143 = vpop.f32.mrb[0].mxu0
    %v4144 = vadd.f32 0.0, %v4143
    %v4145 = vpop.f32.mrb[0].mxu0
    %4146 = vmatprep.mubr.f32.mxu0 %v4008
    %4147 = vmatmul.mubr.f32.gmra.mrb[0].mxu0 %v4007
    %v4148 = vpop.f32.mrb[0].mxu0
    %v4149 = vadd.f32 0.0, %v4148
    %v4150 = vpop.f32.mrb[0].mxu0
    %4151 = vmatprep.mubr.f32.mxu0 %v4012
    %4152 = vmatmul.mubr.f32.gmra.mrb[0].mxu0 %v4011
    %v4153 = vpop.f32.mrb[0].mxu0
    %v4154 = vadd.f32 0.0, %v4153
    %v4155 = vpop.f32.mrb[0].mxu0
    %4156 = vmatprep.mubr.f32.mxu0 %v4016
    %4157 = vmatmul.mubr.f32.gmra.mrb[0].mxu0 %v4015
    %v4158 = vpop.f32.mrb[0].mxu0
    %v4159 = vadd.f32 0.0, %v4158
    %v4160 = vpop.f32.mrb[0].mxu0
    %4161 = vmatprep.mubr.f32.mxu0 %v4020
    %4162 = vmatmul.mubr.f32.gmra.mrb[0].mxu0 %v4019
    %v4163 = vpop.f32.mrb[0].mxu0
    %v4164 = vadd.f32 0.0, %v4163
    %v4165 = vpop.f32.mrb[0].mxu0
    %4166 = vmatprep.mubr.f32.mxu0 %v4024
    %4167 = vmatmul.mubr.f32.gmra.mrb[0].mxu0 %v4023
    %v4168 = vpop.f32.mrb[0].mxu0
    %v4169 = vadd.f32 0.0, %v4168
    %v4170 = vpop.f32.mrb[0].mxu0
    %4171 = vdwg.mxu0
    %4172 = vmatprep.subr.mxu0 0.0
    %4173 = vmatpush1.msra.mxu0 %v3931
    %4174 = vmatprep.subr.mxu0 0.0
    %4175 = vmatpush1.msra.mxu0 %v3932
    %4176 = vmatprep.subr.mxu0 0.0
    %4177 = vmatpush1.msra.mxu0 %v3933
    %4178 = vmatprep.subr.mxu0 0.0
    %4179 = vmatpush1.msra.mxu0 %v3934
    %4180 = vmatprep.subr.mxu0 0.0
    %4181 = vmatpush1.msra.mxu0 %v3935
    %4182 = vmatprep.subr.mxu0 0.0
    %4183 = vmatpush1.msra.mxu0 %v3936
    %4184 = vmatprep.subr.mxu0 0.0
    %4185 = vmatpush1.msra.mxu0 %v3937
    %4186 = vmatprep.subr.mxu0 0.0
    %4187 = vmatpush1.msra.mxu0 %v3938
    %4188 = vmatprep.subr.mxu0 0.0
    %4189 = vmatpush1.msra.mxu0 %v3939
    %4190 = vmatprep.subr.mxu0 0.0
    %4191 = vmatpush1.msra.mxu0 %v3940
    %4192 = vmatprep.subr.mxu0 0.0
    %4193 = vmatpush1.msra.mxu0 %v3941
    %4194 = vmatprep.subr.mxu0 0.0
    %4195 = vmatpush1.msra.mxu0 %v3942
    %4196 = vmatprep.subr.mxu0 0.0
    %4197 = vmatpush1.msra.mxu0 %v3943
    %4198 = vmatprep.subr.mxu0 0.0
    %4199 = vmatpush1.msra.mxu0 %v3944
    %4200 = vmatprep.subr.mxu0 0.0
    %4201 = vmatpush1.msra.mxu0 %v3945
    %4202 = vmatprep.subr.mxu0 0.0
    %4203 = vmatpush1.msra.mxu0 %v3946
    %4204 = vmatprep.subr.mxu0 0.0
    %4205 = vmatpush1.msra.mxu0 %v3947
    %4206 = vmatprep.subr.mxu0 0.0
    %4207 = vmatpush1.msra.mxu0 %v3948
    %4208 = vmatprep.subr.mxu0 0.0
    %4209 = vmatpush1.msra.mxu0 %v3949
    %4210 = vmatprep.subr.mxu0 0.0
    %4211 = vmatpush1.msra.mxu0 %v3950
    %4212 = vmatprep.subr.mxu0 0.0
    %4213 = vmatpush1.msra.mxu0 %v3951
    %4214 = vmatprep.subr.mxu0 0.0
    %4215 = vmatpush1.msra.mxu0 %v3952
    %4216 = vmatprep.subr.mxu0 0.0
    %4217 = vmatpush1.msra.mxu0 %v3953
    %4218 = vmatprep.subr.mxu0 0.0
    %4219 = vmatpush1.msra.mxu0 %v3954
    %4220 = vmatprep.subr.mxu0 0.0
    %4221 = vmatpush1.msra.mxu0 %v3955
    %4222 = vmatprep.subr.mxu0 0.0
    %4223 = vmatpush1.msra.mxu0 %v3956
    %4224 = vmatprep.subr.mxu0 0.0
    %4225 = vmatpush1.msra.mxu0 %v3957
    %4226 = vmatprep.subr.mxu0 0.0
    %4227 = vmatpush1.msra.mxu0 %v3958
    %4228 = vmatprep.subr.mxu0 0.0
    %4229 = vmatpush1.msra.mxu0 %v3959
    %4230 = vmatprep.subr.mxu0 0.0
    %4231 = vmatpush1.msra.mxu0 %v3960
    %4232 = vmatprep.subr.mxu0 0.0
    %4233 = vmatpush1.msra.mxu0 %v3961
    %4234 = vmatprep.subr.mxu0 0.0
    %4235 = vmatpush1.msra.mxu0 %v3962
    %4236 = vmatprep.mubr.f32.mxu0 %v3966
    %4237 = vmatmul.mubr.f32.gmra.mrb[0].mxu0 %v3965
    %v4238 = vpop.f32.mrb[0].mxu0
    %v4239 = vadd.f32 %v4094, %v4238
    %v4240 = vpop.f32.mrb[0].mxu0
    %4241 = vmatprep.mubr.f32.mxu0 %v3970
    %4242 = vmatmul.mubr.f32.gmra.mrb[0].mxu0 %v3969
    %v4243 = vpop.f32.mrb[0].mxu0
    %v4244 = vadd.f32 %v4099, %v4243
    %v4245 = vpop.f32.mrb[0].mxu0
    %4246 = vmatprep.mubr.f32.mxu0 %v3974
    %4247 = vmatmul.mubr.f32.gmra.mrb[0].mxu0 %v3973
    %v4248 = vpop.f32.mrb[0].mxu0
    %v4249 = vadd.f32 %v4104, %v4248
    %v4250 = vpop.f32.mrb[0].mxu0
    %4251 = vmatprep.mubr.f32.mxu0 %v3978
    %4252 = vmatmul.mubr.f32.gmra.mrb[0].mxu0 %v3977
    %v4253 = vpop.f32.mrb[0].mxu0
    %v4254 = vadd.f32 %v4109, %v4253
    %v4255 = vpop.f32.mrb[0].mxu0
    %4256 = vmatprep.mubr.f32.mxu0 %v3982
    %4257 = vmatmul.mubr.f32.gmra.mrb[0].mxu0 %v3981
    %v4258 = vpop.f32.mrb[0].mxu0
    %v4259 = vadd.f32 %v4114, %v4258
    %v4260 = vpop.f32.mrb[0].mxu0
    %4261 = vmatprep.mubr.f32.mxu0 %v3986
    %4262 = vmatmul.mubr.f32.gmra.mrb[0].mxu0 %v3985
    %v4263 = vpop.f32.mrb[0].mxu0
    %v4264 = vadd.f32 %v4119, %v4263
    %v4265 = vpop.f32.mrb[0].mxu0
    %4266 = vmatprep.mubr.f32.mxu0 %v3990
    %4267 = vmatmul.mubr.f32.gmra.mrb[0].mxu0 %v3989
    %v4268 = vpop.f32.mrb[0].mxu0
    %v4269 = vadd.f32 %v4124, %v4268
    %v4270 = vpop.f32.mrb[0].mxu0
    %4271 = vmatprep.mubr.f32.mxu0 %v3994
    %4272 = vmatmul.mubr.f32.gmra.mrb[0].mxu0 %v3993
    %v4273 = vpop.f32.mrb[0].mxu0
    %v4274 = vadd.f32 %v4129, %v4273
    %v4275 = vpop.f32.mrb[0].mxu0
    %4276 = vmatprep.mubr.f32.mxu0 %v3998
    %4277 = vmatmul.mubr.f32.gmra.mrb[0].mxu0 %v3997
    %v4278 = vpop.f32.mrb[0].mxu0
    %v4279 = vadd.f32 %v4134, %v4278
    %v4280 = vpop.f32.mrb[0].mxu0
    %4281 = vmatprep.mubr.f32.mxu0 %v4002
    %4282 = vmatmul.mubr.f32.gmra.mrb[0].mxu0 %v4001
    %v4283 = vpop.f32.mrb[0].mxu0
    %v4284 = vadd.f32 %v4139, %v4283
    %v4285 = vpop.f32.mrb[0].mxu0
    %4286 = vmatprep.mubr.f32.mxu0 %v4006
    %4287 = vmatmul.mubr.f32.gmra.mrb[0].mxu0 %v4005
    %v4288 = vpop.f32.mrb[0].mxu0
    %v4289 = vadd.f32 %v4144, %v4288
    %v4290 = vpop.f32.mrb[0].mxu0
    %4291 = vmatprep.mubr.f32.mxu0 %v4010
    %4292 = vmatmul.mubr.f32.gmra.mrb[0].mxu0 %v4009
    %v4293 = vpop.f32.mrb[0].mxu0
    %v4294 = vadd.f32 %v4149, %v4293
    %v4295 = vpop.f32.mrb[0].mxu0
    %4296 = vmatprep.mubr.f32.mxu0 %v4014
    %4297 = vmatmul.mubr.f32.gmra.mrb[0].mxu0 %v4013
    %v4298 = vpop.f32.mrb[0].mxu0
    %v4299 = vadd.f32 %v4154, %v4298
    %v4300 = vpop.f32.mrb[0].mxu0
    %4301 = vmatprep.mubr.f32.mxu0 %v4018
    %4302 = vmatmul.mubr.f32.gmra.mrb[0].mxu0 %v4017
    %v4303 = vpop.f32.mrb[0].mxu0
    %v4304 = vadd.f32 %v4159, %v4303
    %v4305 = vpop.f32.mrb[0].mxu0
    %4306 = vmatprep.mubr.f32.mxu0 %v4022
    %4307 = vmatmul.mubr.f32.gmra.mrb[0].mxu0 %v4021
    %v4308 = vpop.f32.mrb[0].mxu0
    %v4309 = vadd.f32 %v4164, %v4308
    %v4310 = vpop.f32.mrb[0].mxu0
    %4311 = vmatprep.mubr.f32.mxu0 %v4026
    %4312 = vmatmul.mubr.f32.gmra.mrb[0].mxu0 %v4025
    %v4313 = vpop.f32.mrb[0].mxu0
    %v4314 = vadd.f32 %v4169, %v4313
    %v4315 = vpop.f32.mrb[0].mxu0
    %4316 = vdwg.mxu0
    %vm4317 = vcmask 64512
    %4318 = vst.msk [vmem:[#allocation3] sm:$0xff] %vm4317, %v4239
    %4319 = vst.msk [vmem:[#allocation3 + $0x8] sm:$0xff] %vm4317, %v4244
    %4320 = vst.msk [vmem:[#allocation3 + $0x10] sm:$0xff] %vm4317, %v4249
    %4321 = vst.msk [vmem:[#allocation3 + $0x18] sm:$0xff] %vm4317, %v4254
    %4322 = vst.msk [vmem:[#allocation3 + $0x20] sm:$0xff] %vm4317, %v4259
    %4323 = vst.msk [vmem:[#allocation3 + $0x28] sm:$0xff] %vm4317, %v4264
    %4324 = vst.msk [vmem:[#allocation3 + $0x30] sm:$0xff] %vm4317, %v4269
    %4325 = vst.msk [vmem:[#allocation3 + $0x38] sm:$0xff] %vm4317, %v4274
    %4326 = vst.msk [vmem:[#allocation3 + $0x40] sm:$0xff] %vm4317, %v4279
    %4327 = vst.msk [vmem:[#allocation3 + $0x48] sm:$0xff] %vm4317, %v4284
    %4328 = vst.msk [vmem:[#allocation3 + $0x50] sm:$0xff] %vm4317, %v4289
    %4329 = vst.msk [vmem:[#allocation3 + $0x58] sm:$0xff] %vm4317, %v4294
    %4330 = vst.msk [vmem:[#allocation3 + $0x60] sm:$0xff] %vm4317, %v4299
    %4331 = vst.msk [vmem:[#allocation3 + $0x68] sm:$0xff] %vm4317, %v4304
    %4332 = vst.msk [vmem:[#allocation3 + $0x70] sm:$0xff] %vm4317, %v4309
    %4333 = vst.msk [vmem:[#allocation3 + $0x78] sm:$0xff] %vm4317, %v4314
    %v4334 = vld [vmem:[#allocation3] sm:$0x3]
    %vm4335 = vcmask 58368
    %4336 = vst.msk [vmem:[#allocation4] sm:$0x3] %vm4335, %v4334
    %v4337 = vld [vmem:[#allocation3 + $0x2] sm:$0x3]
    %v4340 = vunpack.c.l.s4 1983009808
    %v4341 = vunpack.c.0.s8 %v4340
    %v4342 = vlaneseq
    %v4343 = vshrl.u32 %v4342, 7
    %v4344 = vsub.s32 %v4341, %v4343
    %v4345 = vrot.slane %v4337, %v4344
    %4346 = vrot.lane.b32.xlu0 %v4345, 8
    %v4347 = vpop.permute.xlu0 %4346
    %vm4349 = vcmask 123968
    %4350 = vst.msk [vmem:[#allocation4] sm:$0x3] %vm4349, %v4347
    %v4351 = vld [vmem:[#allocation3 + $0x4] sm:$0x3]
    %v4354 = vunpack.c.l.s4 1983009808
    %v4355 = vunpack.c.0.s8 %v4354
    %v4356 = vlaneseq
    %v4357 = vshrl.u32 %v4356, 7
    %v4358 = vsub.s32 %v4355, %v4357
    %v4359 = vrot.slane %v4351, %v4358
    %4360 = vrot.lane.b32.xlu0 %v4359, 16
    %v4361 = vpop.permute.xlu0 %4360
    %vm4363 = vcmask 189568
    %4364 = vst.msk [vmem:[#allocation4] sm:$0x3] %vm4363, %v4361
    %v4365 = vld [vmem:[#allocation3 + $0x6] sm:$0x3]
    %v4368 = vunpack.c.l.s4 1983009808
    %v4369 = vunpack.c.0.s8 %v4368
    %v4370 = vlaneseq
    %v4371 = vshrl.u32 %v4370, 7
    %v4372 = vsub.s32 %v4369, %v4371
    %v4373 = vrot.slane %v4365, %v4372
    %4374 = vrot.lane.b32.xlu0 %v4373, 24
    %v4375 = vpop.permute.xlu0 %4374
    %vm4377 = vcmask 255168
    %4378 = vst.msk [vmem:[#allocation4] sm:$0x3] %vm4377, %v4375
    %v4379 = vld [vmem:[#allocation3 + $0x8] sm:$0x3]
    %v4382 = vunpack.c.l.s4 1983009808
    %v4383 = vunpack.c.0.s8 %v4382
    %v4384 = vlaneseq
    %v4385 = vshrl.u32 %v4384, 7
    %v4386 = vsub.s32 %v4383, %v4385
    %v4387 = vrot.slane %v4379, %v4386
    %4388 = vrot.lane.b32.xlu0 %v4387, 32
    %v4389 = vpop.permute.xlu0 %4388
    %vm4391 = vcmask 320768
    %4392 = vst.msk [vmem:[#allocation4] sm:$0x3] %vm4391, %v4389
    %v4393 = vld [vmem:[#allocation3 + $0xa] sm:$0x3]
    %v4396 = vunpack.c.l.s4 1983009808
    %v4397 = vunpack.c.0.s8 %v4396
    %v4398 = vlaneseq
    %v4399 = vshrl.u32 %v4398, 7
    %v4400 = vsub.s32 %v4397, %v4399
    %v4401 = vrot.slane %v4393, %v4400
    %4402 = vrot.lane.b32.xlu0 %v4401, 40
    %v4403 = vpop.permute.xlu0 %4402
    %vm4405 = vcmask 386368
    %4406 = vst.msk [vmem:[#allocation4] sm:$0x3] %vm4405, %v4403
    %v4407 = vld [vmem:[#allocation3 + $0xc] sm:$0x3]
    %v4410 = vunpack.c.l.s4 1983009808
    %v4411 = vunpack.c.0.s8 %v4410
    %v4412 = vlaneseq
    %v4413 = vshrl.u32 %v4412, 7
    %v4414 = vsub.s32 %v4411, %v4413
    %v4415 = vrot.slane %v4407, %v4414
    %4416 = vrot.lane.b32.xlu0 %v4415, 48
    %v4417 = vpop.permute.xlu0 %4416
    %vm4419 = vcmask 451968
    %4420 = vst.msk [vmem:[#allocation4] sm:$0x3] %vm4419, %v4417
    %v4421 = vld [vmem:[#allocation3 + $0xe] sm:$0x3]
    %v4424 = vunpack.c.l.s4 1983009808
    %v4425 = vunpack.c.0.s8 %v4424
    %v4426 = vlaneseq
    %v4427 = vshrl.u32 %v4426, 7
    %v4428 = vsub.s32 %v4425, %v4427
    %v4429 = vrot.slane %v4421, %v4428
    %4430 = vrot.lane.b32.xlu0 %v4429, 56
    %v4431 = vpop.permute.xlu0 %4430
    %vm4433 = vcmask 517568
    %4434 = vst.msk [vmem:[#allocation4] sm:$0x3] %vm4433, %v4431
    %v4435 = vld [vmem:[#allocation3 + $0x10] sm:$0x3]
    %v4438 = vunpack.c.l.s4 1983009808
    %v4439 = vunpack.c.0.s8 %v4438
    %v4440 = vlaneseq
    %v4441 = vshrl.u32 %v4440, 7
    %v4442 = vsub.s32 %v4439, %v4441
    %v4443 = vrot.slane %v4435, %v4442
    %4444 = vrot.lane.b32.xlu0 %v4443, 64
    %v4445 = vpop.permute.xlu0 %4444
    %vm4447 = vcmask 583168
    %4448 = vst.msk [vmem:[#allocation4] sm:$0x3] %vm4447, %v4445
    %v4449 = vld [vmem:[#allocation3 + $0x12] sm:$0x3]
    %v4452 = vunpack.c.l.s4 1983009808
    %v4453 = vunpack.c.0.s8 %v4452
    %v4454 = vlaneseq
    %v4455 = vshrl.u32 %v4454, 7
    %v4456 = vsub.s32 %v4453, %v4455
    %v4457 = vrot.slane %v4449, %v4456
    %4458 = vrot.lane.b32.xlu0 %v4457, 72
    %v4459 = vpop.permute.xlu0 %4458
    %vm4461 = vcmask 648768
    %4462 = vst.msk [vmem:[#allocation4] sm:$0x3] %vm4461, %v4459
    %v4463 = vld [vmem:[#allocation3 + $0x14] sm:$0x3]
    %v4466 = vunpack.c.l.s4 1983009808
    %v4467 = vunpack.c.0.s8 %v4466
    %v4468 = vlaneseq
    %v4469 = vshrl.u32 %v4468, 7
    %v4470 = vsub.s32 %v4467, %v4469
    %v4471 = vrot.slane %v4463, %v4470
    %4472 = vrot.lane.b32.xlu0 %v4471, 80
    %v4473 = vpop.permute.xlu0 %4472
    %vm4475 = vcmask 714368
    %4476 = vst.msk [vmem:[#allocation4] sm:$0x3] %vm4475, %v4473
    %v4477 = vld [vmem:[#allocation3 + $0x16] sm:$0x3]
    %v4480 = vunpack.c.l.s4 1983009808
    %v4481 = vunpack.c.0.s8 %v4480
    %v4482 = vlaneseq
    %v4483 = vshrl.u32 %v4482, 7
    %v4484 = vsub.s32 %v4481, %v4483
    %v4485 = vrot.slane %v4477, %v4484
    %4486 = vrot.lane.b32.xlu0 %v4485, 88
    %v4487 = vpop.permute.xlu0 %4486
    %vm4489 = vcmask 779968
    %4490 = vst.msk [vmem:[#allocation4] sm:$0x3] %vm4489, %v4487
    %v4491 = vld [vmem:[#allocation3 + $0x18] sm:$0x3]
    %v4494 = vunpack.c.l.s4 1983009808
    %v4495 = vunpack.c.0.s8 %v4494
    %v4496 = vlaneseq
    %v4497 = vshrl.u32 %v4496, 7
    %v4498 = vsub.s32 %v4495, %v4497
    %v4499 = vrot.slane %v4491, %v4498
    %4500 = vrot.lane.b32.xlu0 %v4499, 96
    %v4501 = vpop.permute.xlu0 %4500
    %vm4503 = vcmask 845568
    %4504 = vst.msk [vmem:[#allocation4] sm:$0x3] %vm4503, %v4501
    %v4505 = vld [vmem:[#allocation3 + $0x1a] sm:$0x3]
    %v4508 = vunpack.c.l.s4 1983009808
    %v4509 = vunpack.c.0.s8 %v4508
    %v4510 = vlaneseq
    %v4511 = vshrl.u32 %v4510, 7
    %v4512 = vsub.s32 %v4509, %v4511
    %v4513 = vrot.slane %v4505, %v4512
    %4514 = vrot.lane.b32.xlu0 %v4513, 104
    %v4515 = vpop.permute.xlu0 %4514
    %vm4517 = vcmask 911168
    %4518 = vst.msk [vmem:[#allocation4] sm:$0x3] %vm4517, %v4515
    %v4519 = vld [vmem:[#allocation3 + $0x1c] sm:$0x3]
    %v4522 = vunpack.c.l.s4 1983009808
    %v4523 = vunpack.c.0.s8 %v4522
    %v4524 = vlaneseq
    %v4525 = vshrl.u32 %v4524, 7
    %v4526 = vsub.s32 %v4523, %v4525
    %v4527 = vrot.slane %v4519, %v4526
    %4528 = vrot.lane.b32.xlu0 %v4527, 112
    %v4529 = vpop.permute.xlu0 %4528
    %vm4531 = vcmask 976768
    %4532 = vst.msk [vmem:[#allocation4] sm:$0x3] %vm4531, %v4529
    %v4533 = vld [vmem:[#allocation3 + $0x1e] sm:$0x3]
    %v4536 = vunpack.c.l.s4 1983009808
    %v4537 = vunpack.c.0.s8 %v4536
    %v4538 = vlaneseq
    %v4539 = vshrl.u32 %v4538, 7
    %v4540 = vsub.s32 %v4537, %v4539
    %v4541 = vrot.slane %v4533, %v4540
    %4542 = vrot.lane.b32.xlu0 %v4541, 120
    %v4543 = vpop.permute.xlu0 %4542
    %vm4545 = vcmask 1042368
    %4546 = vst.msk [vmem:[#allocation4] sm:$0x3] %vm4545, %v4543
    %v4547 = vld [vmem:[#allocation3 + $0x20] sm:$0x3]
    %4548 = vst.msk [vmem:[#allocation4 + $0x2] sm:$0x3] %vm4335, %v4547
    %v4549 = vld [vmem:[#allocation3 + $0x22] sm:$0x3]
    %v4552 = vunpack.c.l.s4 1983009808
    %v4553 = vunpack.c.0.s8 %v4552
    %v4554 = vlaneseq
    %v4555 = vshrl.u32 %v4554, 7
    %v4556 = vsub.s32 %v4553, %v4555
    %v4557 = vrot.slane %v4549, %v4556
    %4558 = vrot.lane.b32.xlu0 %v4557, 8
    %v4559 = vpop.permute.xlu0 %4558
    %4561 = vst.msk [vmem:[#allocation4 + $0x2] sm:$0x3] %vm4349, %v4559
    %v4562 = vld [vmem:[#allocation3 + $0x24] sm:$0x3]
    %v4565 = vunpack.c.l.s4 1983009808
    %v4566 = vunpack.c.0.s8 %v4565
    %v4567 = vlaneseq
    %v4568 = vshrl.u32 %v4567, 7
    %v4569 = vsub.s32 %v4566, %v4568
    %v4570 = vrot.slane %v4562, %v4569
    %4571 = vrot.lane.b32.xlu0 %v4570, 16
    %v4572 = vpop.permute.xlu0 %4571
    %4574 = vst.msk [vmem:[#allocation4 + $0x2] sm:$0x3] %vm4363, %v4572
    %v4575 = vld [vmem:[#allocation3 + $0x26] sm:$0x3]
    %v4578 = vunpack.c.l.s4 1983009808
    %v4579 = vunpack.c.0.s8 %v4578
    %v4580 = vlaneseq
    %v4581 = vshrl.u32 %v4580, 7
    %v4582 = vsub.s32 %v4579, %v4581
    %v4583 = vrot.slane %v4575, %v4582
    %4584 = vrot.lane.b32.xlu0 %v4583, 24
    %v4585 = vpop.permute.xlu0 %4584
    %4587 = vst.msk [vmem:[#allocation4 + $0x2] sm:$0x3] %vm4377, %v4585
    %v4588 = vld [vmem:[#allocation3 + $0x28] sm:$0x3]
    %v4591 = vunpack.c.l.s4 1983009808
    %v4592 = vunpack.c.0.s8 %v4591
    %v4593 = vlaneseq
    %v4594 = vshrl.u32 %v4593, 7
    %v4595 = vsub.s32 %v4592, %v4594
    %v4596 = vrot.slane %v4588, %v4595
    %4597 = vrot.lane.b32.xlu0 %v4596, 32
    %v4598 = vpop.permute.xlu0 %4597
    %4600 = vst.msk [vmem:[#allocation4 + $0x2] sm:$0x3] %vm4391, %v4598
    %v4601 = vld [vmem:[#allocation3 + $0x2a] sm:$0x3]
    %v4604 = vunpack.c.l.s4 1983009808
    %v4605 = vunpack.c.0.s8 %v4604
    %v4606 = vlaneseq
    %v4607 = vshrl.u32 %v4606, 7
    %v4608 = vsub.s32 %v4605, %v4607
    %v4609 = vrot.slane %v4601, %v4608
    %4610 = vrot.lane.b32.xlu0 %v4609, 40
    %v4611 = vpop.permute.xlu0 %4610
    %4613 = vst.msk [vmem:[#allocation4 + $0x2] sm:$0x3] %vm4405, %v4611
    %v4614 = vld [vmem:[#allocation3 + $0x2c] sm:$0x3]
    %v4617 = vunpack.c.l.s4 1983009808
    %v4618 = vunpack.c.0.s8 %v4617
    %v4619 = vlaneseq
    %v4620 = vshrl.u32 %v4619, 7
    %v4621 = vsub.s32 %v4618, %v4620
    %v4622 = vrot.slane %v4614, %v4621
    %4623 = vrot.lane.b32.xlu0 %v4622, 48
    %v4624 = vpop.permute.xlu0 %4623
    %4626 = vst.msk [vmem:[#allocation4 + $0x2] sm:$0x3] %vm4419, %v4624
    %v4627 = vld [vmem:[#allocation3 + $0x2e] sm:$0x3]
    %v4630 = vunpack.c.l.s4 1983009808
    %v4631 = vunpack.c.0.s8 %v4630
    %v4632 = vlaneseq
    %v4633 = vshrl.u32 %v4632, 7
    %v4634 = vsub.s32 %v4631, %v4633
    %v4635 = vrot.slane %v4627, %v4634
    %4636 = vrot.lane.b32.xlu0 %v4635, 56
    %v4637 = vpop.permute.xlu0 %4636
    %4639 = vst.msk [vmem:[#allocation4 + $0x2] sm:$0x3] %vm4433, %v4637
    %v4640 = vld [vmem:[#allocation3 + $0x30] sm:$0x3]
    %v4643 = vunpack.c.l.s4 1983009808
    %v4644 = vunpack.c.0.s8 %v4643
    %v4645 = vlaneseq
    %v4646 = vshrl.u32 %v4645, 7
    %v4647 = vsub.s32 %v4644, %v4646
    %v4648 = vrot.slane %v4640, %v4647
    %4649 = vrot.lane.b32.xlu0 %v4648, 64
    %v4650 = vpop.permute.xlu0 %4649
    %4652 = vst.msk [vmem:[#allocation4 + $0x2] sm:$0x3] %vm4447, %v4650
    %v4653 = vld [vmem:[#allocation3 + $0x32] sm:$0x3]
    %v4656 = vunpack.c.l.s4 1983009808
    %v4657 = vunpack.c.0.s8 %v4656
    %v4658 = vlaneseq
    %v4659 = vshrl.u32 %v4658, 7
    %v4660 = vsub.s32 %v4657, %v4659
    %v4661 = vrot.slane %v4653, %v4660
    %4662 = vrot.lane.b32.xlu0 %v4661, 72
    %v4663 = vpop.permute.xlu0 %4662
    %4665 = vst.msk [vmem:[#allocation4 + $0x2] sm:$0x3] %vm4461, %v4663
    %v4666 = vld [vmem:[#allocation3 + $0x34] sm:$0x3]
    %v4669 = vunpack.c.l.s4 1983009808
    %v4670 = vunpack.c.0.s8 %v4669
    %v4671 = vlaneseq
    %v4672 = vshrl.u32 %v4671, 7
    %v4673 = vsub.s32 %v4670, %v4672
    %v4674 = vrot.slane %v4666, %v4673
    %4675 = vrot.lane.b32.xlu0 %v4674, 80
    %v4676 = vpop.permute.xlu0 %4675
    %4678 = vst.msk [vmem:[#allocation4 + $0x2] sm:$0x3] %vm4475, %v4676
    %v4679 = vld [vmem:[#allocation3 + $0x36] sm:$0x3]
    %v4682 = vunpack.c.l.s4 1983009808
    %v4683 = vunpack.c.0.s8 %v4682
    %v4684 = vlaneseq
    %v4685 = vshrl.u32 %v4684, 7
    %v4686 = vsub.s32 %v4683, %v4685
    %v4687 = vrot.slane %v4679, %v4686
    %4688 = vrot.lane.b32.xlu0 %v4687, 88
    %v4689 = vpop.permute.xlu0 %4688
    %4691 = vst.msk [vmem:[#allocation4 + $0x2] sm:$0x3] %vm4489, %v4689
    %v4692 = vld [vmem:[#allocation3 + $0x38] sm:$0x3]
    %v4695 = vunpack.c.l.s4 1983009808
    %v4696 = vunpack.c.0.s8 %v4695
    %v4697 = vlaneseq
    %v4698 = vshrl.u32 %v4697, 7
    %v4699 = vsub.s32 %v4696, %v4698
    %v4700 = vrot.slane %v4692, %v4699
    %4701 = vrot.lane.b32.xlu0 %v4700, 96
    %v4702 = vpop.permute.xlu0 %4701
    %4704 = vst.msk [vmem:[#allocation4 + $0x2] sm:$0x3] %vm4503, %v4702
    %v4705 = vld [vmem:[#allocation3 + $0x3a] sm:$0x3]
    %v4708 = vunpack.c.l.s4 1983009808
    %v4709 = vunpack.c.0.s8 %v4708
    %v4710 = vlaneseq
    %v4711 = vshrl.u32 %v4710, 7
    %v4712 = vsub.s32 %v4709, %v4711
    %v4713 = vrot.slane %v4705, %v4712
    %4714 = vrot.lane.b32.xlu0 %v4713, 104
    %v4715 = vpop.permute.xlu0 %4714
    %4717 = vst.msk [vmem:[#allocation4 + $0x2] sm:$0x3] %vm4517, %v4715
    %v4718 = vld [vmem:[#allocation3 + $0x3c] sm:$0x3]
    %v4721 = vunpack.c.l.s4 1983009808
    %v4722 = vunpack.c.0.s8 %v4721
    %v4723 = vlaneseq
    %v4724 = vshrl.u32 %v4723, 7
    %v4725 = vsub.s32 %v4722, %v4724
    %v4726 = vrot.slane %v4718, %v4725
    %4727 = vrot.lane.b32.xlu0 %v4726, 112
    %v4728 = vpop.permute.xlu0 %4727
    %4730 = vst.msk [vmem:[#allocation4 + $0x2] sm:$0x3] %vm4531, %v4728
    %v4731 = vld [vmem:[#allocation3 + $0x3e] sm:$0x3]
    %v4734 = vunpack.c.l.s4 1983009808
    %v4735 = vunpack.c.0.s8 %v4734
    %v4736 = vlaneseq
    %v4737 = vshrl.u32 %v4736, 7
    %v4738 = vsub.s32 %v4735, %v4737
    %v4739 = vrot.slane %v4731, %v4738
    %4740 = vrot.lane.b32.xlu0 %v4739, 120
    %v4741 = vpop.permute.xlu0 %4740
    %4743 = vst.msk [vmem:[#allocation4 + $0x2] sm:$0x3] %vm4545, %v4741
    %v4744 = vld [vmem:[#allocation3 + $0x40] sm:$0x3]
    %4745 = vst.msk [vmem:[#allocation4 + $0x4] sm:$0x3] %vm4335, %v4744
    %v4746 = vld [vmem:[#allocation3 + $0x42] sm:$0x3]
    %v4749 = vunpack.c.l.s4 1983009808
    %v4750 = vunpack.c.0.s8 %v4749
    %v4751 = vlaneseq
    %v4752 = vshrl.u32 %v4751, 7
    %v4753 = vsub.s32 %v4750, %v4752
    %v4754 = vrot.slane %v4746, %v4753
    %4755 = vrot.lane.b32.xlu0 %v4754, 8
    %v4756 = vpop.permute.xlu0 %4755
    %4758 = vst.msk [vmem:[#allocation4 + $0x4] sm:$0x3] %vm4349, %v4756
    %v4759 = vld [vmem:[#allocation3 + $0x44] sm:$0x3]
    %v4762 = vunpack.c.l.s4 1983009808
    %v4763 = vunpack.c.0.s8 %v4762
    %v4764 = vlaneseq
    %v4765 = vshrl.u32 %v4764, 7
    %v4766 = vsub.s32 %v4763, %v4765
    %v4767 = vrot.slane %v4759, %v4766
    %4768 = vrot.lane.b32.xlu0 %v4767, 16
    %v4769 = vpop.permute.xlu0 %4768
    %4771 = vst.msk [vmem:[#allocation4 + $0x4] sm:$0x3] %vm4363, %v4769
    %v4772 = vld [vmem:[#allocation3 + $0x46] sm:$0x3]
    %v4775 = vunpack.c.l.s4 1983009808
    %v4776 = vunpack.c.0.s8 %v4775
    %v4777 = vlaneseq
    %v4778 = vshrl.u32 %v4777, 7
    %v4779 = vsub.s32 %v4776, %v4778
    %v4780 = vrot.slane %v4772, %v4779
    %4781 = vrot.lane.b32.xlu0 %v4780, 24
    %v4782 = vpop.permute.xlu0 %4781
    %4784 = vst.msk [vmem:[#allocation4 + $0x4] sm:$0x3] %vm4377, %v4782
    %v4785 = vld [vmem:[#allocation3 + $0x48] sm:$0x3]
    %v4788 = vunpack.c.l.s4 1983009808
    %v4789 = vunpack.c.0.s8 %v4788
    %v4790 = vlaneseq
    %v4791 = vshrl.u32 %v4790, 7
    %v4792 = vsub.s32 %v4789, %v4791
    %v4793 = vrot.slane %v4785, %v4792
    %4794 = vrot.lane.b32.xlu0 %v4793, 32
    %v4795 = vpop.permute.xlu0 %4794
    %4797 = vst.msk [vmem:[#allocation4 + $0x4] sm:$0x3] %vm4391, %v4795
    %v4798 = vld [vmem:[#allocation3 + $0x4a] sm:$0x3]
    %v4801 = vunpack.c.l.s4 1983009808
    %v4802 = vunpack.c.0.s8 %v4801
    %v4803 = vlaneseq
    %v4804 = vshrl.u32 %v4803, 7
    %v4805 = vsub.s32 %v4802, %v4804
    %v4806 = vrot.slane %v4798, %v4805
    %4807 = vrot.lane.b32.xlu0 %v4806, 40
    %v4808 = vpop.permute.xlu0 %4807
    %4810 = vst.msk [vmem:[#allocation4 + $0x4] sm:$0x3] %vm4405, %v4808
    %v4811 = vld [vmem:[#allocation3 + $0x4c] sm:$0x3]
    %v4814 = vunpack.c.l.s4 1983009808
    %v4815 = vunpack.c.0.s8 %v4814
    %v4816 = vlaneseq
    %v4817 = vshrl.u32 %v4816, 7
    %v4818 = vsub.s32 %v4815, %v4817
    %v4819 = vrot.slane %v4811, %v4818
    %4820 = vrot.lane.b32.xlu0 %v4819, 48
    %v4821 = vpop.permute.xlu0 %4820
    %4823 = vst.msk [vmem:[#allocation4 + $0x4] sm:$0x3] %vm4419, %v4821
    %v4824 = vld [vmem:[#allocation3 + $0x4e] sm:$0x3]
    %v4827 = vunpack.c.l.s4 1983009808
    %v4828 = vunpack.c.0.s8 %v4827
    %v4829 = vlaneseq
    %v4830 = vshrl.u32 %v4829, 7
    %v4831 = vsub.s32 %v4828, %v4830
    %v4832 = vrot.slane %v4824, %v4831
    %4833 = vrot.lane.b32.xlu0 %v4832, 56
    %v4834 = vpop.permute.xlu0 %4833
    %4836 = vst.msk [vmem:[#allocation4 + $0x4] sm:$0x3] %vm4433, %v4834
    %v4837 = vld [vmem:[#allocation3 + $0x50] sm:$0x3]
    %v4840 = vunpack.c.l.s4 1983009808
    %v4841 = vunpack.c.0.s8 %v4840
    %v4842 = vlaneseq
    %v4843 = vshrl.u32 %v4842, 7
    %v4844 = vsub.s32 %v4841, %v4843
    %v4845 = vrot.slane %v4837, %v4844
    %4846 = vrot.lane.b32.xlu0 %v4845, 64
    %v4847 = vpop.permute.xlu0 %4846
    %4849 = vst.msk [vmem:[#allocation4 + $0x4] sm:$0x3] %vm4447, %v4847
    %v4850 = vld [vmem:[#allocation3 + $0x52] sm:$0x3]
    %v4853 = vunpack.c.l.s4 1983009808
    %v4854 = vunpack.c.0.s8 %v4853
    %v4855 = vlaneseq
    %v4856 = vshrl.u32 %v4855, 7
    %v4857 = vsub.s32 %v4854, %v4856
    %v4858 = vrot.slane %v4850, %v4857
    %4859 = vrot.lane.b32.xlu0 %v4858, 72
    %v4860 = vpop.permute.xlu0 %4859
    %4862 = vst.msk [vmem:[#allocation4 + $0x4] sm:$0x3] %vm4461, %v4860
    %v4863 = vld [vmem:[#allocation3 + $0x54] sm:$0x3]
    %v4866 = vunpack.c.l.s4 1983009808
    %v4867 = vunpack.c.0.s8 %v4866
    %v4868 = vlaneseq
    %v4869 = vshrl.u32 %v4868, 7
    %v4870 = vsub.s32 %v4867, %v4869
    %v4871 = vrot.slane %v4863, %v4870
    %4872 = vrot.lane.b32.xlu0 %v4871, 80
    %v4873 = vpop.permute.xlu0 %4872
    %4875 = vst.msk [vmem:[#allocation4 + $0x4] sm:$0x3] %vm4475, %v4873
    %v4876 = vld [vmem:[#allocation3 + $0x56] sm:$0x3]
    %v4879 = vunpack.c.l.s4 1983009808
    %v4880 = vunpack.c.0.s8 %v4879
    %v4881 = vlaneseq
    %v4882 = vshrl.u32 %v4881, 7
    %v4883 = vsub.s32 %v4880, %v4882
    %v4884 = vrot.slane %v4876, %v4883
    %4885 = vrot.lane.b32.xlu0 %v4884, 88
    %v4886 = vpop.permute.xlu0 %4885
    %4888 = vst.msk [vmem:[#allocation4 + $0x4] sm:$0x3] %vm4489, %v4886
    %v4889 = vld [vmem:[#allocation3 + $0x58] sm:$0x3]
    %v4892 = vunpack.c.l.s4 1983009808
    %v4893 = vunpack.c.0.s8 %v4892
    %v4894 = vlaneseq
    %v4895 = vshrl.u32 %v4894, 7
    %v4896 = vsub.s32 %v4893, %v4895
    %v4897 = vrot.slane %v4889, %v4896
    %4898 = vrot.lane.b32.xlu0 %v4897, 96
    %v4899 = vpop.permute.xlu0 %4898
    %4901 = vst.msk [vmem:[#allocation4 + $0x4] sm:$0x3] %vm4503, %v4899
    %v4902 = vld [vmem:[#allocation3 + $0x5a] sm:$0x3]
    %v4905 = vunpack.c.l.s4 1983009808
    %v4906 = vunpack.c.0.s8 %v4905
    %v4907 = vlaneseq
    %v4908 = vshrl.u32 %v4907, 7
    %v4909 = vsub.s32 %v4906, %v4908
    %v4910 = vrot.slane %v4902, %v4909
    %4911 = vrot.lane.b32.xlu0 %v4910, 104
    %v4912 = vpop.permute.xlu0 %4911
    %4914 = vst.msk [vmem:[#allocation4 + $0x4] sm:$0x3] %vm4517, %v4912
    %v4915 = vld [vmem:[#allocation3 + $0x5c] sm:$0x3]
    %v4918 = vunpack.c.l.s4 1983009808
    %v4919 = vunpack.c.0.s8 %v4918
    %v4920 = vlaneseq
    %v4921 = vshrl.u32 %v4920, 7
    %v4922 = vsub.s32 %v4919, %v4921
    %v4923 = vrot.slane %v4915, %v4922
    %4924 = vrot.lane.b32.xlu0 %v4923, 112
    %v4925 = vpop.permute.xlu0 %4924
    %4927 = vst.msk [vmem:[#allocation4 + $0x4] sm:$0x3] %vm4531, %v4925
    %v4928 = vld [vmem:[#allocation3 + $0x5e] sm:$0x3]
    %v4931 = vunpack.c.l.s4 1983009808
    %v4932 = vunpack.c.0.s8 %v4931
    %v4933 = vlaneseq
    %v4934 = vshrl.u32 %v4933, 7
    %v4935 = vsub.s32 %v4932, %v4934
    %v4936 = vrot.slane %v4928, %v4935
    %4937 = vrot.lane.b32.xlu0 %v4936, 120
    %v4938 = vpop.permute.xlu0 %4937
    %4940 = vst.msk [vmem:[#allocation4 + $0x4] sm:$0x3] %vm4545, %v4938
    %v4941 = vld [vmem:[#allocation3 + $0x60] sm:$0x3]
    %4942 = vst.msk [vmem:[#allocation4 + $0x6] sm:$0x3] %vm4335, %v4941
    %v4943 = vld [vmem:[#allocation3 + $0x62] sm:$0x3]
    %v4946 = vunpack.c.l.s4 1983009808
    %v4947 = vunpack.c.0.s8 %v4946
    %v4948 = vlaneseq
    %v4949 = vshrl.u32 %v4948, 7
    %v4950 = vsub.s32 %v4947, %v4949
    %v4951 = vrot.slane %v4943, %v4950
    %4952 = vrot.lane.b32.xlu0 %v4951, 8
    %v4953 = vpop.permute.xlu0 %4952
    %4955 = vst.msk [vmem:[#allocation4 + $0x6] sm:$0x3] %vm4349, %v4953
    %v4956 = vld [vmem:[#allocation3 + $0x64] sm:$0x3]
    %v4959 = vunpack.c.l.s4 1983009808
    %v4960 = vunpack.c.0.s8 %v4959
    %v4961 = vlaneseq
    %v4962 = vshrl.u32 %v4961, 7
    %v4963 = vsub.s32 %v4960, %v4962
    %v4964 = vrot.slane %v4956, %v4963
    %4965 = vrot.lane.b32.xlu0 %v4964, 16
    %v4966 = vpop.permute.xlu0 %4965
    %4968 = vst.msk [vmem:[#allocation4 + $0x6] sm:$0x3] %vm4363, %v4966
    %v4969 = vld [vmem:[#allocation3 + $0x66] sm:$0x3]
    %v4972 = vunpack.c.l.s4 1983009808
    %v4973 = vunpack.c.0.s8 %v4972
    %v4974 = vlaneseq
    %v4975 = vshrl.u32 %v4974, 7
    %v4976 = vsub.s32 %v4973, %v4975
    %v4977 = vrot.slane %v4969, %v4976
    %4978 = vrot.lane.b32.xlu0 %v4977, 24
    %v4979 = vpop.permute.xlu0 %4978
    %4981 = vst.msk [vmem:[#allocation4 + $0x6] sm:$0x3] %vm4377, %v4979
    %v4982 = vld [vmem:[#allocation3 + $0x68] sm:$0x3]
    %v4985 = vunpack.c.l.s4 1983009808
    %v4986 = vunpack.c.0.s8 %v4985
    %v4987 = vlaneseq
    %v4988 = vshrl.u32 %v4987, 7
    %v4989 = vsub.s32 %v4986, %v4988
    %v4990 = vrot.slane %v4982, %v4989
    %4991 = vrot.lane.b32.xlu0 %v4990, 32
    %v4992 = vpop.permute.xlu0 %4991
    %4994 = vst.msk [vmem:[#allocation4 + $0x6] sm:$0x3] %vm4391, %v4992
    %v4995 = vld [vmem:[#allocation3 + $0x6a] sm:$0x3]
    %v4998 = vunpack.c.l.s4 1983009808
    %v4999 = vunpack.c.0.s8 %v4998
    %v5000 = vlaneseq
    %v5001 = vshrl.u32 %v5000, 7
    %v5002 = vsub.s32 %v4999, %v5001
    %v5003 = vrot.slane %v4995, %v5002
    %5004 = vrot.lane.b32.xlu0 %v5003, 40
    %v5005 = vpop.permute.xlu0 %5004
    %5007 = vst.msk [vmem:[#allocation4 + $0x6] sm:$0x3] %vm4405, %v5005
    %v5008 = vld [vmem:[#allocation3 + $0x6c] sm:$0x3]
    %v5011 = vunpack.c.l.s4 1983009808
    %v5012 = vunpack.c.0.s8 %v5011
    %v5013 = vlaneseq
    %v5014 = vshrl.u32 %v5013, 7
    %v5015 = vsub.s32 %v5012, %v5014
    %v5016 = vrot.slane %v5008, %v5015
    %5017 = vrot.lane.b32.xlu0 %v5016, 48
    %v5018 = vpop.permute.xlu0 %5017
    %5020 = vst.msk [vmem:[#allocation4 + $0x6] sm:$0x3] %vm4419, %v5018
    %v5021 = vld [vmem:[#allocation3 + $0x6e] sm:$0x3]
    %v5024 = vunpack.c.l.s4 1983009808
    %v5025 = vunpack.c.0.s8 %v5024
    %v5026 = vlaneseq
    %v5027 = vshrl.u32 %v5026, 7
    %v5028 = vsub.s32 %v5025, %v5027
    %v5029 = vrot.slane %v5021, %v5028
    %5030 = vrot.lane.b32.xlu0 %v5029, 56
    %v5031 = vpop.permute.xlu0 %5030
    %5033 = vst.msk [vmem:[#allocation4 + $0x6] sm:$0x3] %vm4433, %v5031
    %v5034 = vld [vmem:[#allocation3 + $0x70] sm:$0x3]
    %v5037 = vunpack.c.l.s4 1983009808
    %v5038 = vunpack.c.0.s8 %v5037
    %v5039 = vlaneseq
    %v5040 = vshrl.u32 %v5039, 7
    %v5041 = vsub.s32 %v5038, %v5040
    %v5042 = vrot.slane %v5034, %v5041
    %5043 = vrot.lane.b32.xlu0 %v5042, 64
    %v5044 = vpop.permute.xlu0 %5043
    %5046 = vst.msk [vmem:[#allocation4 + $0x6] sm:$0x3] %vm4447, %v5044
    %v5047 = vld [vmem:[#allocation3 + $0x72] sm:$0x3]
    %v5050 = vunpack.c.l.s4 1983009808
    %v5051 = vunpack.c.0.s8 %v5050
    %v5052 = vlaneseq
    %v5053 = vshrl.u32 %v5052, 7
    %v5054 = vsub.s32 %v5051, %v5053
    %v5055 = vrot.slane %v5047, %v5054
    %5056 = vrot.lane.b32.xlu0 %v5055, 72
    %v5057 = vpop.permute.xlu0 %5056
    %5059 = vst.msk [vmem:[#allocation4 + $0x6] sm:$0x3] %vm4461, %v5057
    %v5060 = vld [vmem:[#allocation3 + $0x74] sm:$0x3]
    %v5063 = vunpack.c.l.s4 1983009808
    %v5064 = vunpack.c.0.s8 %v5063
    %v5065 = vlaneseq
    %v5066 = vshrl.u32 %v5065, 7
    %v5067 = vsub.s32 %v5064, %v5066
    %v5068 = vrot.slane %v5060, %v5067
    %5069 = vrot.lane.b32.xlu0 %v5068, 80
    %v5070 = vpop.permute.xlu0 %5069
    %5072 = vst.msk [vmem:[#allocation4 + $0x6] sm:$0x3] %vm4475, %v5070
    %v5073 = vld [vmem:[#allocation3 + $0x76] sm:$0x3]
    %v5076 = vunpack.c.l.s4 1983009808
    %v5077 = vunpack.c.0.s8 %v5076
    %v5078 = vlaneseq
    %v5079 = vshrl.u32 %v5078, 7
    %v5080 = vsub.s32 %v5077, %v5079
    %v5081 = vrot.slane %v5073, %v5080
    %5082 = vrot.lane.b32.xlu0 %v5081, 88
    %v5083 = vpop.permute.xlu0 %5082
    %5085 = vst.msk [vmem:[#allocation4 + $0x6] sm:$0x3] %vm4489, %v5083
    %v5086 = vld [vmem:[#allocation3 + $0x78] sm:$0x3]
    %v5089 = vunpack.c.l.s4 1983009808
    %v5090 = vunpack.c.0.s8 %v5089
    %v5091 = vlaneseq
    %v5092 = vshrl.u32 %v5091, 7
    %v5093 = vsub.s32 %v5090, %v5092
    %v5094 = vrot.slane %v5086, %v5093
    %5095 = vrot.lane.b32.xlu0 %v5094, 96
    %v5096 = vpop.permute.xlu0 %5095
    %5098 = vst.msk [vmem:[#allocation4 + $0x6] sm:$0x3] %vm4503, %v5096
    %v5099 = vld [vmem:[#allocation3 + $0x7a] sm:$0x3]
    %v5102 = vunpack.c.l.s4 1983009808
    %v5103 = vunpack.c.0.s8 %v5102
    %v5104 = vlaneseq
    %v5105 = vshrl.u32 %v5104, 7
    %v5106 = vsub.s32 %v5103, %v5105
    %v5107 = vrot.slane %v5099, %v5106
    %5108 = vrot.lane.b32.xlu0 %v5107, 104
    %v5109 = vpop.permute.xlu0 %5108
    %5111 = vst.msk [vmem:[#allocation4 + $0x6] sm:$0x3] %vm4517, %v5109
    %v5112 = vld [vmem:[#allocation3 + $0x7c] sm:$0x3]
    %v5115 = vunpack.c.l.s4 1983009808
    %v5116 = vunpack.c.0.s8 %v5115
    %v5117 = vlaneseq
    %v5118 = vshrl.u32 %v5117, 7
    %v5119 = vsub.s32 %v5116, %v5118
    %v5120 = vrot.slane %v5112, %v5119
    %5121 = vrot.lane.b32.xlu0 %v5120, 112
    %v5122 = vpop.permute.xlu0 %5121
    %5124 = vst.msk [vmem:[#allocation4 + $0x6] sm:$0x3] %vm4531, %v5122
    %v5125 = vld [vmem:[#allocation3 + $0x7e] sm:$0x3]
    %v5128 = vunpack.c.l.s4 1983009808
    %v5129 = vunpack.c.0.s8 %v5128
    %v5130 = vlaneseq
    %v5131 = vshrl.u32 %v5130, 7
    %v5132 = vsub.s32 %v5129, %v5131
    %v5133 = vrot.slane %v5125, %v5132
    %5134 = vrot.lane.b32.xlu0 %v5133, 120
    %v5135 = vpop.permute.xlu0 %5134
    %5137 = vst.msk [vmem:[#allocation4 + $0x6] sm:$0x3] %vm4545, %v5135
    %v5138 = vld [vmem:[#allocation4] sm:$0xff]
    %v5139 = vld [vmem:[%s4] sm:$0xff]
    %v5140 = vld [vmem:[%s4 + $0x8] sm:$0xff]
    %v5141 = vld [vmem:[%s4 + $0x10] sm:$0xff]
    %v5142 = vld [vmem:[%s4 + $0x18] sm:$0xff]
    %v5143 = vld [vmem:[%s4 + $0x20] sm:$0xff]
    %v5144 = vld [vmem:[%s4 + $0x28] sm:$0xff]
    %v5145 = vld [vmem:[%s4 + $0x30] sm:$0xff]
    %v5146 = vld [vmem:[%s4 + $0x38] sm:$0xff]
    %v5147 = vld [vmem:[%s4 + $0x40] sm:$0xff]
    %v5148 = vld [vmem:[%s4 + $0x48] sm:$0xff]
    %v5149 = vld [vmem:[%s4 + $0x50] sm:$0xff]
    %v5150 = vld [vmem:[%s4 + $0x58] sm:$0xff]
    %v5151 = vld [vmem:[%s4 + $0x60] sm:$0xff]
    %v5152 = vld [vmem:[%s4 + $0x68] sm:$0xff]
    %v5153 = vld [vmem:[%s4 + $0x70] sm:$0xff]
    %v5154 = vld [vmem:[%s4 + $0x78] sm:$0xff]
    %v5155 = vld [vmem:[%s4 + $0x80] sm:$0xff]
    %v5156 = vld [vmem:[%s4 + $0x88] sm:$0xff]
    %v5157 = vld [vmem:[%s4 + $0x90] sm:$0xff]
    %v5158 = vld [vmem:[%s4 + $0x98] sm:$0xff]
    %v5159 = vld [vmem:[%s4 + $0xa0] sm:$0xff]
    %v5160 = vld [vmem:[%s4 + $0xa8] sm:$0xff]
    %v5161 = vld [vmem:[%s4 + $0xb0] sm:$0xff]
    %v5162 = vld [vmem:[%s4 + $0xb8] sm:$0xff]
    %v5163 = vld [vmem:[%s4 + $0xc0] sm:$0xff]
    %v5164 = vld [vmem:[%s4 + $0xc8] sm:$0xff]
    %v5165 = vld [vmem:[%s4 + $0xd0] sm:$0xff]
    %v5166 = vld [vmem:[%s4 + $0xd8] sm:$0xff]
    %v5167 = vld [vmem:[%s4 + $0xe0] sm:$0xff]
    %v5168 = vld [vmem:[%s4 + $0xe8] sm:$0xff]
    %v5169 = vld [vmem:[%s4 + $0xf0] sm:$0xff]
    %v5170 = vld [vmem:[%s4 + $0xf8] sm:$0xff]
    %v5171 = vld [vmem:[%s4 + $0x100] sm:$0xff]
    %v5172 = vld [vmem:[%s4 + $0x108] sm:$0xff]
    %v5173 = vld [vmem:[%s4 + $0x110] sm:$0xff]
    %v5174 = vld [vmem:[%s4 + $0x118] sm:$0xff]
    %v5175 = vld [vmem:[%s4 + $0x120] sm:$0xff]
    %v5176 = vld [vmem:[%s4 + $0x128] sm:$0xff]
    %v5177 = vld [vmem:[%s4 + $0x130] sm:$0xff]
    %v5178 = vld [vmem:[%s4 + $0x138] sm:$0xff]
    %v5179 = vld [vmem:[%s4 + $0x140] sm:$0xff]
    %v5180 = vld [vmem:[%s4 + $0x148] sm:$0xff]
    %v5181 = vld [vmem:[%s4 + $0x150] sm:$0xff]
    %v5182 = vld [vmem:[%s4 + $0x158] sm:$0xff]
    %v5183 = vld [vmem:[%s4 + $0x160] sm:$0xff]
    %v5184 = vld [vmem:[%s4 + $0x168] sm:$0xff]
    %v5185 = vld [vmem:[%s4 + $0x170] sm:$0xff]
    %v5186 = vld [vmem:[%s4 + $0x178] sm:$0xff]
    %v5187 = vld [vmem:[%s4 + $0x180] sm:$0xff]
    %v5188 = vld [vmem:[%s4 + $0x188] sm:$0xff]
    %v5189 = vld [vmem:[%s4 + $0x190] sm:$0xff]
    %v5190 = vld [vmem:[%s4 + $0x198] sm:$0xff]
    %v5191 = vld [vmem:[%s4 + $0x1a0] sm:$0xff]
    %v5192 = vld [vmem:[%s4 + $0x1a8] sm:$0xff]
    %v5193 = vld [vmem:[%s4 + $0x1b0] sm:$0xff]
    %v5194 = vld [vmem:[%s4 + $0x1b8] sm:$0xff]
    %v5195 = vld [vmem:[%s4 + $0x1c0] sm:$0xff]
    %v5196 = vld [vmem:[%s4 + $0x1c8] sm:$0xff]
    %v5197 = vld [vmem:[%s4 + $0x1d0] sm:$0xff]
    %v5198 = vld [vmem:[%s4 + $0x1d8] sm:$0xff]
    %v5199 = vld [vmem:[%s4 + $0x1e0] sm:$0xff]
    %v5200 = vld [vmem:[%s4 + $0x1e8] sm:$0xff]
    %v5201 = vld [vmem:[%s4 + $0x1f0] sm:$0xff]
    %v5202 = vld [vmem:[%s4 + $0x1f8] sm:$0xff]
    %v5203 = vld [vmem:[%s5] sm:$0x1]
    %v5205 = vlaneseq
    %v5206 = vshrl.u32 %v5205, 7
    %v5207 = vsub.s32 0, %v5206
    %v5208 = vrot.slane %v5203, %v5207
    %v5211 = vcombine.high %v5138, %v5138
    %v5213 = vunpack.c.l.s4 1983009808
    %v5214 = vunpack.c.0.s8 %v5213
    %v5215 = vlaneseq
    %v5216 = vshrl.u32 %v5215, 7
    %v5217 = vsub.s32 %v5214, %v5216
    %v5218 = vrot.slane %v5138, %v5217
    %v5220 = vunpack.c.l.s4 1983009808
    %v5221 = vunpack.c.0.s8 %v5220
    %v5222 = vlaneseq
    %v5223 = vshrl.u32 %v5222, 7
    %v5224 = vsub.s32 %v5221, %v5223
    %v5225 = vrot.slane %v5211, %v5224
    %v5226 = vcombine.high %v5218, %v5218
    %v5227 = vcombine.high %v5225, %v5225
    %5232 = vmatprep.subr.mxu0 0.0
    %5233 = vmatpush1.msra.mxu0 %v5139
    %5234 = vmatprep.subr.mxu0 0.0
    %5235 = vmatpush1.msra.mxu0 %v5140
    %5236 = vmatprep.subr.mxu0 0.0
    %5237 = vmatpush1.msra.mxu0 %v5141
    %5238 = vmatprep.subr.mxu0 0.0
    %5239 = vmatpush1.msra.mxu0 %v5142
    %5240 = vmatprep.subr.mxu0 0.0
    %5241 = vmatpush1.msra.mxu0 %v5143
    %5242 = vmatprep.subr.mxu0 0.0
    %5243 = vmatpush1.msra.mxu0 %v5144
    %5244 = vmatprep.subr.mxu0 0.0
    %5245 = vmatpush1.msra.mxu0 %v5145
    %5246 = vmatprep.subr.mxu0 0.0
    %5247 = vmatpush1.msra.mxu0 %v5146
    %5248 = vmatprep.subr.mxu0 0.0
    %5249 = vmatpush1.msra.mxu0 %v5147
    %5250 = vmatprep.subr.mxu0 0.0
    %5251 = vmatpush1.msra.mxu0 %v5148
    %5252 = vmatprep.subr.mxu0 0.0
    %5253 = vmatpush1.msra.mxu0 %v5149
    %5254 = vmatprep.subr.mxu0 0.0
    %5255 = vmatpush1.msra.mxu0 %v5150
    %5256 = vmatprep.subr.mxu0 0.0
    %5257 = vmatpush1.msra.mxu0 %v5151
    %5258 = vmatprep.subr.mxu0 0.0
    %5259 = vmatpush1.msra.mxu0 %v5152
    %5260 = vmatprep.subr.mxu0 0.0
    %5261 = vmatpush1.msra.mxu0 %v5153
    %5262 = vmatprep.subr.mxu0 0.0
    %5263 = vmatpush1.msra.mxu0 %v5154
    %5264 = vmatprep.subr.mxu0 0.0
    %5265 = vmatpush1.msra.mxu0 %v5155
    %5266 = vmatprep.subr.mxu0 0.0
    %5267 = vmatpush1.msra.mxu0 %v5156
    %5268 = vmatprep.subr.mxu0 0.0
    %5269 = vmatpush1.msra.mxu0 %v5157
    %5270 = vmatprep.subr.mxu0 0.0
    %5271 = vmatpush1.msra.mxu0 %v5158
    %5272 = vmatprep.subr.mxu0 0.0
    %5273 = vmatpush1.msra.mxu0 %v5159
    %5274 = vmatprep.subr.mxu0 0.0
    %5275 = vmatpush1.msra.mxu0 %v5160
    %5276 = vmatprep.subr.mxu0 0.0
    %5277 = vmatpush1.msra.mxu0 %v5161
    %5278 = vmatprep.subr.mxu0 0.0
    %5279 = vmatpush1.msra.mxu0 %v5162
    %5280 = vmatprep.subr.mxu0 0.0
    %5281 = vmatpush1.msra.mxu0 %v5163
    %5282 = vmatprep.subr.mxu0 0.0
    %5283 = vmatpush1.msra.mxu0 %v5164
    %5284 = vmatprep.subr.mxu0 0.0
    %5285 = vmatpush1.msra.mxu0 %v5165
    %5286 = vmatprep.subr.mxu0 0.0
    %5287 = vmatpush1.msra.mxu0 %v5166
    %5288 = vmatprep.subr.mxu0 0.0
    %5289 = vmatpush1.msra.mxu0 %v5167
    %5290 = vmatprep.subr.mxu0 0.0
    %5291 = vmatpush1.msra.mxu0 %v5168
    %5292 = vmatprep.subr.mxu0 0.0
    %5293 = vmatpush1.msra.mxu0 %v5169
    %5294 = vmatprep.subr.mxu0 0.0
    %5295 = vmatpush1.msra.mxu0 %v5170
    %5296 = vmatprep.mubr.f32.mxu0 %v5226
    %5297 = vmatmul.mubr.f32.gmra.mrb[0].mxu0 %v5218
    %v5298 = vpop.f32.mrb[0].mxu0
    %v5299 = vadd.f32 %v5208, %v5298
    %v5300 = vpop.f32.mrb[0].mxu0
    %5301 = vdwg.mxu0
    %5302 = vmatprep.subr.mxu0 0.0
    %5303 = vmatpush1.msra.mxu0 %v5171
    %5304 = vmatprep.subr.mxu0 0.0
    %5305 = vmatpush1.msra.mxu0 %v5172
    %5306 = vmatprep.subr.mxu0 0.0
    %5307 = vmatpush1.msra.mxu0 %v5173
    %5308 = vmatprep.subr.mxu0 0.0
    %5309 = vmatpush1.msra.mxu0 %v5174
    %5310 = vmatprep.subr.mxu0 0.0
    %5311 = vmatpush1.msra.mxu0 %v5175
    %5312 = vmatprep.subr.mxu0 0.0
    %5313 = vmatpush1.msra.mxu0 %v5176
    %5314 = vmatprep.subr.mxu0 0.0
    %5315 = vmatpush1.msra.mxu0 %v5177
    %5316 = vmatprep.subr.mxu0 0.0
    %5317 = vmatpush1.msra.mxu0 %v5178
    %5318 = vmatprep.subr.mxu0 0.0
    %5319 = vmatpush1.msra.mxu0 %v5179
    %5320 = vmatprep.subr.mxu0 0.0
    %5321 = vmatpush1.msra.mxu0 %v5180
    %5322 = vmatprep.subr.mxu0 0.0
    %5323 = vmatpush1.msra.mxu0 %v5181
    %5324 = vmatprep.subr.mxu0 0.0
    %5325 = vmatpush1.msra.mxu0 %v5182
    %5326 = vmatprep.subr.mxu0 0.0
    %5327 = vmatpush1.msra.mxu0 %v5183
    %5328 = vmatprep.subr.mxu0 0.0
    %5329 = vmatpush1.msra.mxu0 %v5184
    %5330 = vmatprep.subr.mxu0 0.0
    %5331 = vmatpush1.msra.mxu0 %v5185
    %5332 = vmatprep.subr.mxu0 0.0
    %5333 = vmatpush1.msra.mxu0 %v5186
    %5334 = vmatprep.subr.mxu0 0.0
    %5335 = vmatpush1.msra.mxu0 %v5187
    %5336 = vmatprep.subr.mxu0 0.0
    %5337 = vmatpush1.msra.mxu0 %v5188
    %5338 = vmatprep.subr.mxu0 0.0
    %5339 = vmatpush1.msra.mxu0 %v5189
    %5340 = vmatprep.subr.mxu0 0.0
    %5341 = vmatpush1.msra.mxu0 %v5190
    %5342 = vmatprep.subr.mxu0 0.0
    %5343 = vmatpush1.msra.mxu0 %v5191
    %5344 = vmatprep.subr.mxu0 0.0
    %5345 = vmatpush1.msra.mxu0 %v5192
    %5346 = vmatprep.subr.mxu0 0.0
    %5347 = vmatpush1.msra.mxu0 %v5193
    %5348 = vmatprep.subr.mxu0 0.0
    %5349 = vmatpush1.msra.mxu0 %v5194
    %5350 = vmatprep.subr.mxu0 0.0
    %5351 = vmatpush1.msra.mxu0 %v5195
    %5352 = vmatprep.subr.mxu0 0.0
    %5353 = vmatpush1.msra.mxu0 %v5196
    %5354 = vmatprep.subr.mxu0 0.0
    %5355 = vmatpush1.msra.mxu0 %v5197
    %5356 = vmatprep.subr.mxu0 0.0
    %5357 = vmatpush1.msra.mxu0 %v5198
    %5358 = vmatprep.subr.mxu0 0.0
    %5359 = vmatpush1.msra.mxu0 %v5199
    %5360 = vmatprep.subr.mxu0 0.0
    %5361 = vmatpush1.msra.mxu0 %v5200
    %5362 = vmatprep.subr.mxu0 0.0
    %5363 = vmatpush1.msra.mxu0 %v5201
    %5364 = vmatprep.subr.mxu0 0.0
    %5365 = vmatpush1.msra.mxu0 %v5202
    %5366 = vmatprep.mubr.f32.mxu0 %v5227
    %5367 = vmatmul.mubr.f32.gmra.mrb[0].mxu0 %v5225
    %v5368 = vpop.f32.mrb[0].mxu0
    %v5369 = vadd.f32 %v5299, %v5368
    %v5370 = vpop.f32.mrb[0].mxu0
    %5371 = vdwg.mxu0
    %v5372 = vmax.f32 %v5369, 0.0
    %v5373 = vld [vmem:[%s6] sm:$0xff]
    %v5374 = vld [vmem:[%s6 + $0x8] sm:$0xff]
    %v5375 = vld [vmem:[%s6 + $0x10] sm:$0xff]
    %v5376 = vld [vmem:[%s6 + $0x18] sm:$0xff]
    %v5377 = vld [vmem:[%s7] sm:$0x1]
    %v5379 = vlaneseq
    %v5380 = vshrl.u32 %v5379, 7
    %v5381 = vsub.s32 0, %v5380
    %v5382 = vrot.slane %v5377, %v5381
    %vm5384 = vcmask 261120
    %v5386 = vsel %vm5384, %v5372, 0
    %5388 = vmatprep.subr.mxu0 0.0
    %5389 = vmatpush1.msra.mxu0 %v5373
    %5390 = vmatprep.subr.mxu0 0.0
    %5391 = vmatpush1.msra.mxu0 %v5374
    %5392 = vmatprep.subr.mxu0 0.0
    %5393 = vmatpush1.msra.mxu0 %v5375
    %5394 = vmatprep.subr.mxu0 0.0
    %5395 = vmatpush1.msra.mxu0 %v5376
    %5396 = vmatprep.subr.mxu0 0.0
    %5397 = vmatpush1.msra.mxu0 0.0
    %5398 = vmatprep.subr.mxu0 0.0
    %5399 = vmatpush1.msra.mxu0 0.0
    %5400 = vmatprep.subr.mxu0 0.0
    %5401 = vmatpush1.msra.mxu0 0.0
    %5402 = vmatprep.subr.mxu0 0.0
    %5403 = vmatpush1.msra.mxu0 0.0
    %5404 = vmatprep.subr.mxu0 0.0
    %5405 = vmatpush1.msra.mxu0 0.0
    %5406 = vmatprep.subr.mxu0 0.0
    %5407 = vmatpush1.msra.mxu0 0.0
    %5408 = vmatprep.subr.mxu0 0.0
    %5409 = vmatpush1.msra.mxu0 0.0
    %5410 = vmatprep.subr.mxu0 0.0
    %5411 = vmatpush1.msra.mxu0 0.0
    %5412 = vmatprep.subr.mxu0 0.0
    %5413 = vmatpush1.msra.mxu0 0.0
    %5414 = vmatprep.subr.mxu0 0.0
    %5415 = vmatpush1.msra.mxu0 0.0
    %5416 = vmatprep.subr.mxu0 0.0
    %5417 = vmatpush1.msra.mxu0 0.0
    %5418 = vmatprep.subr.mxu0 0.0
    %5419 = vmatpush1.msra.mxu0 0.0
    %5420 = vmatprep.subr.mxu0 0.0
    %5421 = vmatpush1.msra.mxu0 0.0
    %5422 = vmatprep.subr.mxu0 0.0
    %5423 = vmatpush1.msra.mxu0 0.0
    %5424 = vmatprep.subr.mxu0 0.0
    %5425 = vmatpush1.msra.mxu0 0.0
    %5426 = vmatprep.subr.mxu0 0.0
    %5427 = vmatpush1.msra.mxu0 0.0
    %5428 = vmatprep.subr.mxu0 0.0
    %5429 = vmatpush1.msra.mxu0 0.0
    %5430 = vmatprep.subr.mxu0 0.0
    %5431 = vmatpush1.msra.mxu0 0.0
    %5432 = vmatprep.subr.mxu0 0.0
    %5433 = vmatpush1.msra.mxu0 0.0
    %5434 = vmatprep.subr.mxu0 0.0
    %5435 = vmatpush1.msra.mxu0 0.0
    %5436 = vmatprep.subr.mxu0 0.0
    %5437 = vmatpush1.msra.mxu0 0.0
    %5438 = vmatprep.subr.mxu0 0.0
    %5439 = vmatpush1.msra.mxu0 0.0
    %5440 = vmatprep.subr.mxu0 0.0
    %5441 = vmatpush1.msra.mxu0 0.0
    %5442 = vmatprep.subr.mxu0 0.0
    %5443 = vmatpush1.msra.mxu0 0.0
    %5444 = vmatprep.subr.mxu0 0.0
    %5445 = vmatpush1.msra.mxu0 0.0
    %5446 = vmatprep.subr.mxu0 0.0
    %5447 = vmatpush1.msra.mxu0 0.0
    %5448 = vmatprep.subr.mxu0 0.0
    %5449 = vmatpush1.msra.mxu0 0.0
    %5450 = vmatprep.subr.mxu0 0.0
    %5451 = vmatpush1.msra.mxu0 0.0
    %5452 = vmatprep.mubr.f32.mxu0 0.0
    %5453 = vmatmul.mubr.f32.gmra.mrb[0].mxu0 %v5386
    %v5454 = vpop.f32.mrb[0].mxu0
    %v5455 = vadd.f32 %v5382, %v5454
    %v5456 = vpop.f32.mrb[0].mxu0
    %5457 = vdwg.mxu0
    %vm5458 = vcmask 74752
    %5459 = vst.msk [vmem:[#allocation5] sm:$0x3] %vm5458, %v5455
    // Predicated region
    $region34: #{conv_model_forward.1} parent=1 // pred_check
      _
    $region35: #{conv_model_forward.1} parent=1 // pred_check_branch
      %5461 = sbr.rel (0) target = $region37
    $region36: #{conv_model_forward.1} parent=1 // pred_region
      %s5463 = ssub.s32 32, 32
      %5464 = vsyncadd [#allocation6], %s5463
      %s5466 = sshll.u32 [#allocation5], 4
      %s5467 = int_to_ptr.vmem [resolvable:$true] %s5466
      %5469 = dma.vmem_to_hbm [thread:$0]  %s5467, 32, %s8, [#allocation6]
    $region37: #{conv_model_forward.1} parent=1 // pred_fallthru
      _
    // Predicated region
    $region38: #{conv_model_forward.1} parent=1 // pred_check
      _
    $region39: #{conv_model_forward.1} parent=1 // pred_check_branch
      %5471 = sbr.rel (0) target = $region41
    $region40: #{conv_model_forward.1} parent=1 // pred_region
      %5472 = dma.done [#allocation6], 32
    $region41: #{conv_model_forward.1} parent=1 // pred_fallthru
      _
    %5473 = vsyncpa [#allocation6], 1

</llo_original>
